<compile_context>
chip_gen: v7x
topology: tpu7x:2x2x1
jax: 0.10.0
libtpu: 0.0.40
codegen_flags: <defaults>
</compile_context>

<pallas_src>
import functools
import math

import jax
import jax.numpy as jnp
from jax.experimental import pallas as pl
from jax.experimental.pallas import tpu as pltpu


# ----------------------------------------------------------------------------
# Config (scaled-down stand-in for image_size=160 / ViT-B/16 / output_dim=64)
# ----------------------------------------------------------------------------
CFG = dict(
    image_size=32,   # stand-in for 160
    patch=16,
    hidden=64,       # stand-in for 768
    mlp=128,
    layers=2,        # stand-in for 12
    heads=4,
    output_dim=32,   # stand-in for 64
    head_hidden=32,  # Linear(output_dim, 32) in classifier / regressor
)
PAD = 8              # tokens per frame padded from n_tok=5 to 8 (sublane align)
HPAD = 128           # per-head lane-aligned column-group width (vreg lanes)

CONST_NAMES = ("template", "scatter", "conv_w", "conv_b", "attn_bias", "pool",
               "lnf_g", "lnf_b", "proj_w", "proj_b", "fusion_w", "fusion_b",
               "head1_w", "head1_b", "head2_w", "head2_b")
LAYER_NAMES = ("ln1_g", "ln1_b", "qkv_w", "qkv_b", "out_w", "out_b",
               "ln2_g", "ln2_b", "mlp1_w", "mlp1_b", "mlp2_w", "mlp2_b")


# ----------------------------------------------------------------------------
# Fused forward kernel: grid=(L,); one grid step == one encoder layer.
# Residual stream (all B*T frames) lives in h_ref scratch across grid steps.
# ----------------------------------------------------------------------------
def _forward_kernel(
    xp_ref, template_ref, scatter_ref, conv_w_ref, conv_b_ref,
    attn_bias_ref, pool_ref, lnf_g_ref, lnf_b_ref, proj_w_ref, proj_b_ref,
    fusion_w_ref, fusion_b_ref, head1_w_ref, head1_b_ref, head2_w_ref, head2_b_ref,
    ln1_g_ref, ln1_b_ref, qkv_w_ref, qkv_b_ref, out_w_ref, out_b_ref,
    ln2_g_ref, ln2_b_ref, mlp1_w_ref, mlp1_b_ref, mlp2_w_ref, mlp2_b_ref,
    out_ref,
    h_ref,                                   # VMEM scratch: (B*T*PAD, E) f32
    *, nh, hpad, pad, n_cls, inv_T, scale, eps):
  f32 = jnp.float32
  bf16 = jnp.bfloat16
  l = pl.program_id(0)

  def _mm(a, b):                             # bf16 MXU matmul, f32 accumulate
      return jnp.dot(a.astype(bf16), b.astype(bf16), preferred_element_type=f32)

  def _mm_nt(a, b):                          # a @ b.T without materializing b.T
      return jax.lax.dot_general(a.astype(bf16), b.astype(bf16),
                                 (((1,), (1,)), ((), ())),
                                 preferred_element_type=f32)

  def _ln(x, g, b):
      mu = jnp.mean(x, axis=-1, keepdims=True)
      xc = x - mu
      var = jnp.mean(xc * xc, axis=-1, keepdims=True)
      return xc * jax.lax.rsqrt(var + eps) * g + b

  # ---- prologue: patch embed (Conv2d k=s=patch) + cls/pos token assembly ----
  @pl.when(l == 0)
  def _():
      tok = _mm(xp_ref[...], conv_w_ref[...]) + conv_b_ref[...]     # (B*T*P, E)
      # template holds cls+pos[0] at row f*PAD, pos[1:] at patch rows, zeros at
      # pad rows; scatter places patch j of frame f at row f*PAD + 1 + j.
      h_ref[...] = template_ref[...] + _mm(scatter_ref[...], tok)   # (R, E)

  # ---- encoder layer `l` (weights for this layer streamed by the grid) ------
  h = h_ref[...]
  hn = _ln(h, ln1_g_ref[0], ln1_b_ref[0])
  # qkv weights are head-padded: each head's q/k/v occupy a 128-lane-aligned
  # column group (real dh=16 cols + zeros), so all slices below are aligned.
  qkv = _mm(hn, qkv_w_ref[0]) + qkv_b_ref[0]                        # (R, 3*nh*hpad)
  bias = attn_bias_ref[...]                  # block-diag frame mask + pad-key mask
  pv = []
  for hd in range(nh):
      q = qkv[:, hd * hpad:(hd + 1) * hpad]
      k = qkv[:, (nh + hd) * hpad:(nh + hd + 1) * hpad]
      v = qkv[:, (2 * nh + hd) * hpad:(2 * nh + hd + 1) * hpad]
      s = _mm_nt(q, k) * scale + bias                               # (R, R)
      s = s - jnp.max(s, axis=-1, keepdims=True)
      p = jnp.exp(s)
      p = p * pl.reciprocal(jnp.sum(p, axis=-1, keepdims=True), approx=True)
      pv.append(_mm(p, v))                                          # (R, hpad)
  attn = jnp.concatenate(pv, axis=-1)                               # (R, nh*hpad)
  h = h + _mm(attn, out_w_ref[0]) + out_b_ref[0]                    # residual
  hn2 = _ln(h, ln2_g_ref[0], ln2_b_ref[0])
  m = _mm(hn2, mlp1_w_ref[0]) + mlp1_b_ref[0]
  m = 0.5 * m * (1.0 + jax.lax.erf(m * 0.7071067811865476))         # exact GELU
  h_ref[...] = h + _mm(m, mlp2_w_ref[0]) + mlp2_b_ref[0]            # residual

  # ---- epilogue: final LN on class rows only, pool, proj, fusion, heads -----
  @pl.when(l == pl.num_programs(0) - 1)
  def _():
      cls = h_ref[pl.ds(0, n_cls, stride=pad), :]    # strided class-token gather
      clsn = _ln(cls, lnf_g_ref[...], lnf_b_ref[...])                # (B*T, E)
      pooled = _mm(pool_ref[...], clsn) * inv_T      # temporal mean   (B, E)
      feats = _mm(pooled, proj_w_ref[...]) + proj_b_ref[...]         # proj (B, O)
      fused = jnp.maximum(_mm(feats, fusion_w_ref[...]) + fusion_b_ref[...], 0.0)
      # classifier & regressor batched: concat hidden, block-diag (padded) final
      h1 = jnp.maximum(_mm(fused, head1_w_ref[...]) + head1_b_ref[...], 0.0)
      y = _mm(h1, head2_w_ref[...]) + head2_b_ref[...]   # (B, 128) lane-dense
      col = jax.lax.broadcasted_iota(jnp.int32, y.shape, 1)
      out_ref[...] = jnp.where(col == 0, 1.0 / (1.0 + jnp.exp(-y)), y)


# ----------------------------------------------------------------------------
# Parameters (PyTorch-like layout) + packing into the fused-kernel bundle
# ----------------------------------------------------------------------------
def init_params(key, cfg):
    C = 3
    p = cfg["patch"]
    E = cfg["hidden"]
    M = cfg["mlp"]
    O = cfg["output_dim"]
    HH = cfg["head_hidden"]
    n_patches = (cfg["image_size"] // p) ** 2
    n_tok = n_patches + 1

    def nrm(k, shape, scale=0.02):
        return (scale * jax.random.normal(k, shape)).astype(jnp.float32)

    keys = iter(jax.random.split(key, 64 + 16 * cfg["layers"]))
    params = {
        "conv_w": nrm(next(keys), (C * p * p, E)),
        "conv_b": nrm(next(keys), (E,)),
        "class_token": nrm(next(keys), (1, 1, E)),
        "pos_embedding": nrm(next(keys), (1, n_tok, E)),
        "ln_g": jnp.ones((E,), jnp.float32),
        "ln_b": jnp.zeros((E,), jnp.float32),
        "proj_w": nrm(next(keys), (E, O)),
        "proj_b": nrm(next(keys), (O,)),
        "fusion_w": nrm(next(keys), (O, O)),
        "fusion_b": nrm(next(keys), (O,)),
        "cls1_w": nrm(next(keys), (O, HH)),
        "cls1_b": nrm(next(keys), (HH,)),
        "cls2_w": nrm(next(keys), (HH, 1)),
        "cls2_b": nrm(next(keys), (1,)),
        "reg1_w": nrm(next(keys), (O, HH)),
        "reg1_b": nrm(next(keys), (HH,)),
        "reg2_w": nrm(next(keys), (HH, 1)),
        "reg2_b": nrm(next(keys), (1,)),
        "layers": [],
    }
    for _ in range(cfg["layers"]):
        params["layers"].append({
            "ln1_g": jnp.ones((E,), jnp.float32),
            "ln1_b": jnp.zeros((E,), jnp.float32),
            "qkv_w": nrm(next(keys), (E, 3 * E)),
            "qkv_b": nrm(next(keys), (3 * E,)),
            "out_w": nrm(next(keys), (E, E)),
            "out_b": nrm(next(keys), (E,)),
            "ln2_g": jnp.ones((E,), jnp.float32),
            "ln2_b": jnp.zeros((E,), jnp.float32),
            "mlp1_w": nrm(next(keys), (E, M)),
            "mlp1_b": nrm(next(keys), (M,)),
            "mlp2_w": nrm(next(keys), (M, E)),
            "mlp2_b": nrm(next(keys), (E,)),
        })
    return params


def _pad_qkv(w, b, E, nh, dh, hpad):
    """Repack (E, 3E) qkv weight so each head's q/k/v sit in their own
    128-lane-aligned column group (zero-padded)."""
    wq = jnp.zeros((E, nh * hpad), jnp.float32)
    wk = jnp.zeros((E, nh * hpad), jnp.float32)
    wv = jnp.zeros((E, nh * hpad), jnp.float32)
    bq = jnp.zeros((nh * hpad,), jnp.float32)
    bk = jnp.zeros((nh * hpad,), jnp.float32)
    bv = jnp.zeros((nh * hpad,), jnp.float32)
    for hd in range(nh):
        src = slice(hd * dh, (hd + 1) * dh)
        dst = slice(hd * hpad, hd * hpad + dh)
        wq = wq.at[:, dst].set(w[:, src])
        wk = wk.at[:, dst].set(w[:, E + hd * dh:E + (hd + 1) * dh])
        wv = wv.at[:, dst].set(w[:, 2 * E + hd * dh:2 * E + (hd + 1) * dh])
        bq = bq.at[dst].set(b[src])
        bk = bk.at[dst].set(b[E + hd * dh:E + (hd + 1) * dh])
        bv = bv.at[dst].set(b[2 * E + hd * dh:2 * E + (hd + 1) * dh])
    return jnp.concatenate([wq, wk, wv], axis=1), jnp.concatenate([bq, bk, bv])


def _pad_out(w, E, nh, dh, hpad):
    """Out-projection weight re-indexed to the head-padded row layout."""
    wp = jnp.zeros((nh * hpad, E), jnp.float32)
    for hd in range(nh):
        wp = wp.at[hd * hpad:hd * hpad + dh, :].set(w[hd * dh:(hd + 1) * dh, :])
    return wp


def pack_params(params, cfg, B, T):
    """Reorganize PyTorch-layout params into the fused-kernel bundle."""
    E = cfg["hidden"]
    M = cfg["mlp"]
    L = cfg["layers"]
    O = cfg["output_dim"]
    HH = cfg["head_hidden"]
    nh = cfg["heads"]
    dh = E // nh
    n_patches = (cfg["image_size"] // cfg["patch"]) ** 2
    n_tok = n_patches + 1
    assert n_tok <= PAD
    R = B * T * PAD
    bf16 = jnp.bfloat16

    # per-frame token template (row 0: cls+pos0, rows 1..n_patches: pos, pad 0)
    tmpl = jnp.zeros((PAD, E), jnp.float32)
    tmpl = tmpl.at[0].set(params["class_token"][0, 0] + params["pos_embedding"][0, 0])
    tmpl = tmpl.at[1:n_tok].set(params["pos_embedding"][0, 1:n_tok])
    template = jnp.tile(tmpl, (B * T, 1))                            # (R, E)

    # scatter: places patch j of frame f at padded row f*PAD + 1 + j
    S = jnp.zeros((PAD, n_patches), jnp.float32).at[1:n_tok].set(
        jnp.eye(n_patches, dtype=jnp.float32))
    scatter = jnp.kron(jnp.eye(B * T, dtype=jnp.float32), S).astype(bf16)

    # block-diagonal (per-frame) attention bias + pad-key mask
    r = jnp.arange(R)
    same_frame = (r[:, None] // PAD) == (r[None, :] // PAD)
    real_key = (r[None, :] % PAD) < n_tok
    attn_bias = jnp.where(same_frame & real_key, 0.0, -1e30).astype(jnp.float32)

    # temporal-pool selector (exact 0/1 in bf16; kernel multiplies by 1/T)
    pool = ((jnp.arange(B * T)[None, :] // T) ==
            jnp.arange(B)[:, None]).astype(bf16)                     # (B, B*T)

    qkv = [_pad_qkv(lp["qkv_w"], lp["qkv_b"], E, nh, dh, HPAD)
           for lp in params["layers"]]
    out_w = [_pad_out(lp["out_w"], E, nh, dh, HPAD) for lp in params["layers"]]
    stack = lambda name: jnp.stack([lp[name] for lp in params["layers"]], 0)

    # batched heads: hidden layers concatenated, final layers block-diagonal,
    # padded to 128 output lanes (lane-dense output slab)
    head2_w = (jnp.zeros((2 * HH, 128), jnp.float32)
               .at[:HH, 0].set(params["cls2_w"][:, 0])
               .at[HH:, 1].set(params["reg2_w"][:, 0]))
    head2_b = (jnp.zeros((128,), jnp.float32)
               .at[0].set(params["cls2_b"][0])
               .at[1].set(params["reg2_b"][0]))

    return dict(
        template=template,
        scatter=scatter,
        conv_w=params["conv_w"].astype(bf16),
        conv_b=params["conv_b"].reshape(1, E),
        attn_bias=attn_bias,
        pool=pool,
        lnf_g=params["ln_g"].reshape(1, E), lnf_b=params["ln_b"].reshape(1, E),
        proj_w=params["proj_w"].astype(bf16),
        proj_b=params["proj_b"].reshape(1, O),
        fusion_w=params["fusion_w"].astype(bf16),
        fusion_b=params["fusion_b"].reshape(1, O),
        head1_w=jnp.concatenate([params["cls1_w"], params["reg1_w"]],
                                axis=1).astype(bf16),
        head1_b=jnp.concatenate([params["cls1_b"],
                                 params["reg1_b"]]).reshape(1, 2 * HH),
        head2_w=head2_w.astype(bf16),
        head2_b=head2_b.reshape(1, 128),
        ln1_g=stack("ln1_g").reshape(L, 1, E), ln1_b=stack("ln1_b").reshape(L, 1, E),
        qkv_w=jnp.stack([w for w, _ in qkv], 0).astype(bf16),
        qkv_b=jnp.stack([b for _, b in qkv], 0).reshape(L, 1, 3 * nh * HPAD),
        out_w=jnp.stack(out_w, 0).astype(bf16),
        out_b=stack("out_b").reshape(L, 1, E),
        ln2_g=stack("ln2_g").reshape(L, 1, E), ln2_b=stack("ln2_b").reshape(L, 1, E),
        mlp1_w=stack("mlp1_w").astype(bf16), mlp1_b=stack("mlp1_b").reshape(L, 1, M),
        mlp2_w=stack("mlp2_w").astype(bf16), mlp2_b=stack("mlp2_b").reshape(L, 1, E),
    )


# ----------------------------------------------------------------------------
# Forward wrapper (one pallas_call for the whole model, grid over layers)
# ----------------------------------------------------------------------------
def traffic_transformer_forward(x, kp, cfg):
    """x: (B, T, C, H, W) f32 -> (pred_scores (B,1), pred_alerts (B,1))."""
    B, T, C, H, W = x.shape
    p = cfg["patch"]
    E = cfg["hidden"]
    L = cfg["layers"]
    nh = cfg["heads"]
    nH, nW = H // p, W // p
    n_patches = nH * nW
    CPP = C * p * p
    R = B * T * PAD

    # patch extraction glue (== Conv2d(C,E,k=p,s=p) im2col), kept outside kernel
    xp = (x.reshape(B, T, C, nH, p, nW, p)
            .transpose(0, 1, 3, 5, 2, 4, 6)
            .reshape(B * T * n_patches, CPP)).astype(jnp.bfloat16)

    def const_spec(shape):
        n = len(shape)
        return pl.BlockSpec(tuple(shape), lambda l, _n=n: (0,) * _n)

    def layer_spec(shape):          # leading L axis streamed per grid step
        n = len(shape)
        return pl.BlockSpec((1,) + tuple(shape[1:]),
                            lambda l, _n=n: (l,) + (0,) * (_n - 1))

    consts = [kp[name] for name in CONST_NAMES]
    layerws = [kp[name] for name in LAYER_NAMES]
    in_specs = ([const_spec(xp.shape)]
                + [const_spec(a.shape) for a in consts]
                + [layer_spec(a.shape) for a in layerws])

    kernel = functools.partial(
        _forward_kernel,
        nh=nh, hpad=HPAD, pad=PAD, n_cls=B * T, inv_T=1.0 / T,
        scale=1.0 / math.sqrt(E // nh), eps=1e-6)

    # TODO(synk): on v7x, add a leading CORE_PARALLEL batch-shard grid axis
    # (B/2 rows per TensorCore); kept single-core here for portability.
    out = pl.pallas_call(
        kernel,
        grid=(L,),
        in_specs=in_specs,
        out_specs=pl.BlockSpec((B, 128), lambda l: (0, 0)),
        out_shape=jax.ShapeDtypeStruct((B, 128), jnp.float32),
        scratch_shapes=[pltpu.VMEM((R, E), jnp.float32)],
        compiler_params=pltpu.CompilerParams(
            dimension_semantics=("arbitrary",),       # layers are sequential
            vmem_limit_bytes=32 * 1024 * 1024),
    )(xp, *consts, *layerws)

    y = out[:, 0:2]                           # (B, 2) = [sigmoid score, alert]
    return y[:, 0:1], y[:, 1:2]


# ----------------------------------------------------------------------------
if __name__ == "__main__":
    key = jax.random.PRNGKey(0)
    k_in, k_par = jax.random.split(key)

    B, T = 2, 3
    x = jax.random.normal(
        k_in, (B, T, 3, CFG["image_size"], CFG["image_size"]), dtype=jnp.float32
    )
    params = init_params(k_par, CFG)
    kparams = pack_params(params, CFG, B, T)

    fwd = jax.jit(functools.partial(traffic_transformer_forward, cfg=CFG))
    scores, alerts = fwd(x, kparams)
    jax.block_until_ready((scores, alerts))

    assert scores.shape == (B, 1) and alerts.shape == (B, 1)
    assert bool(jnp.all(jnp.isfinite(scores))) and bool(jnp.all(jnp.isfinite(alerts)))
    assert bool(jnp.all(scores >= 0.0)) and bool(jnp.all(scores <= 1.0))
    print("KERNEL_OK")
</pallas_src>

<mosaic_0001>
module attributes {stable_mosaic.version = 11 : i64} {
  func.func @_forward_kernel(%arg0: i32, %arg1: memref<24x768xbf16, #tpu.memory_space<vmem>>, %arg2: memref<48x64xf32, #tpu.memory_space<vmem>>, %arg3: memref<48x24xbf16, #tpu.memory_space<vmem>>, %arg4: memref<768x64xbf16, #tpu.memory_space<vmem>>, %arg5: memref<1x64xf32, #tpu.memory_space<vmem>>, %arg6: memref<48x48xf32, #tpu.memory_space<vmem>>, %arg7: memref<2x6xbf16, #tpu.memory_space<vmem>>, %arg8: memref<1x64xf32, #tpu.memory_space<vmem>>, %arg9: memref<1x64xf32, #tpu.memory_space<vmem>>, %arg10: memref<64x32xbf16, #tpu.memory_space<vmem>>, %arg11: memref<1x32xf32, #tpu.memory_space<vmem>>, %arg12: memref<32x32xbf16, #tpu.memory_space<vmem>>, %arg13: memref<1x32xf32, #tpu.memory_space<vmem>>, %arg14: memref<32x64xbf16, #tpu.memory_space<vmem>>, %arg15: memref<1x64xf32, #tpu.memory_space<vmem>>, %arg16: memref<64x128xbf16, #tpu.memory_space<vmem>>, %arg17: memref<1x128xf32, #tpu.memory_space<vmem>>, %arg18: memref<1x1x64xf32, #tpu.memory_space<vmem>>, %arg19: memref<1x1x64xf32, #tpu.memory_space<vmem>>, %arg20: memref<1x64x1536xbf16, #tpu.memory_space<vmem>>, %arg21: memref<1x1x1536xf32, #tpu.memory_space<vmem>>, %arg22: memref<1x512x64xbf16, #tpu.memory_space<vmem>>, %arg23: memref<1x1x64xf32, #tpu.memory_space<vmem>>, %arg24: memref<1x1x64xf32, #tpu.memory_space<vmem>>, %arg25: memref<1x1x64xf32, #tpu.memory_space<vmem>>, %arg26: memref<1x64x128xbf16, #tpu.memory_space<vmem>>, %arg27: memref<1x1x128xf32, #tpu.memory_space<vmem>>, %arg28: memref<1x128x64xbf16, #tpu.memory_space<vmem>>, %arg29: memref<1x1x64xf32, #tpu.memory_space<vmem>>, %arg30: memref<2x128xf32, #tpu.memory_space<vmem>>, %arg31: memref<48x64xf32, #tpu.memory_space<vmem>>) attributes {dimension_semantics = [#tpu.dimension_semantics<arbitrary>], iteration_bounds = array<i64: 2>, scalar_prefetch = 0 : i64, scratch_operands = 1 : i64, tpu.core_type = #tpu.core_type<tc>, window_params = [{pipeline_mode = #tpu.pipeline_mode<synchronous>, transform_indices = @transform_0, window_bounds = array<i64: 24, 768>}, {pipeline_mode = #tpu.pipeline_mode<synchronous>, transform_indices = @transform_1, window_bounds = array<i64: 48, 64>}, {pipeline_mode = #tpu.pipeline_mode<synchronous>, transform_indices = @transform_2, window_bounds = array<i64: 48, 24>}, {pipeline_mode = #tpu.pipeline_mode<synchronous>, transform_indices = @transform_3, window_bounds = array<i64: 768, 64>}, {pipeline_mode = #tpu.pipeline_mode<synchronous>, transform_indices = @transform_4, window_bounds = array<i64: 1, 64>}, {pipeline_mode = #tpu.pipeline_mode<synchronous>, transform_indices = @transform_5, window_bounds = array<i64: 48, 48>}, {pipeline_mode = #tpu.pipeline_mode<synchronous>, transform_indices = @transform_6, window_bounds = array<i64: 2, 6>}, {pipeline_mode = #tpu.pipeline_mode<synchronous>, transform_indices = @transform_7, window_bounds = array<i64: 1, 64>}, {pipeline_mode = #tpu.pipeline_mode<synchronous>, transform_indices = @transform_8, window_bounds = array<i64: 1, 64>}, {pipeline_mode = #tpu.pipeline_mode<synchronous>, transform_indices = @transform_9, window_bounds = array<i64: 64, 32>}, {pipeline_mode = #tpu.pipeline_mode<synchronous>, transform_indices = @transform_10, window_bounds = array<i64: 1, 32>}, {pipeline_mode = #tpu.pipeline_mode<synchronous>, transform_indices = @transform_11, window_bounds = array<i64: 32, 32>}, {pipeline_mode = #tpu.pipeline_mode<synchronous>, transform_indices = @transform_12, window_bounds = array<i64: 1, 32>}, {pipeline_mode = #tpu.pipeline_mode<synchronous>, transform_indices = @transform_13, window_bounds = array<i64: 32, 64>}, {pipeline_mode = #tpu.pipeline_mode<synchronous>, transform_indices = @transform_14, window_bounds = array<i64: 1, 64>}, {pipeline_mode = #tpu.pipeline_mode<synchronous>, transform_indices = @transform_15, window_bounds = array<i64: 64, 128>}, {pipeline_mode = #tpu.pipeline_mode<synchronous>, transform_indices = @transform_16, window_bounds = array<i64: 1, 128>}, {transform_indices = @transform_17, window_bounds = array<i64: 1, 1, 64>}, {transform_indices = @transform_18, window_bounds = array<i64: 1, 1, 64>}, {transform_indices = @transform_19, window_bounds = array<i64: 1, 64, 1536>}, {transform_indices = @transform_20, window_bounds = array<i64: 1, 1, 1536>}, {transform_indices = @transform_21, window_bounds = array<i64: 1, 512, 64>}, {transform_indices = @transform_22, window_bounds = array<i64: 1, 1, 64>}, {transform_indices = @transform_23, window_bounds = array<i64: 1, 1, 64>}, {transform_indices = @transform_24, window_bounds = array<i64: 1, 1, 64>}, {transform_indices = @transform_25, window_bounds = array<i64: 1, 64, 128>}, {transform_indices = @transform_26, window_bounds = array<i64: 1, 1, 128>}, {transform_indices = @transform_27, window_bounds = array<i64: 1, 128, 64>}, {transform_indices = @transform_28, window_bounds = array<i64: 1, 1, 64>}, {pipeline_mode = #tpu.pipeline_mode<synchronous>, transform_indices = @transform_29, window_bounds = array<i64: 2, 128>}]} {
    %c0_i32 = arith.constant 0 : i32
    %0 = arith.cmpi eq, %arg0, %c0_i32 : i32
    %1 = arith.extui %0 : i1 to i32
    %c0_i32_0 = arith.constant 0 : i32
    %2 = arith.cmpi ne, %1, %c0_i32_0 : i32
    scf.if %2 {
      %c0_79 = arith.constant 0 : index
      %c0_80 = arith.constant 0 : index
      %188 = vector.load %arg1[%c0_79, %c0_80] : memref<24x768xbf16, #tpu.memory_space<vmem>>, vector<24x768xbf16>
      %c0_81 = arith.constant 0 : index
      %c0_82 = arith.constant 0 : index
      %189 = vector.load %arg4[%c0_81, %c0_82] : memref<768x64xbf16, #tpu.memory_space<vmem>>, vector<768x64xbf16>
      %cst_83 = arith.constant dense<0.000000e+00> : vector<24x64xf32>
      %190 = tpu.matmul %188, %189, %cst_83 {dimension_numbers = #tpu.dot_dimension_numbers<[1], [0], [0], [1], [0, 0, 1, 1], [], []>} : vector<24x768xbf16>, vector<768x64xbf16>, vector<24x64xf32> -> vector<24x64xf32>
      %c0_84 = arith.constant 0 : index
      %c0_85 = arith.constant 0 : index
      %191 = vector.load %arg5[%c0_84, %c0_85] : memref<1x64xf32, #tpu.memory_space<vmem>>, vector<1x64xf32>
      %192 = vector.broadcast %191 : vector<1x64xf32> to vector<24x64xf32>
      %193 = arith.addf %190, %192 : vector<24x64xf32>
      %c0_86 = arith.constant 0 : index
      %c0_87 = arith.constant 0 : index
      %194 = vector.load %arg2[%c0_86, %c0_87] : memref<48x64xf32, #tpu.memory_space<vmem>>, vector<48x64xf32>
      %c0_88 = arith.constant 0 : index
      %c0_89 = arith.constant 0 : index
      %195 = vector.load %arg3[%c0_88, %c0_89] : memref<48x24xbf16, #tpu.memory_space<vmem>>, vector<48x24xbf16>
      %196 = arith.truncf %193 : vector<24x64xf32> to vector<24x64xbf16>
      %cst_90 = arith.constant dense<0.000000e+00> : vector<48x64xf32>
      %197 = tpu.matmul %195, %196, %cst_90 {dimension_numbers = #tpu.dot_dimension_numbers<[1], [0], [0], [1], [0, 0, 1, 1], [], []>} : vector<48x24xbf16>, vector<24x64xbf16>, vector<48x64xf32> -> vector<48x64xf32>
      %198 = arith.addf %194, %197 : vector<48x64xf32>
      %c0_91 = arith.constant 0 : index
      %c0_92 = arith.constant 0 : index
      %199 = vector.load %arg31[%c0_91, %c0_92] : memref<48x64xf32, #tpu.memory_space<vmem>>, vector<48x64xf32>
      tpu.vector_store %arg31[%c0_91, %c0_92], %198 {strides = array<i32>} : memref<48x64xf32, #tpu.memory_space<vmem>>, vector<48x64xf32>,
    } else {
    }
    %c0 = arith.constant 0 : index
    %c0_1 = arith.constant 0 : index
    %3 = vector.load %arg31[%c0, %c0_1] : memref<48x64xf32, #tpu.memory_space<vmem>>, vector<48x64xf32>
    %c0_2 = arith.constant 0 : index
    %c0_3 = arith.constant 0 : index
    %c0_4 = arith.constant 0 : index
    %4 = vector.load %arg18[%c0_2, %c0_3, %c0_4] : memref<1x1x64xf32, #tpu.memory_space<vmem>>, vector<1x1x64xf32>
    %5 = vector.shape_cast %4 : vector<1x1x64xf32> to vector<1x64xf32>
    %c0_5 = arith.constant 0 : index
    %c0_6 = arith.constant 0 : index
    %c0_7 = arith.constant 0 : index
    %6 = vector.load %arg19[%c0_5, %c0_6, %c0_7] : memref<1x1x64xf32, #tpu.memory_space<vmem>>, vector<1x1x64xf32>
    %7 = vector.shape_cast %6 : vector<1x1x64xf32> to vector<1x64xf32>
    %cst = arith.constant dense<0.000000e+00> : vector<48xf32>
    %8 = vector.multi_reduction <add>, %3, %cst [1] : vector<48x64xf32> to vector<48xf32>
    %9 = vector.shape_cast %8 : vector<48xf32> to vector<48x1xf32>
    %cst_8 = arith.constant 6.400000e+01 : f32
    %10 = vector.broadcast %cst_8 : f32 to vector<48x1xf32>
    %11 = arith.divf %9, %10 : vector<48x1xf32>
    %12 = vector.broadcast %11 : vector<48x1xf32> to vector<48x64xf32>
    %13 = arith.subf %3, %12 : vector<48x64xf32>
    %14 = arith.mulf %13, %13 : vector<48x64xf32>
    %cst_9 = arith.constant dense<0.000000e+00> : vector<48xf32>
    %15 = vector.multi_reduction <add>, %14, %cst_9 [1] : vector<48x64xf32> to vector<48xf32>
    %16 = vector.shape_cast %15 : vector<48xf32> to vector<48x1xf32>
    %cst_10 = arith.constant 6.400000e+01 : f32
    %17 = vector.broadcast %cst_10 : f32 to vector<48x1xf32>
    %18 = arith.divf %16, %17 : vector<48x1xf32>
    %cst_11 = arith.constant 9.99999997E-7 : f32
    %19 = vector.broadcast %cst_11 : f32 to vector<48x1xf32>
    %20 = arith.addf %18, %19 : vector<48x1xf32>
    %21 = math.rsqrt %20 : vector<48x1xf32>
    %22 = vector.broadcast %21 : vector<48x1xf32> to vector<48x64xf32>
    %23 = arith.mulf %13, %22 : vector<48x64xf32>
    %24 = vector.broadcast %5 : vector<1x64xf32> to vector<48x64xf32>
    %25 = arith.mulf %23, %24 : vector<48x64xf32>
    %26 = vector.broadcast %7 : vector<1x64xf32> to vector<48x64xf32>
    %27 = arith.addf %25, %26 : vector<48x64xf32>
    %c0_12 = arith.constant 0 : index
    %c0_13 = arith.constant 0 : index
    %c0_14 = arith.constant 0 : index
    %28 = vector.load %arg20[%c0_12, %c0_13, %c0_14] : memref<1x64x1536xbf16, #tpu.memory_space<vmem>>, vector<1x64x1536xbf16>
    %29 = vector.shape_cast %28 : vector<1x64x1536xbf16> to vector<64x1536xbf16>
    %30 = arith.truncf %27 : vector<48x64xf32> to vector<48x64xbf16>
    %cst_15 = arith.constant dense<0.000000e+00> : vector<48x1536xf32>
    %31 = tpu.matmul %30, %29, %cst_15 {dimension_numbers = #tpu.dot_dimension_numbers<[1], [0], [0], [1], [0, 0, 1, 1], [], []>} : vector<48x64xbf16>, vector<64x1536xbf16>, vector<48x1536xf32> -> vector<48x1536xf32>
    %c0_16 = arith.constant 0 : index
    %c0_17 = arith.constant 0 : index
    %c0_18 = arith.constant 0 : index
    %32 = vector.load %arg21[%c0_16, %c0_17, %c0_18] : memref<1x1x1536xf32, #tpu.memory_space<vmem>>, vector<1x1x1536xf32>
    %33 = vector.shape_cast %32 : vector<1x1x1536xf32> to vector<1x1536xf32>
    %34 = vector.broadcast %33 : vector<1x1536xf32> to vector<48x1536xf32>
    %35 = arith.addf %31, %34 : vector<48x1536xf32>
    %c0_19 = arith.constant 0 : index
    %c0_20 = arith.constant 0 : index
    %36 = vector.load %arg6[%c0_19, %c0_20] : memref<48x48xf32, #tpu.memory_space<vmem>>, vector<48x48xf32>
    %37 = vector.extract_strided_slice %35 {offsets = [0, 0], sizes = [48, 128], strides = [1, 1]} : vector<48x1536xf32> to vector<48x128xf32>
    %38 = vector.extract_strided_slice %35 {offsets = [0, 512], sizes = [48, 128], strides = [1, 1]} : vector<48x1536xf32> to vector<48x128xf32>
    %39 = vector.extract_strided_slice %35 {offsets = [0, 1024], sizes = [48, 128], strides = [1, 1]} : vector<48x1536xf32> to vector<48x128xf32>
    %40 = arith.truncf %37 : vector<48x128xf32> to vector<48x128xbf16>
    %41 = arith.truncf %38 : vector<48x128xf32> to vector<48x128xbf16>
    %cst_21 = arith.constant dense<0.000000e+00> : vector<48x48xf32>
    %42 = tpu.matmul %40, %41, %cst_21 {dimension_numbers = #tpu.dot_dimension_numbers<[1], [1], [0], [0], [0, 0, 1, 0], [], []>} : vector<48x128xbf16>, vector<48x128xbf16>, vector<48x48xf32> -> vector<48x48xf32>
    %cst_22 = arith.constant 2.500000e-01 : f32
    %43 = vector.broadcast %cst_22 : f32 to vector<48x48xf32>
    %44 = arith.mulf %42, %43 : vector<48x48xf32>
    %45 = arith.addf %44, %36 : vector<48x48xf32>
    %cst_23 = arith.constant dense<0xFF800000> : vector<48xf32>
    %46 = vector.multi_reduction <maximumf>, %45, %cst_23 [1] : vector<48x48xf32> to vector<48xf32>
    %47 = vector.shape_cast %46 : vector<48xf32> to vector<48x1xf32>
    %48 = vector.broadcast %47 : vector<48x1xf32> to vector<48x48xf32>
    %49 = arith.subf %45, %48 : vector<48x48xf32>
    %50 = math.exp %49 : vector<48x48xf32>
    %cst_24 = arith.constant dense<0.000000e+00> : vector<48xf32>
    %51 = vector.multi_reduction <add>, %50, %cst_24 [1] : vector<48x48xf32> to vector<48xf32>
    %52 = vector.shape_cast %51 : vector<48xf32> to vector<48x1xf32>
    %53 = tpu.reciprocal %52 {approx = true} : vector<48x1xf32> -> vector<48x1xf32>
    %54 = vector.broadcast %53 : vector<48x1xf32> to vector<48x48xf32>
    %55 = arith.mulf %50, %54 : vector<48x48xf32>
    %56 = arith.truncf %55 : vector<48x48xf32> to vector<48x48xbf16>
    %57 = arith.truncf %39 : vector<48x128xf32> to vector<48x128xbf16>
    %cst_25 = arith.constant dense<0.000000e+00> : vector<48x128xf32>
    %58 = tpu.matmul %56, %57, %cst_25 {dimension_numbers = #tpu.dot_dimension_numbers<[1], [0], [0], [1], [0, 0, 1, 1], [], []>} : vector<48x48xbf16>, vector<48x128xbf16>, vector<48x128xf32> -> vector<48x128xf32>
    %59 = vector.extract_strided_slice %35 {offsets = [0, 128], sizes = [48, 128], strides = [1, 1]} : vector<48x1536xf32> to vector<48x128xf32>
    %60 = vector.extract_strided_slice %35 {offsets = [0, 640], sizes = [48, 128], strides = [1, 1]} : vector<48x1536xf32> to vector<48x128xf32>
    %61 = vector.extract_strided_slice %35 {offsets = [0, 1152], sizes = [48, 128], strides = [1, 1]} : vector<48x1536xf32> to vector<48x128xf32>
    %62 = arith.truncf %59 : vector<48x128xf32> to vector<48x128xbf16>
    %63 = arith.truncf %60 : vector<48x128xf32> to vector<48x128xbf16>
    %cst_26 = arith.constant dense<0.000000e+00> : vector<48x48xf32>
    %64 = tpu.matmul %62, %63, %cst_26 {dimension_numbers = #tpu.dot_dimension_numbers<[1], [1], [0], [0], [0, 0, 1, 0], [], []>} : vector<48x128xbf16>, vector<48x128xbf16>, vector<48x48xf32> -> vector<48x48xf32>
    %cst_27 = arith.constant 2.500000e-01 : f32
    %65 = vector.broadcast %cst_27 : f32 to vector<48x48xf32>
    %66 = arith.mulf %64, %65 : vector<48x48xf32>
    %67 = arith.addf %66, %36 : vector<48x48xf32>
    %cst_28 = arith.constant dense<0xFF800000> : vector<48xf32>
    %68 = vector.multi_reduction <maximumf>, %67, %cst_28 [1] : vector<48x48xf32> to vector<48xf32>
    %69 = vector.shape_cast %68 : vector<48xf32> to vector<48x1xf32>
    %70 = vector.broadcast %69 : vector<48x1xf32> to vector<48x48xf32>
    %71 = arith.subf %67, %70 : vector<48x48xf32>
    %72 = math.exp %71 : vector<48x48xf32>
    %cst_29 = arith.constant dense<0.000000e+00> : vector<48xf32>
    %73 = vector.multi_reduction <add>, %72, %cst_29 [1] : vector<48x48xf32> to vector<48xf32>
    %74 = vector.shape_cast %73 : vector<48xf32> to vector<48x1xf32>
    %75 = tpu.reciprocal %74 {approx = true} : vector<48x1xf32> -> vector<48x1xf32>
    %76 = vector.broadcast %75 : vector<48x1xf32> to vector<48x48xf32>
    %77 = arith.mulf %72, %76 : vector<48x48xf32>
    %78 = arith.truncf %77 : vector<48x48xf32> to vector<48x48xbf16>
    %79 = arith.truncf %61 : vector<48x128xf32> to vector<48x128xbf16>
    %cst_30 = arith.constant dense<0.000000e+00> : vector<48x128xf32>
    %80 = tpu.matmul %78, %79, %cst_30 {dimension_numbers = #tpu.dot_dimension_numbers<[1], [0], [0], [1], [0, 0, 1, 1], [], []>} : vector<48x48xbf16>, vector<48x128xbf16>, vector<48x128xf32> -> vector<48x128xf32>
    %81 = vector.extract_strided_slice %35 {offsets = [0, 256], sizes = [48, 128], strides = [1, 1]} : vector<48x1536xf32> to vector<48x128xf32>
    %82 = vector.extract_strided_slice %35 {offsets = [0, 768], sizes = [48, 128], strides = [1, 1]} : vector<48x1536xf32> to vector<48x128xf32>
    %83 = vector.extract_strided_slice %35 {offsets = [0, 1280], sizes = [48, 128], strides = [1, 1]} : vector<48x1536xf32> to vector<48x128xf32>
    %84 = arith.truncf %81 : vector<48x128xf32> to vector<48x128xbf16>
    %85 = arith.truncf %82 : vector<48x128xf32> to vector<48x128xbf16>
    %cst_31 = arith.constant dense<0.000000e+00> : vector<48x48xf32>
    %86 = tpu.matmul %84, %85, %cst_31 {dimension_numbers = #tpu.dot_dimension_numbers<[1], [1], [0], [0], [0, 0, 1, 0], [], []>} : vector<48x128xbf16>, vector<48x128xbf16>, vector<48x48xf32> -> vector<48x48xf32>
    %cst_32 = arith.constant 2.500000e-01 : f32
    %87 = vector.broadcast %cst_32 : f32 to vector<48x48xf32>
    %88 = arith.mulf %86, %87 : vector<48x48xf32>
    %89 = arith.addf %88, %36 : vector<48x48xf32>
    %cst_33 = arith.constant dense<0xFF800000> : vector<48xf32>
    %90 = vector.multi_reduction <maximumf>, %89, %cst_33 [1] : vector<48x48xf32> to vector<48xf32>
    %91 = vector.shape_cast %90 : vector<48xf32> to vector<48x1xf32>
    %92 = vector.broadcast %91 : vector<48x1xf32> to vector<48x48xf32>
    %93 = arith.subf %89, %92 : vector<48x48xf32>
    %94 = math.exp %93 : vector<48x48xf32>
    %cst_34 = arith.constant dense<0.000000e+00> : vector<48xf32>
    %95 = vector.multi_reduction <add>, %94, %cst_34 [1] : vector<48x48xf32> to vector<48xf32>
    %96 = vector.shape_cast %95 : vector<48xf32> to vector<48x1xf32>
    %97 = tpu.reciprocal %96 {approx = true} : vector<48x1xf32> -> vector<48x1xf32>
    %98 = vector.broadcast %97 : vector<48x1xf32> to vector<48x48xf32>
    %99 = arith.mulf %94, %98 : vector<48x48xf32>
    %100 = arith.truncf %99 : vector<48x48xf32> to vector<48x48xbf16>
    %101 = arith.truncf %83 : vector<48x128xf32> to vector<48x128xbf16>
    %cst_35 = arith.constant dense<0.000000e+00> : vector<48x128xf32>
    %102 = tpu.matmul %100, %101, %cst_35 {dimension_numbers = #tpu.dot_dimension_numbers<[1], [0], [0], [1], [0, 0, 1, 1], [], []>} : vector<48x48xbf16>, vector<48x128xbf16>, vector<48x128xf32> -> vector<48x128xf32>
    %103 = vector.extract_strided_slice %35 {offsets = [0, 384], sizes = [48, 128], strides = [1, 1]} : vector<48x1536xf32> to vector<48x128xf32>
    %104 = vector.extract_strided_slice %35 {offsets = [0, 896], sizes = [48, 128], strides = [1, 1]} : vector<48x1536xf32> to vector<48x128xf32>
    %105 = vector.extract_strided_slice %35 {offsets = [0, 1408], sizes = [48, 128], strides = [1, 1]} : vector<48x1536xf32> to vector<48x128xf32>
    %106 = arith.truncf %103 : vector<48x128xf32> to vector<48x128xbf16>
    %107 = arith.truncf %104 : vector<48x128xf32> to vector<48x128xbf16>
    %cst_36 = arith.constant dense<0.000000e+00> : vector<48x48xf32>
    %108 = tpu.matmul %106, %107, %cst_36 {dimension_numbers = #tpu.dot_dimension_numbers<[1], [1], [0], [0], [0, 0, 1, 0], [], []>} : vector<48x128xbf16>, vector<48x128xbf16>, vector<48x48xf32> -> vector<48x48xf32>
    %cst_37 = arith.constant 2.500000e-01 : f32
    %109 = vector.broadcast %cst_37 : f32 to vector<48x48xf32>
    %110 = arith.mulf %108, %109 : vector<48x48xf32>
    %111 = arith.addf %110, %36 : vector<48x48xf32>
    %cst_38 = arith.constant dense<0xFF800000> : vector<48xf32>
    %112 = vector.multi_reduction <maximumf>, %111, %cst_38 [1] : vector<48x48xf32> to vector<48xf32>
    %113 = vector.shape_cast %112 : vector<48xf32> to vector<48x1xf32>
    %114 = vector.broadcast %113 : vector<48x1xf32> to vector<48x48xf32>
    %115 = arith.subf %111, %114 : vector<48x48xf32>
    %116 = math.exp %115 : vector<48x48xf32>
    %cst_39 = arith.constant dense<0.000000e+00> : vector<48xf32>
    %117 = vector.multi_reduction <add>, %116, %cst_39 [1] : vector<48x48xf32> to vector<48xf32>
    %118 = vector.shape_cast %117 : vector<48xf32> to vector<48x1xf32>
    %119 = tpu.reciprocal %118 {approx = true} : vector<48x1xf32> -> vector<48x1xf32>
    %120 = vector.broadcast %119 : vector<48x1xf32> to vector<48x48xf32>
    %121 = arith.mulf %116, %120 : vector<48x48xf32>
    %122 = arith.truncf %121 : vector<48x48xf32> to vector<48x48xbf16>
    %123 = arith.truncf %105 : vector<48x128xf32> to vector<48x128xbf16>
    %cst_40 = arith.constant dense<0.000000e+00> : vector<48x128xf32>
    %124 = tpu.matmul %122, %123, %cst_40 {dimension_numbers = #tpu.dot_dimension_numbers<[1], [0], [0], [1], [0, 0, 1, 1], [], []>} : vector<48x48xbf16>, vector<48x128xbf16>, vector<48x128xf32> -> vector<48x128xf32>
    %125 = tpu.concatenate %58, %80, %102, %124 in 1 : vector<48x128xf32>, vector<48x128xf32>, vector<48x128xf32>, vector<48x128xf32> -> vector<48x512xf32>
    %c0_41 = arith.constant 0 : index
    %c0_42 = arith.constant 0 : index
    %c0_43 = arith.constant 0 : index
    %126 = vector.load %arg22[%c0_41, %c0_42, %c0_43] : memref<1x512x64xbf16, #tpu.memory_space<vmem>>, vector<1x512x64xbf16>
    %127 = vector.shape_cast %126 : vector<1x512x64xbf16> to vector<512x64xbf16>
    %128 = arith.truncf %125 : vector<48x512xf32> to vector<48x512xbf16>
    %cst_44 = arith.constant dense<0.000000e+00> : vector<48x64xf32>
    %129 = tpu.matmul %128, %127, %cst_44 {dimension_numbers = #tpu.dot_dimension_numbers<[1], [0], [0], [1], [0, 0, 1, 1], [], []>} : vector<48x512xbf16>, vector<512x64xbf16>, vector<48x64xf32> -> vector<48x64xf32>
    %130 = arith.addf %3, %129 : vector<48x64xf32>
    %c0_45 = arith.constant 0 : index
    %c0_46 = arith.constant 0 : index
    %c0_47 = arith.constant 0 : index
    %131 = vector.load %arg23[%c0_45, %c0_46, %c0_47] : memref<1x1x64xf32, #tpu.memory_space<vmem>>, vector<1x1x64xf32>
    %132 = vector.shape_cast %131 : vector<1x1x64xf32> to vector<1x64xf32>
    %133 = vector.broadcast %132 : vector<1x64xf32> to vector<48x64xf32>
    %134 = arith.addf %130, %133 : vector<48x64xf32>
    %c0_48 = arith.constant 0 : index
    %c0_49 = arith.constant 0 : index
    %c0_50 = arith.constant 0 : index
    %135 = vector.load %arg24[%c0_48, %c0_49, %c0_50] : memref<1x1x64xf32, #tpu.memory_space<vmem>>, vector<1x1x64xf32>
    %136 = vector.shape_cast %135 : vector<1x1x64xf32> to vector<1x64xf32>
    %c0_51 = arith.constant 0 : index
    %c0_52 = arith.constant 0 : index
    %c0_53 = arith.constant 0 : index
    %137 = vector.load %arg25[%c0_51, %c0_52, %c0_53] : memref<1x1x64xf32, #tpu.memory_space<vmem>>, vector<1x1x64xf32>
    %138 = vector.shape_cast %137 : vector<1x1x64xf32> to vector<1x64xf32>
    %cst_54 = arith.constant dense<0.000000e+00> : vector<48xf32>
    %139 = vector.multi_reduction <add>, %134, %cst_54 [1] : vector<48x64xf32> to vector<48xf32>
    %140 = vector.shape_cast %139 : vector<48xf32> to vector<48x1xf32>
    %cst_55 = arith.constant 6.400000e+01 : f32
    %141 = vector.broadcast %cst_55 : f32 to vector<48x1xf32>
    %142 = arith.divf %140, %141 : vector<48x1xf32>
    %143 = vector.broadcast %142 : vector<48x1xf32> to vector<48x64xf32>
    %144 = arith.subf %134, %143 : vector<48x64xf32>
    %145 = arith.mulf %144, %144 : vector<48x64xf32>
    %cst_56 = arith.constant dense<0.000000e+00> : vector<48xf32>
    %146 = vector.multi_reduction <add>, %145, %cst_56 [1] : vector<48x64xf32> to vector<48xf32>
    %147 = vector.shape_cast %146 : vector<48xf32> to vector<48x1xf32>
    %cst_57 = arith.constant 6.400000e+01 : f32
    %148 = vector.broadcast %cst_57 : f32 to vector<48x1xf32>
    %149 = arith.divf %147, %148 : vector<48x1xf32>
    %cst_58 = arith.constant 9.99999997E-7 : f32
    %150 = vector.broadcast %cst_58 : f32 to vector<48x1xf32>
    %151 = arith.addf %149, %150 : vector<48x1xf32>
    %152 = math.rsqrt %151 : vector<48x1xf32>
    %153 = vector.broadcast %152 : vector<48x1xf32> to vector<48x64xf32>
    %154 = arith.mulf %144, %153 : vector<48x64xf32>
    %155 = vector.broadcast %136 : vector<1x64xf32> to vector<48x64xf32>
    %156 = arith.mulf %154, %155 : vector<48x64xf32>
    %157 = vector.broadcast %138 : vector<1x64xf32> to vector<48x64xf32>
    %158 = arith.addf %156, %157 : vector<48x64xf32>
    %c0_59 = arith.constant 0 : index
    %c0_60 = arith.constant 0 : index
    %c0_61 = arith.constant 0 : index
    %159 = vector.load %arg26[%c0_59, %c0_60, %c0_61] : memref<1x64x128xbf16, #tpu.memory_space<vmem>>, vector<1x64x128xbf16>
    %160 = vector.shape_cast %159 : vector<1x64x128xbf16> to vector<64x128xbf16>
    %161 = arith.truncf %158 : vector<48x64xf32> to vector<48x64xbf16>
    %cst_62 = arith.constant dense<0.000000e+00> : vector<48x128xf32>
    %162 = tpu.matmul %161, %160, %cst_62 {dimension_numbers = #tpu.dot_dimension_numbers<[1], [0], [0], [1], [0, 0, 1, 1], [], []>} : vector<48x64xbf16>, vector<64x128xbf16>, vector<48x128xf32> -> vector<48x128xf32>
    %c0_63 = arith.constant 0 : index
    %c0_64 = arith.constant 0 : index
    %c0_65 = arith.constant 0 : index
    %163 = vector.load %arg27[%c0_63, %c0_64, %c0_65] : memref<1x1x128xf32, #tpu.memory_space<vmem>>, vector<1x1x128xf32>
    %164 = vector.shape_cast %163 : vector<1x1x128xf32> to vector<1x128xf32>
    %165 = vector.broadcast %164 : vector<1x128xf32> to vector<48x128xf32>
    %166 = arith.addf %162, %165 : vector<48x128xf32>
    %cst_66 = arith.constant 5.000000e-01 : f32
    %167 = vector.broadcast %cst_66 : f32 to vector<48x128xf32>
    %168 = arith.mulf %167, %166 : vector<48x128xf32>
    %cst_67 = arith.constant 0.707106769 : f32
    %169 = vector.broadcast %cst_67 : f32 to vector<48x128xf32>
    %170 = arith.mulf %166, %169 : vector<48x128xf32>
    %171 = math.erf %170 : vector<48x128xf32>
    %cst_68 = arith.constant 1.000000e+00 : f32
    %172 = vector.broadcast %cst_68 : f32 to vector<48x128xf32>
    %173 = arith.addf %172, %171 : vector<48x128xf32>
    %174 = arith.mulf %168, %173 : vector<48x128xf32>
    %c0_69 = arith.constant 0 : index
    %c0_70 = arith.constant 0 : index
    %c0_71 = arith.constant 0 : index
    %175 = vector.load %arg28[%c0_69, %c0_70, %c0_71] : memref<1x128x64xbf16, #tpu.memory_space<vmem>>, vector<1x128x64xbf16>
    %176 = vector.shape_cast %175 : vector<1x128x64xbf16> to vector<128x64xbf16>
    %177 = arith.truncf %174 : vector<48x128xf32> to vector<48x128xbf16>
    %cst_72 = arith.constant dense<0.000000e+00> : vector<48x64xf32>
    %178 = tpu.matmul %177, %176, %cst_72 {dimension_numbers = #tpu.dot_dimension_numbers<[1], [0], [0], [1], [0, 0, 1, 1], [], []>} : vector<48x128xbf16>, vector<128x64xbf16>, vector<48x64xf32> -> vector<48x64xf32>
    %179 = arith.addf %134, %178 : vector<48x64xf32>
    %c0_73 = arith.constant 0 : index
    %c0_74 = arith.constant 0 : index
    %c0_75 = arith.constant 0 : index
    %180 = vector.load %arg29[%c0_73, %c0_74, %c0_75] : memref<1x1x64xf32, #tpu.memory_space<vmem>>, vector<1x1x64xf32>
    %181 = vector.shape_cast %180 : vector<1x1x64xf32> to vector<1x64xf32>
    %182 = vector.broadcast %181 : vector<1x64xf32> to vector<48x64xf32>
    %183 = arith.addf %179, %182 : vector<48x64xf32>
    %c0_76 = arith.constant 0 : index
    %c0_77 = arith.constant 0 : index
    %184 = vector.load %arg31[%c0_76, %c0_77] : memref<48x64xf32, #tpu.memory_space<vmem>>, vector<48x64xf32>
    tpu.vector_store %arg31[%c0_76, %c0_77], %183 {strides = array<i32>} : memref<48x64xf32, #tpu.memory_space<vmem>>, vector<48x64xf32>,
    %c1_i32 = arith.constant 1 : i32
    %185 = arith.cmpi eq, %arg0, %c1_i32 : i32
    %186 = arith.extui %185 : i1 to i32
    %c0_i32_78 = arith.constant 0 : i32
    %187 = arith.cmpi ne, %186, %c0_i32_78 : i32
    scf.if %187 {
      %c0_79 = arith.constant 0 : index
      %c0_80 = arith.constant 0 : index
      %188 = tpu.strided_load %arg31[%c0_79, %c0_80] {strides = array<i32: 8, 1>} : memref<48x64xf32, #tpu.memory_space<vmem>>, vector<6x64xf32>
      %c0_81 = arith.constant 0 : index
      %c0_82 = arith.constant 0 : index
      %189 = vector.load %arg8[%c0_81, %c0_82] : memref<1x64xf32, #tpu.memory_space<vmem>>, vector<1x64xf32>
      %c0_83 = arith.constant 0 : index
      %c0_84 = arith.constant 0 : index
      %190 = vector.load %arg9[%c0_83, %c0_84] : memref<1x64xf32, #tpu.memory_space<vmem>>, vector<1x64xf32>
      %cst_85 = arith.constant dense<0.000000e+00> : vector<6xf32>
      %191 = vector.multi_reduction <add>, %188, %cst_85 [1] : vector<6x64xf32> to vector<6xf32>
      %192 = vector.shape_cast %191 : vector<6xf32> to vector<6x1xf32>
      %cst_86 = arith.constant 6.400000e+01 : f32
      %193 = vector.broadcast %cst_86 : f32 to vector<6x1xf32>
      %194 = arith.divf %192, %193 : vector<6x1xf32>
      %195 = vector.broadcast %194 : vector<6x1xf32> to vector<6x64xf32>
      %196 = arith.subf %188, %195 : vector<6x64xf32>
      %197 = arith.mulf %196, %196 : vector<6x64xf32>
      %cst_87 = arith.constant dense<0.000000e+00> : vector<6xf32>
      %198 = vector.multi_reduction <add>, %197, %cst_87 [1] : vector<6x64xf32> to vector<6xf32>
      %199 = vector.shape_cast %198 : vector<6xf32> to vector<6x1xf32>
      %cst_88 = arith.constant 6.400000e+01 : f32
      %200 = vector.broadcast %cst_88 : f32 to vector<6x1xf32>
      %201 = arith.divf %199, %200 : vector<6x1xf32>
      %cst_89 = arith.constant 9.99999997E-7 : f32
      %202 = vector.broadcast %cst_89 : f32 to vector<6x1xf32>
      %203 = arith.addf %201, %202 : vector<6x1xf32>
      %204 = math.rsqrt %203 : vector<6x1xf32>
      %205 = vector.broadcast %204 : vector<6x1xf32> to vector<6x64xf32>
      %206 = arith.mulf %196, %205 : vector<6x64xf32>
      %207 = vector.broadcast %189 : vector<1x64xf32> to vector<6x64xf32>
      %208 = arith.mulf %206, %207 : vector<6x64xf32>
      %209 = vector.broadcast %190 : vector<1x64xf32> to vector<6x64xf32>
      %210 = arith.addf %208, %209 : vector<6x64xf32>
      %c0_90 = arith.constant 0 : index
      %c0_91 = arith.constant 0 : index
      %211 = vector.load %arg7[%c0_90, %c0_91] : memref<2x6xbf16, #tpu.memory_space<vmem>>, vector<2x6xbf16>
      %212 = arith.truncf %210 : vector<6x64xf32> to vector<6x64xbf16>
      %cst_92 = arith.constant dense<0.000000e+00> : vector<2x64xf32>
      %213 = tpu.matmul %211, %212, %cst_92 {dimension_numbers = #tpu.dot_dimension_numbers<[1], [0], [0], [1], [0, 0, 1, 1], [], []>} : vector<2x6xbf16>, vector<6x64xbf16>, vector<2x64xf32> -> vector<2x64xf32>
      %cst_93 = arith.constant 0.333333343 : f32
      %214 = vector.broadcast %cst_93 : f32 to vector<2x64xf32>
      %215 = arith.mulf %213, %214 : vector<2x64xf32>
      %c0_94 = arith.constant 0 : index
      %c0_95 = arith.constant 0 : index
      %216 = vector.load %arg10[%c0_94, %c0_95] : memref<64x32xbf16, #tpu.memory_space<vmem>>, vector<64x32xbf16>
      %217 = arith.truncf %215 : vector<2x64xf32> to vector<2x64xbf16>
      %cst_96 = arith.constant dense<0.000000e+00> : vector<2x32xf32>
      %218 = tpu.matmul %217, %216, %cst_96 {dimension_numbers = #tpu.dot_dimension_numbers<[1], [0], [0], [1], [0, 0, 1, 1], [], []>} : vector<2x64xbf16>, vector<64x32xbf16>, vector<2x32xf32> -> vector<2x32xf32>
      %c0_97 = arith.constant 0 : index
      %c0_98 = arith.constant 0 : index
      %219 = vector.load %arg11[%c0_97, %c0_98] : memref<1x32xf32, #tpu.memory_space<vmem>>, vector<1x32xf32>
      %220 = vector.broadcast %219 : vector<1x32xf32> to vector<2x32xf32>
      %221 = arith.addf %218, %220 : vector<2x32xf32>
      %c0_99 = arith.constant 0 : index
      %c0_100 = arith.constant 0 : index
      %222 = vector.load %arg12[%c0_99, %c0_100] : memref<32x32xbf16, #tpu.memory_space<vmem>>, vector<32x32xbf16>
      %223 = arith.truncf %221 : vector<2x32xf32> to vector<2x32xbf16>
      %cst_101 = arith.constant dense<0.000000e+00> : vector<2x32xf32>
      %224 = tpu.matmul %223, %222, %cst_101 {dimension_numbers = #tpu.dot_dimension_numbers<[1], [0], [0], [1], [0, 0, 1, 1], [], []>} : vector<2x32xbf16>, vector<32x32xbf16>, vector<2x32xf32> -> vector<2x32xf32>
      %c0_102 = arith.constant 0 : index
      %c0_103 = arith.constant 0 : index
      %225 = vector.load %arg13[%c0_102, %c0_103] : memref<1x32xf32, #tpu.memory_space<vmem>>, vector<1x32xf32>
      %226 = vector.broadcast %225 : vector<1x32xf32> to vector<2x32xf32>
      %227 = arith.addf %224, %226 : vector<2x32xf32>
      %cst_104 = arith.constant 0.000000e+00 : f32
      %228 = vector.broadcast %cst_104 : f32 to vector<2x32xf32>
      %229 = arith.maximumf %227, %228 : vector<2x32xf32>
      %c0_105 = arith.constant 0 : index
      %c0_106 = arith.constant 0 : index
      %230 = vector.load %arg14[%c0_105, %c0_106] : memref<32x64xbf16, #tpu.memory_space<vmem>>, vector<32x64xbf16>
      %231 = arith.truncf %229 : vector<2x32xf32> to vector<2x32xbf16>
      %cst_107 = arith.constant dense<0.000000e+00> : vector<2x64xf32>
      %232 = tpu.matmul %231, %230, %cst_107 {dimension_numbers = #tpu.dot_dimension_numbers<[1], [0], [0], [1], [0, 0, 1, 1], [], []>} : vector<2x32xbf16>, vector<32x64xbf16>, vector<2x64xf32> -> vector<2x64xf32>
      %c0_108 = arith.constant 0 : index
      %c0_109 = arith.constant 0 : index
      %233 = vector.load %arg15[%c0_108, %c0_109] : memref<1x64xf32, #tpu.memory_space<vmem>>, vector<1x64xf32>
      %234 = vector.broadcast %233 : vector<1x64xf32> to vector<2x64xf32>
      %235 = arith.addf %232, %234 : vector<2x64xf32>
      %cst_110 = arith.constant 0.000000e+00 : f32
      %236 = vector.broadcast %cst_110 : f32 to vector<2x64xf32>
      %237 = arith.maximumf %235, %236 : vector<2x64xf32>
      %c0_111 = arith.constant 0 : index
      %c0_112 = arith.constant 0 : index
      %238 = vector.load %arg16[%c0_111, %c0_112] : memref<64x128xbf16, #tpu.memory_space<vmem>>, vector<64x128xbf16>
      %239 = arith.truncf %237 : vector<2x64xf32> to vector<2x64xbf16>
      %cst_113 = arith.constant dense<0.000000e+00> : vector<2x128xf32>
      %240 = tpu.matmul %239, %238, %cst_113 {dimension_numbers = #tpu.dot_dimension_numbers<[1], [0], [0], [1], [0, 0, 1, 1], [], []>} : vector<2x64xbf16>, vector<64x128xbf16>, vector<2x128xf32> -> vector<2x128xf32>
      %c0_114 = arith.constant 0 : index
      %c0_115 = arith.constant 0 : index
      %241 = vector.load %arg17[%c0_114, %c0_115] : memref<1x128xf32, #tpu.memory_space<vmem>>, vector<1x128xf32>
      %242 = vector.broadcast %241 : vector<1x128xf32> to vector<2x128xf32>
      %243 = arith.addf %240, %242 : vector<2x128xf32>
      %244 = tpu.iota {dimensions = array<i32: 1>} : vector<2x128xi32>
      %c0_i32_116 = arith.constant 0 : i32
      %245 = vector.broadcast %c0_i32_116 : i32 to vector<2x128xi32>
      %246 = arith.cmpi eq, %244, %245 : vector<2x128xi32>
      %cst_117 = arith.constant 0.000000e+00 : f32
      %247 = vector.broadcast %cst_117 : f32 to vector<2x128xf32>
      %248 = arith.subf %247, %243 : vector<2x128xf32>
      %249 = math.exp %248 : vector<2x128xf32>
      %cst_118 = arith.constant 1.000000e+00 : f32
      %250 = vector.broadcast %cst_118 : f32 to vector<2x128xf32>
      %251 = arith.addf %250, %249 : vector<2x128xf32>
      %cst_119 = arith.constant 1.000000e+00 : f32
      %252 = vector.broadcast %cst_119 : f32 to vector<2x128xf32>
      %253 = arith.divf %252, %251 : vector<2x128xf32>
      %254 = arith.select %246, %253, %243 : vector<2x128xi1>, vector<2x128xf32>
      %c0_120 = arith.constant 0 : index
      %c0_121 = arith.constant 0 : index
      %255 = vector.load %arg30[%c0_120, %c0_121] : memref<2x128xf32, #tpu.memory_space<vmem>>, vector<2x128xf32>
      tpu.vector_store %arg30[%c0_120, %c0_121], %254 {strides = array<i32>} : memref<2x128xf32, #tpu.memory_space<vmem>>, vector<2x128xf32>,
    } else {
    }
    return
  }
  func.func @transform_0(%arg0: i32) -> (i32, i32) {
    %c0_i32 = arith.constant 0 : i32
    %c0_i32_0 = arith.constant 0 : i32
    %c0_i32_1 = arith.constant 0 : i32
    return %c0_i32, %c0_i32_0 : i32, i32
  }
  func.func @transform_1(%arg0: i32) -> (i32, i32) {
    %c0_i32 = arith.constant 0 : i32
    %c0_i32_0 = arith.constant 0 : i32
    %c0_i32_1 = arith.constant 0 : i32
    return %c0_i32, %c0_i32_0 : i32, i32
  }
  func.func @transform_2(%arg0: i32) -> (i32, i32) {
    %c0_i32 = arith.constant 0 : i32
    %c0_i32_0 = arith.constant 0 : i32
    %c0_i32_1 = arith.constant 0 : i32
    return %c0_i32, %c0_i32_0 : i32, i32
  }
  func.func @transform_3(%arg0: i32) -> (i32, i32) {
    %c0_i32 = arith.constant 0 : i32
    %c0_i32_0 = arith.constant 0 : i32
    %c0_i32_1 = arith.constant 0 : i32
    return %c0_i32, %c0_i32_0 : i32, i32
  }
  func.func @transform_4(%arg0: i32) -> (i32, i32) {
    %c0_i32 = arith.constant 0 : i32
    %c0_i32_0 = arith.constant 0 : i32
    %c0_i32_1 = arith.constant 0 : i32
    return %c0_i32, %c0_i32_0 : i32, i32
  }
  func.func @transform_5(%arg0: i32) -> (i32, i32) {
    %c0_i32 = arith.constant 0 : i32
    %c0_i32_0 = arith.constant 0 : i32
    %c0_i32_1 = arith.constant 0 : i32
    return %c0_i32, %c0_i32_0 : i32, i32
  }
  func.func @transform_6(%arg0: i32) -> (i32, i32) {
    %c0_i32 = arith.constant 0 : i32
    %c0_i32_0 = arith.constant 0 : i32
    %c0_i32_1 = arith.constant 0 : i32
    return %c0_i32, %c0_i32_0 : i32, i32
  }
  func.func @transform_7(%arg0: i32) -> (i32, i32) {
    %c0_i32 = arith.constant 0 : i32
    %c0_i32_0 = arith.constant 0 : i32
    %c0_i32_1 = arith.constant 0 : i32
    return %c0_i32, %c0_i32_0 : i32, i32
  }
  func.func @transform_8(%arg0: i32) -> (i32, i32) {
    %c0_i32 = arith.constant 0 : i32
    %c0_i32_0 = arith.constant 0 : i32
    %c0_i32_1 = arith.constant 0 : i32
    return %c0_i32, %c0_i32_0 : i32, i32
  }
  func.func @transform_9(%arg0: i32) -> (i32, i32) {
    %c0_i32 = arith.constant 0 : i32
    %c0_i32_0 = arith.constant 0 : i32
    %c0_i32_1 = arith.constant 0 : i32
    return %c0_i32, %c0_i32_0 : i32, i32
  }
  func.func @transform_10(%arg0: i32) -> (i32, i32) {
    %c0_i32 = arith.constant 0 : i32
    %c0_i32_0 = arith.constant 0 : i32
    %c0_i32_1 = arith.constant 0 : i32
    return %c0_i32, %c0_i32_0 : i32, i32
  }
  func.func @transform_11(%arg0: i32) -> (i32, i32) {
    %c0_i32 = arith.constant 0 : i32
    %c0_i32_0 = arith.constant 0 : i32
    %c0_i32_1 = arith.constant 0 : i32
    return %c0_i32, %c0_i32_0 : i32, i32
  }
  func.func @transform_12(%arg0: i32) -> (i32, i32) {
    %c0_i32 = arith.constant 0 : i32
    %c0_i32_0 = arith.constant 0 : i32
    %c0_i32_1 = arith.constant 0 : i32
    return %c0_i32, %c0_i32_0 : i32, i32
  }
  func.func @transform_13(%arg0: i32) -> (i32, i32) {
    %c0_i32 = arith.constant 0 : i32
    %c0_i32_0 = arith.constant 0 : i32
    %c0_i32_1 = arith.constant 0 : i32
    return %c0_i32, %c0_i32_0 : i32, i32
  }
  func.func @transform_14(%arg0: i32) -> (i32, i32) {
    %c0_i32 = arith.constant 0 : i32
    %c0_i32_0 = arith.constant 0 : i32
    %c0_i32_1 = arith.constant 0 : i32
    return %c0_i32, %c0_i32_0 : i32, i32
  }
  func.func @transform_15(%arg0: i32) -> (i32, i32) {
    %c0_i32 = arith.constant 0 : i32
    %c0_i32_0 = arith.constant 0 : i32
    %c0_i32_1 = arith.constant 0 : i32
    return %c0_i32, %c0_i32_0 : i32, i32
  }
  func.func @transform_16(%arg0: i32) -> (i32, i32) {
    %c0_i32 = arith.constant 0 : i32
    %c0_i32_0 = arith.constant 0 : i32
    %c0_i32_1 = arith.constant 0 : i32
    return %c0_i32, %c0_i32_0 : i32, i32
  }
  func.func @transform_17(%arg0: i32) -> (i32, i32, i32) {
    %c0_i32 = arith.constant 0 : i32
    %c0_i32_0 = arith.constant 0 : i32
    %c0_i32_1 = arith.constant 0 : i32
    return %arg0, %c0_i32, %c0_i32_0 : i32, i32, i32
  }
  func.func @transform_18(%arg0: i32) -> (i32, i32, i32) {
    %c0_i32 = arith.constant 0 : i32
    %c0_i32_0 = arith.constant 0 : i32
    %c0_i32_1 = arith.constant 0 : i32
    return %arg0, %c0_i32, %c0_i32_0 : i32, i32, i32
  }
  func.func @transform_19(%arg0: i32) -> (i32, i32, i32) {
    %c0_i32 = arith.constant 0 : i32
    %c0_i32_0 = arith.constant 0 : i32
    %c0_i32_1 = arith.constant 0 : i32
    return %arg0, %c0_i32, %c0_i32_0 : i32, i32, i32
  }
  func.func @transform_20(%arg0: i32) -> (i32, i32, i32) {
    %c0_i32 = arith.constant 0 : i32
    %c0_i32_0 = arith.constant 0 : i32
    %c0_i32_1 = arith.constant 0 : i32
    return %arg0, %c0_i32, %c0_i32_0 : i32, i32, i32
  }
  func.func @transform_21(%arg0: i32) -> (i32, i32, i32) {
    %c0_i32 = arith.constant 0 : i32
    %c0_i32_0 = arith.constant 0 : i32
    %c0_i32_1 = arith.constant 0 : i32
    return %arg0, %c0_i32, %c0_i32_0 : i32, i32, i32
  }
  func.func @transform_22(%arg0: i32) -> (i32, i32, i32) {
    %c0_i32 = arith.constant 0 : i32
    %c0_i32_0 = arith.constant 0 : i32
    %c0_i32_1 = arith.constant 0 : i32
    return %arg0, %c0_i32, %c0_i32_0 : i32, i32, i32
  }
  func.func @transform_23(%arg0: i32) -> (i32, i32, i32) {
    %c0_i32 = arith.constant 0 : i32
    %c0_i32_0 = arith.constant 0 : i32
    %c0_i32_1 = arith.constant 0 : i32
    return %arg0, %c0_i32, %c0_i32_0 : i32, i32, i32
  }
  func.func @transform_24(%arg0: i32) -> (i32, i32, i32) {
    %c0_i32 = arith.constant 0 : i32
    %c0_i32_0 = arith.constant 0 : i32
    %c0_i32_1 = arith.constant 0 : i32
    return %arg0, %c0_i32, %c0_i32_0 : i32, i32, i32
  }
  func.func @transform_25(%arg0: i32) -> (i32, i32, i32) {
    %c0_i32 = arith.constant 0 : i32
    %c0_i32_0 = arith.constant 0 : i32
    %c0_i32_1 = arith.constant 0 : i32
    return %arg0, %c0_i32, %c0_i32_0 : i32, i32, i32
  }
  func.func @transform_26(%arg0: i32) -> (i32, i32, i32) {
    %c0_i32 = arith.constant 0 : i32
    %c0_i32_0 = arith.constant 0 : i32
    %c0_i32_1 = arith.constant 0 : i32
    return %arg0, %c0_i32, %c0_i32_0 : i32, i32, i32
  }
  func.func @transform_27(%arg0: i32) -> (i32, i32, i32) {
    %c0_i32 = arith.constant 0 : i32
    %c0_i32_0 = arith.constant 0 : i32
    %c0_i32_1 = arith.constant 0 : i32
    return %arg0, %c0_i32, %c0_i32_0 : i32, i32, i32
  }
  func.func @transform_28(%arg0: i32) -> (i32, i32, i32) {
    %c0_i32 = arith.constant 0 : i32
    %c0_i32_0 = arith.constant 0 : i32
    %c0_i32_1 = arith.constant 0 : i32
    return %arg0, %c0_i32, %c0_i32_0 : i32, i32, i32
  }
  func.func @transform_29(%arg0: i32) -> (i32, i32) {
    %c0_i32 = arith.constant 0 : i32
    %c0_i32_0 = arith.constant 0 : i32
    %c0_i32_1 = arith.constant 0 : i32
    return %c0_i32, %c0_i32_0 : i32, i32
  }
}

</mosaic_0001>

<llo_original>
// kernel: traffic_transformer_forward.1
$region0: #{traffic_transformer_forward.1}
  #allocation0 [shape = 'u32[]', space=smem, size = 0x4, offset = 0x4, fixed_abs, tag = 'smem constant byte address 0x4 - core index']
  #allocation1 [shape = 'u32[144,128]{1,0:T(1,128)}', space=vmem, size = 0x12000, scoped, tag = 'internal scratch']
  #allocation2 [shape = 'f32[48,64]{1,0:T(8,128)}', space=vmem, size = 0x6000, scoped, tag = 'scratch operand']
  %s0 = inlined_call_operand.smem [shape: u32[30], index: -1, kind: input, shape index: {}]
  %s1 = sld [smem:[%s0]]
  %s2 = scalar_lea.smem %s0, 1
  %s3 = sld [smem:[%s2]]
  %s4 = scalar_lea.smem %s0, 2
  %s5 = sld [smem:[%s4]]
  %s6 = scalar_lea.smem %s0, 3
  %s7 = sld [smem:[%s6]]
  %s8 = scalar_lea.smem %s0, 4
  %s9 = sld [smem:[%s8]]
  %s10 = scalar_lea.smem %s0, 5
  %s11 = sld [smem:[%s10]]
  %s12 = scalar_lea.smem %s0, 6
  %s13 = sld [smem:[%s12]]
  %s14 = scalar_lea.smem %s0, 7
  %s15 = sld [smem:[%s14]]
  %s16 = scalar_lea.smem %s0, 8
  %s17 = sld [smem:[%s16]]
  %s18 = scalar_lea.smem %s0, 9
  %s19 = sld [smem:[%s18]]
  %s20 = scalar_lea.smem %s0, 10
  %s21 = sld [smem:[%s20]]
  %s22 = scalar_lea.smem %s0, 11
  %s23 = sld [smem:[%s22]]
  %s24 = scalar_lea.smem %s0, 12
  %s25 = sld [smem:[%s24]]
  %s26 = scalar_lea.smem %s0, 13
  %s27 = sld [smem:[%s26]]
  %s28 = scalar_lea.smem %s0, 14
  %s29 = sld [smem:[%s28]]
  %s30 = scalar_lea.smem %s0, 15
  %s31 = sld [smem:[%s30]]
  %s32 = scalar_lea.smem %s0, 16
  %s33 = sld [smem:[%s32]]
  %s34 = scalar_lea.smem %s0, 17
  %s35 = sld [smem:[%s34]]
  %s36 = scalar_lea.smem %s0, 18
  %s37 = sld [smem:[%s36]]
  %s38 = scalar_lea.smem %s0, 19
  %s39 = sld [smem:[%s38]]
  %s40 = scalar_lea.smem %s0, 20
  %s41 = sld [smem:[%s40]]
  %s42 = scalar_lea.smem %s0, 21
  %s43 = sld [smem:[%s42]]
  %s44 = scalar_lea.smem %s0, 22
  %s45 = sld [smem:[%s44]]
  %s46 = scalar_lea.smem %s0, 23
  %s47 = sld [smem:[%s46]]
  %s48 = scalar_lea.smem %s0, 24
  %s49 = sld [smem:[%s48]]
  %s50 = scalar_lea.smem %s0, 25
  %s51 = sld [smem:[%s50]]
  %s52 = scalar_lea.smem %s0, 26
  %s53 = sld [smem:[%s52]]
  %s54 = scalar_lea.smem %s0, 27
  %s55 = sld [smem:[%s54]]
  %s56 = scalar_lea.smem %s0, 28
  %s57 = sld [smem:[%s56]]
  %s58 = scalar_lea.smem %s0, 29
  %s59 = sld [smem:[%s58]]
  %s60 = sld [smem:[#allocation0]]
  $region157: #{traffic_transformer_forward.1} parent=0
    _
  %s62 = ssub.s32 1, %s60
  %s63 = scalar_select 0, %s62, %s60
  loop: start=0, step=1, limit=4
  $region2: #{traffic_transformer_forward.1} parent=0 // loop_pre_header
    _
  $region3: #{traffic_transformer_forward.1} parent=0 // loop_header
    %s65 = sphi 0, %s69
    %p66 = scmp.ge.s32.totalorder %s65, 4
    %s73 = sphi 0, %s73
    %s75 = sphi 0, %s73
    %s76 = sphi 0, %s75
    %s90 = sphi 0, %s76
    %s94 = sphi 0, %s94
    %s96 = sphi 0, %s94
    %s97 = sphi 0, %s96
    %s111 = sphi 0, %s97
    %s115 = sphi 0, %s115
    %s117 = sphi 0, %s115
    %s118 = sphi 0, %s117
    %s132 = sphi 0, %s118
    %s136 = sphi 0, %s136
    %s138 = sphi 0, %s136
    %s139 = sphi 0, %s138
    %s153 = sphi 0, %s139
    %s157 = sphi 0, %s157
    %s159 = sphi 0, %s157
    %s160 = sphi 0, %s159
    %s174 = sphi 0, %s160
    %s178 = sphi 0, %s178
    %s180 = sphi 0, %s178
    %s181 = sphi 0, %s180
    %s195 = sphi 0, %s181
    %s199 = sphi 0, %s199
    %s201 = sphi 0, %s199
    %s202 = sphi 0, %s201
    %s216 = sphi 0, %s202
    %s220 = sphi 0, %s220
    %s222 = sphi 0, %s220
    %s223 = sphi 0, %s222
    %s237 = sphi 0, %s223
    %s241 = sphi 0, %s241
    %s243 = sphi 0, %s241
    %s244 = sphi 0, %s243
    %s258 = sphi 0, %s244
    %s262 = sphi 0, %s262
    %s264 = sphi 0, %s262
    %s265 = sphi 0, %s264
    %s279 = sphi 0, %s265
    %s283 = sphi 0, %s283
    %s285 = sphi 0, %s283
    %s286 = sphi 0, %s285
    %s300 = sphi 0, %s286
    %s304 = sphi 0, %s304
    %s306 = sphi 0, %s304
    %s307 = sphi 0, %s306
    %s321 = sphi 0, %s307
    %s325 = sphi 0, %s325
    %s327 = sphi 0, %s325
    %s328 = sphi 0, %s327
    %s342 = sphi 0, %s328
    %s346 = sphi 0, %s346
    %s348 = sphi 0, %s346
    %s349 = sphi 0, %s348
    %s363 = sphi 0, %s349
    %s367 = sphi 0, %s367
    %s369 = sphi 0, %s367
    %s370 = sphi 0, %s369
    %s384 = sphi 0, %s370
    %s388 = sphi 0, %s388
    %s390 = sphi 0, %s388
    %s391 = sphi 0, %s390
    %s405 = sphi 0, %s391
    %s409 = sphi 0, %s409
    %s411 = sphi 0, %s409
    %s412 = sphi 0, %s411
    %s426 = sphi 0, %s412
    %s432 = sphi 0, %s434
    %s435 = sphi 0, %s432
    %s436 = sphi 0, %s435
    %s452 = sphi 0, %s436
    %s458 = sphi 0, %s460
    %s461 = sphi 0, %s458
    %s462 = sphi 0, %s461
    %s478 = sphi 0, %s462
    %s484 = sphi 0, %s486
    %s487 = sphi 0, %s484
    %s488 = sphi 0, %s487
    %s504 = sphi 0, %s488
    %s510 = sphi 0, %s512
    %s513 = sphi 0, %s510
    %s514 = sphi 0, %s513
    %s530 = sphi 0, %s514
    %s536 = sphi 0, %s538
    %s539 = sphi 0, %s536
    %s540 = sphi 0, %s539
    %s556 = sphi 0, %s540
    %s562 = sphi 0, %s564
    %s565 = sphi 0, %s562
    %s566 = sphi 0, %s565
    %s582 = sphi 0, %s566
    %s588 = sphi 0, %s590
    %s591 = sphi 0, %s588
    %s592 = sphi 0, %s591
    %s608 = sphi 0, %s592
    %s614 = sphi 0, %s616
    %s617 = sphi 0, %s614
    %s618 = sphi 0, %s617
    %s634 = sphi 0, %s618
    %s640 = sphi 0, %s642
    %s643 = sphi 0, %s640
    %s644 = sphi 0, %s643
    %s660 = sphi 0, %s644
    %s666 = sphi 0, %s668
    %s669 = sphi 0, %s666
    %s670 = sphi 0, %s669
    %s686 = sphi 0, %s670
    %s692 = sphi 0, %s694
    %s695 = sphi 0, %s692
    %s696 = sphi 0, %s695
    %s712 = sphi 0, %s696
    %s718 = sphi 0, %s720
    %s721 = sphi 0, %s718
    %s722 = sphi 0, %s721
    %s738 = sphi 0, %s722
    %s742 = sphi 0, %s742
    %s744 = sphi 0, %s742
    %s745 = sphi 0, %s744
    %s759 = sphi 0, %s745
  $region4: #{traffic_transformer_forward.1} parent=0 // loop_header_branch
    %68 = sbr.rel (%p66) target = $region8
  $region5: #{traffic_transformer_forward.1} parent=0 // loop_body
    %s70 = ssub.s32 %s65, 1
    %s71 = ssub.s32 %s65, 2
    %s72 = sadd.s32 %s65, 1
    %s74 = sadd.s32 %s73, 1
    %p77 = scmp.eq.s32.totalorder %s65, 1
    %p78 = scmp.ne.s32.totalorder %s73, %s75
    %p79 = scmp.eq.s32.totalorder %s65, 0
    %p80 = por %p78, %p79
    %p81 = scmp.ne.s32.totalorder %s73, %s75
    %p82 = scmp.eq.s32.totalorder %s70, 1
    %p83 = por %p81, %p82
    %p84 = scmp.ne.s32.totalorder %s75, %s76
    %p85 = scmp.eq.s32.totalorder %s70, 0
    %p86 = por %p84, %p85
    %p87 = scmp.ne.s32.totalorder %s75, %s76
    %p88 = scmp.eq.s32.totalorder %s71, 1
    %p89 = por %p87, %p88
    %p91 = scmp.ne.s32.totalorder %s76, %s90
    %p92 = scmp.eq.s32.totalorder %s71, 0
    %p93 = por %p91, %p92
    %s95 = sadd.s32 %s94, 1
    %p98 = scmp.eq.s32.totalorder %s65, 1
    %p99 = scmp.ne.s32.totalorder %s94, %s96
    %p100 = scmp.eq.s32.totalorder %s65, 0
    %p101 = por %p99, %p100
    %p102 = scmp.ne.s32.totalorder %s94, %s96
    %p103 = scmp.eq.s32.totalorder %s70, 1
    %p104 = por %p102, %p103
    %p105 = scmp.ne.s32.totalorder %s96, %s97
    %p106 = scmp.eq.s32.totalorder %s70, 0
    %p107 = por %p105, %p106
    %p108 = scmp.ne.s32.totalorder %s96, %s97
    %p109 = scmp.eq.s32.totalorder %s71, 1
    %p110 = por %p108, %p109
    %p112 = scmp.ne.s32.totalorder %s97, %s111
    %p113 = scmp.eq.s32.totalorder %s71, 0
    %p114 = por %p112, %p113
    %s116 = sadd.s32 %s115, 1
    %p119 = scmp.eq.s32.totalorder %s65, 1
    %p120 = scmp.ne.s32.totalorder %s115, %s117
    %p121 = scmp.eq.s32.totalorder %s65, 0
    %p122 = por %p120, %p121
    %p123 = scmp.ne.s32.totalorder %s115, %s117
    %p124 = scmp.eq.s32.totalorder %s70, 1
    %p125 = por %p123, %p124
    %p126 = scmp.ne.s32.totalorder %s117, %s118
    %p127 = scmp.eq.s32.totalorder %s70, 0
    %p128 = por %p126, %p127
    %p129 = scmp.ne.s32.totalorder %s117, %s118
    %p130 = scmp.eq.s32.totalorder %s71, 1
    %p131 = por %p129, %p130
    %p133 = scmp.ne.s32.totalorder %s118, %s132
    %p134 = scmp.eq.s32.totalorder %s71, 0
    %p135 = por %p133, %p134
    %s137 = sadd.s32 %s136, 1
    %p140 = scmp.eq.s32.totalorder %s65, 1
    %p141 = scmp.ne.s32.totalorder %s136, %s138
    %p142 = scmp.eq.s32.totalorder %s65, 0
    %p143 = por %p141, %p142
    %p144 = scmp.ne.s32.totalorder %s136, %s138
    %p145 = scmp.eq.s32.totalorder %s70, 1
    %p146 = por %p144, %p145
    %p147 = scmp.ne.s32.totalorder %s138, %s139
    %p148 = scmp.eq.s32.totalorder %s70, 0
    %p149 = por %p147, %p148
    %p150 = scmp.ne.s32.totalorder %s138, %s139
    %p151 = scmp.eq.s32.totalorder %s71, 1
    %p152 = por %p150, %p151
    %p154 = scmp.ne.s32.totalorder %s139, %s153
    %p155 = scmp.eq.s32.totalorder %s71, 0
    %p156 = por %p154, %p155
    %s158 = sadd.s32 %s157, 1
    %p161 = scmp.eq.s32.totalorder %s65, 1
    %p162 = scmp.ne.s32.totalorder %s157, %s159
    %p163 = scmp.eq.s32.totalorder %s65, 0
    %p164 = por %p162, %p163
    %p165 = scmp.ne.s32.totalorder %s157, %s159
    %p166 = scmp.eq.s32.totalorder %s70, 1
    %p167 = por %p165, %p166
    %p168 = scmp.ne.s32.totalorder %s159, %s160
    %p169 = scmp.eq.s32.totalorder %s70, 0
    %p170 = por %p168, %p169
    %p171 = scmp.ne.s32.totalorder %s159, %s160
    %p172 = scmp.eq.s32.totalorder %s71, 1
    %p173 = por %p171, %p172
    %p175 = scmp.ne.s32.totalorder %s160, %s174
    %p176 = scmp.eq.s32.totalorder %s71, 0
    %p177 = por %p175, %p176
    %s179 = sadd.s32 %s178, 1
    %p182 = scmp.eq.s32.totalorder %s65, 1
    %p183 = scmp.ne.s32.totalorder %s178, %s180
    %p184 = scmp.eq.s32.totalorder %s65, 0
    %p185 = por %p183, %p184
    %p186 = scmp.ne.s32.totalorder %s178, %s180
    %p187 = scmp.eq.s32.totalorder %s70, 1
    %p188 = por %p186, %p187
    %p189 = scmp.ne.s32.totalorder %s180, %s181
    %p190 = scmp.eq.s32.totalorder %s70, 0
    %p191 = por %p189, %p190
    %p192 = scmp.ne.s32.totalorder %s180, %s181
    %p193 = scmp.eq.s32.totalorder %s71, 1
    %p194 = por %p192, %p193
    %p196 = scmp.ne.s32.totalorder %s181, %s195
    %p197 = scmp.eq.s32.totalorder %s71, 0
    %p198 = por %p196, %p197
    %s200 = sadd.s32 %s199, 1
    %p203 = scmp.eq.s32.totalorder %s65, 1
    %p204 = scmp.ne.s32.totalorder %s199, %s201
    %p205 = scmp.eq.s32.totalorder %s65, 0
    %p206 = por %p204, %p205
    %p207 = scmp.ne.s32.totalorder %s199, %s201
    %p208 = scmp.eq.s32.totalorder %s70, 1
    %p209 = por %p207, %p208
    %p210 = scmp.ne.s32.totalorder %s201, %s202
    %p211 = scmp.eq.s32.totalorder %s70, 0
    %p212 = por %p210, %p211
    %p213 = scmp.ne.s32.totalorder %s201, %s202
    %p214 = scmp.eq.s32.totalorder %s71, 1
    %p215 = por %p213, %p214
    %p217 = scmp.ne.s32.totalorder %s202, %s216
    %p218 = scmp.eq.s32.totalorder %s71, 0
    %p219 = por %p217, %p218
    %s221 = sadd.s32 %s220, 1
    %p224 = scmp.eq.s32.totalorder %s65, 1
    %p225 = scmp.ne.s32.totalorder %s220, %s222
    %p226 = scmp.eq.s32.totalorder %s65, 0
    %p227 = por %p225, %p226
    %p228 = scmp.ne.s32.totalorder %s220, %s222
    %p229 = scmp.eq.s32.totalorder %s70, 1
    %p230 = por %p228, %p229
    %p231 = scmp.ne.s32.totalorder %s222, %s223
    %p232 = scmp.eq.s32.totalorder %s70, 0
    %p233 = por %p231, %p232
    %p234 = scmp.ne.s32.totalorder %s222, %s223
    %p235 = scmp.eq.s32.totalorder %s71, 1
    %p236 = por %p234, %p235
    %p238 = scmp.ne.s32.totalorder %s223, %s237
    %p239 = scmp.eq.s32.totalorder %s71, 0
    %p240 = por %p238, %p239
    %s242 = sadd.s32 %s241, 1
    %p245 = scmp.eq.s32.totalorder %s65, 1
    %p246 = scmp.ne.s32.totalorder %s241, %s243
    %p247 = scmp.eq.s32.totalorder %s65, 0
    %p248 = por %p246, %p247
    %p249 = scmp.ne.s32.totalorder %s241, %s243
    %p250 = scmp.eq.s32.totalorder %s70, 1
    %p251 = por %p249, %p250
    %p252 = scmp.ne.s32.totalorder %s243, %s244
    %p253 = scmp.eq.s32.totalorder %s70, 0
    %p254 = por %p252, %p253
    %p255 = scmp.ne.s32.totalorder %s243, %s244
    %p256 = scmp.eq.s32.totalorder %s71, 1
    %p257 = por %p255, %p256
    %p259 = scmp.ne.s32.totalorder %s244, %s258
    %p260 = scmp.eq.s32.totalorder %s71, 0
    %p261 = por %p259, %p260
    %s263 = sadd.s32 %s262, 1
    %p266 = scmp.eq.s32.totalorder %s65, 1
    %p267 = scmp.ne.s32.totalorder %s262, %s264
    %p268 = scmp.eq.s32.totalorder %s65, 0
    %p269 = por %p267, %p268
    %p270 = scmp.ne.s32.totalorder %s262, %s264
    %p271 = scmp.eq.s32.totalorder %s70, 1
    %p272 = por %p270, %p271
    %p273 = scmp.ne.s32.totalorder %s264, %s265
    %p274 = scmp.eq.s32.totalorder %s70, 0
    %p275 = por %p273, %p274
    %p276 = scmp.ne.s32.totalorder %s264, %s265
    %p277 = scmp.eq.s32.totalorder %s71, 1
    %p278 = por %p276, %p277
    %p280 = scmp.ne.s32.totalorder %s265, %s279
    %p281 = scmp.eq.s32.totalorder %s71, 0
    %p282 = por %p280, %p281
    %s284 = sadd.s32 %s283, 1
    %p287 = scmp.eq.s32.totalorder %s65, 1
    %p288 = scmp.ne.s32.totalorder %s283, %s285
    %p289 = scmp.eq.s32.totalorder %s65, 0
    %p290 = por %p288, %p289
    %p291 = scmp.ne.s32.totalorder %s283, %s285
    %p292 = scmp.eq.s32.totalorder %s70, 1
    %p293 = por %p291, %p292
    %p294 = scmp.ne.s32.totalorder %s285, %s286
    %p295 = scmp.eq.s32.totalorder %s70, 0
    %p296 = por %p294, %p295
    %p297 = scmp.ne.s32.totalorder %s285, %s286
    %p298 = scmp.eq.s32.totalorder %s71, 1
    %p299 = por %p297, %p298
    %p301 = scmp.ne.s32.totalorder %s286, %s300
    %p302 = scmp.eq.s32.totalorder %s71, 0
    %p303 = por %p301, %p302
    %s305 = sadd.s32 %s304, 1
    %p308 = scmp.eq.s32.totalorder %s65, 1
    %p309 = scmp.ne.s32.totalorder %s304, %s306
    %p310 = scmp.eq.s32.totalorder %s65, 0
    %p311 = por %p309, %p310
    %p312 = scmp.ne.s32.totalorder %s304, %s306
    %p313 = scmp.eq.s32.totalorder %s70, 1
    %p314 = por %p312, %p313
    %p315 = scmp.ne.s32.totalorder %s306, %s307
    %p316 = scmp.eq.s32.totalorder %s70, 0
    %p317 = por %p315, %p316
    %p318 = scmp.ne.s32.totalorder %s306, %s307
    %p319 = scmp.eq.s32.totalorder %s71, 1
    %p320 = por %p318, %p319
    %p322 = scmp.ne.s32.totalorder %s307, %s321
    %p323 = scmp.eq.s32.totalorder %s71, 0
    %p324 = por %p322, %p323
    %s326 = sadd.s32 %s325, 1
    %p329 = scmp.eq.s32.totalorder %s65, 1
    %p330 = scmp.ne.s32.totalorder %s325, %s327
    %p331 = scmp.eq.s32.totalorder %s65, 0
    %p332 = por %p330, %p331
    %p333 = scmp.ne.s32.totalorder %s325, %s327
    %p334 = scmp.eq.s32.totalorder %s70, 1
    %p335 = por %p333, %p334
    %p336 = scmp.ne.s32.totalorder %s327, %s328
    %p337 = scmp.eq.s32.totalorder %s70, 0
    %p338 = por %p336, %p337
    %p339 = scmp.ne.s32.totalorder %s327, %s328
    %p340 = scmp.eq.s32.totalorder %s71, 1
    %p341 = por %p339, %p340
    %p343 = scmp.ne.s32.totalorder %s328, %s342
    %p344 = scmp.eq.s32.totalorder %s71, 0
    %p345 = por %p343, %p344
    %s347 = sadd.s32 %s346, 1
    %p350 = scmp.eq.s32.totalorder %s65, 1
    %p351 = scmp.ne.s32.totalorder %s346, %s348
    %p352 = scmp.eq.s32.totalorder %s65, 0
    %p353 = por %p351, %p352
    %p354 = scmp.ne.s32.totalorder %s346, %s348
    %p355 = scmp.eq.s32.totalorder %s70, 1
    %p356 = por %p354, %p355
    %p357 = scmp.ne.s32.totalorder %s348, %s349
    %p358 = scmp.eq.s32.totalorder %s70, 0
    %p359 = por %p357, %p358
    %p360 = scmp.ne.s32.totalorder %s348, %s349
    %p361 = scmp.eq.s32.totalorder %s71, 1
    %p362 = por %p360, %p361
    %p364 = scmp.ne.s32.totalorder %s349, %s363
    %p365 = scmp.eq.s32.totalorder %s71, 0
    %p366 = por %p364, %p365
    %s368 = sadd.s32 %s367, 1
    %p371 = scmp.eq.s32.totalorder %s65, 1
    %p372 = scmp.ne.s32.totalorder %s367, %s369
    %p373 = scmp.eq.s32.totalorder %s65, 0
    %p374 = por %p372, %p373
    %p375 = scmp.ne.s32.totalorder %s367, %s369
    %p376 = scmp.eq.s32.totalorder %s70, 1
    %p377 = por %p375, %p376
    %p378 = scmp.ne.s32.totalorder %s369, %s370
    %p379 = scmp.eq.s32.totalorder %s70, 0
    %p380 = por %p378, %p379
    %p381 = scmp.ne.s32.totalorder %s369, %s370
    %p382 = scmp.eq.s32.totalorder %s71, 1
    %p383 = por %p381, %p382
    %p385 = scmp.ne.s32.totalorder %s370, %s384
    %p386 = scmp.eq.s32.totalorder %s71, 0
    %p387 = por %p385, %p386
    %s389 = sadd.s32 %s388, 1
    %p392 = scmp.eq.s32.totalorder %s65, 1
    %p393 = scmp.ne.s32.totalorder %s388, %s390
    %p394 = scmp.eq.s32.totalorder %s65, 0
    %p395 = por %p393, %p394
    %p396 = scmp.ne.s32.totalorder %s388, %s390
    %p397 = scmp.eq.s32.totalorder %s70, 1
    %p398 = por %p396, %p397
    %p399 = scmp.ne.s32.totalorder %s390, %s391
    %p400 = scmp.eq.s32.totalorder %s70, 0
    %p401 = por %p399, %p400
    %p402 = scmp.ne.s32.totalorder %s390, %s391
    %p403 = scmp.eq.s32.totalorder %s71, 1
    %p404 = por %p402, %p403
    %p406 = scmp.ne.s32.totalorder %s391, %s405
    %p407 = scmp.eq.s32.totalorder %s71, 0
    %p408 = por %p406, %p407
    %s410 = sadd.s32 %s409, 1
    %p413 = scmp.eq.s32.totalorder %s65, 1
    %p414 = scmp.ne.s32.totalorder %s409, %s411
    %p415 = scmp.eq.s32.totalorder %s65, 0
    %p416 = por %p414, %p415
    %p417 = scmp.ne.s32.totalorder %s409, %s411
    %p418 = scmp.eq.s32.totalorder %s70, 1
    %p419 = por %p417, %p418
    %p420 = scmp.ne.s32.totalorder %s411, %s412
    %p421 = scmp.eq.s32.totalorder %s70, 0
    %p422 = por %p420, %p421
    %p423 = scmp.ne.s32.totalorder %s411, %s412
    %p424 = scmp.eq.s32.totalorder %s71, 1
    %p425 = por %p423, %p424
    %p427 = scmp.ne.s32.totalorder %s412, %s426
    %p428 = scmp.eq.s32.totalorder %s71, 0
    %p429 = por %p427, %p428
    %s430 = ssub.s32 %s65, %s72
    %p431 = scmp.eq.s32.totalorder %s430, 0
    %s433 = sadd.s32 %s432, 1
    %s434 = scalar_select %p431, %s432, %s433
    %p437 = pneg %p431
    %p438 = scmp.eq.s32.totalorder %s65, 1
    %p439 = por %p437, %p438
    %p440 = scmp.ne.s32.totalorder %s432, %s435
    %p441 = scmp.eq.s32.totalorder %s65, 0
    %p442 = por %p440, %p441
    %p443 = scmp.ne.s32.totalorder %s432, %s435
    %p444 = scmp.eq.s32.totalorder %s70, 1
    %p445 = por %p443, %p444
    %p446 = scmp.ne.s32.totalorder %s435, %s436
    %p447 = scmp.eq.s32.totalorder %s70, 0
    %p448 = por %p446, %p447
    %p449 = scmp.ne.s32.totalorder %s435, %s436
    %p450 = scmp.eq.s32.totalorder %s71, 1
    %p451 = por %p449, %p450
    %p453 = scmp.ne.s32.totalorder %s436, %s452
    %p454 = scmp.eq.s32.totalorder %s71, 0
    %p455 = por %p453, %p454
    %s456 = ssub.s32 %s65, %s72
    %p457 = scmp.eq.s32.totalorder %s456, 0
    %s459 = sadd.s32 %s458, 1
    %s460 = scalar_select %p457, %s458, %s459
    %p463 = pneg %p457
    %p464 = scmp.eq.s32.totalorder %s65, 1
    %p465 = por %p463, %p464
    %p466 = scmp.ne.s32.totalorder %s458, %s461
    %p467 = scmp.eq.s32.totalorder %s65, 0
    %p468 = por %p466, %p467
    %p469 = scmp.ne.s32.totalorder %s458, %s461
    %p470 = scmp.eq.s32.totalorder %s70, 1
    %p471 = por %p469, %p470
    %p472 = scmp.ne.s32.totalorder %s461, %s462
    %p473 = scmp.eq.s32.totalorder %s70, 0
    %p474 = por %p472, %p473
    %p475 = scmp.ne.s32.totalorder %s461, %s462
    %p476 = scmp.eq.s32.totalorder %s71, 1
    %p477 = por %p475, %p476
    %p479 = scmp.ne.s32.totalorder %s462, %s478
    %p480 = scmp.eq.s32.totalorder %s71, 0
    %p481 = por %p479, %p480
    %s482 = ssub.s32 %s65, %s72
    %p483 = scmp.eq.s32.totalorder %s482, 0
    %s485 = sadd.s32 %s484, 1
    %s486 = scalar_select %p483, %s484, %s485
    %p489 = pneg %p483
    %p490 = scmp.eq.s32.totalorder %s65, 1
    %p491 = por %p489, %p490
    %p492 = scmp.ne.s32.totalorder %s484, %s487
    %p493 = scmp.eq.s32.totalorder %s65, 0
    %p494 = por %p492, %p493
    %p495 = scmp.ne.s32.totalorder %s484, %s487
    %p496 = scmp.eq.s32.totalorder %s70, 1
    %p497 = por %p495, %p496
    %p498 = scmp.ne.s32.totalorder %s487, %s488
    %p499 = scmp.eq.s32.totalorder %s70, 0
    %p500 = por %p498, %p499
    %p501 = scmp.ne.s32.totalorder %s487, %s488
    %p502 = scmp.eq.s32.totalorder %s71, 1
    %p503 = por %p501, %p502
    %p505 = scmp.ne.s32.totalorder %s488, %s504
    %p506 = scmp.eq.s32.totalorder %s71, 0
    %p507 = por %p505, %p506
    %s508 = ssub.s32 %s65, %s72
    %p509 = scmp.eq.s32.totalorder %s508, 0
    %s511 = sadd.s32 %s510, 1
    %s512 = scalar_select %p509, %s510, %s511
    %p515 = pneg %p509
    %p516 = scmp.eq.s32.totalorder %s65, 1
    %p517 = por %p515, %p516
    %p518 = scmp.ne.s32.totalorder %s510, %s513
    %p519 = scmp.eq.s32.totalorder %s65, 0
    %p520 = por %p518, %p519
    %p521 = scmp.ne.s32.totalorder %s510, %s513
    %p522 = scmp.eq.s32.totalorder %s70, 1
    %p523 = por %p521, %p522
    %p524 = scmp.ne.s32.totalorder %s513, %s514
    %p525 = scmp.eq.s32.totalorder %s70, 0
    %p526 = por %p524, %p525
    %p527 = scmp.ne.s32.totalorder %s513, %s514
    %p528 = scmp.eq.s32.totalorder %s71, 1
    %p529 = por %p527, %p528
    %p531 = scmp.ne.s32.totalorder %s514, %s530
    %p532 = scmp.eq.s32.totalorder %s71, 0
    %p533 = por %p531, %p532
    %s534 = ssub.s32 %s65, %s72
    %p535 = scmp.eq.s32.totalorder %s534, 0
    %s537 = sadd.s32 %s536, 1
    %s538 = scalar_select %p535, %s536, %s537
    %p541 = pneg %p535
    %p542 = scmp.eq.s32.totalorder %s65, 1
    %p543 = por %p541, %p542
    %p544 = scmp.ne.s32.totalorder %s536, %s539
    %p545 = scmp.eq.s32.totalorder %s65, 0
    %p546 = por %p544, %p545
    %p547 = scmp.ne.s32.totalorder %s536, %s539
    %p548 = scmp.eq.s32.totalorder %s70, 1
    %p549 = por %p547, %p548
    %p550 = scmp.ne.s32.totalorder %s539, %s540
    %p551 = scmp.eq.s32.totalorder %s70, 0
    %p552 = por %p550, %p551
    %p553 = scmp.ne.s32.totalorder %s539, %s540
    %p554 = scmp.eq.s32.totalorder %s71, 1
    %p555 = por %p553, %p554
    %p557 = scmp.ne.s32.totalorder %s540, %s556
    %p558 = scmp.eq.s32.totalorder %s71, 0
    %p559 = por %p557, %p558
    %s560 = ssub.s32 %s65, %s72
    %p561 = scmp.eq.s32.totalorder %s560, 0
    %s563 = sadd.s32 %s562, 1
    %s564 = scalar_select %p561, %s562, %s563
    %p567 = pneg %p561
    %p568 = scmp.eq.s32.totalorder %s65, 1
    %p569 = por %p567, %p568
    %p570 = scmp.ne.s32.totalorder %s562, %s565
    %p571 = scmp.eq.s32.totalorder %s65, 0
    %p572 = por %p570, %p571
    %p573 = scmp.ne.s32.totalorder %s562, %s565
    %p574 = scmp.eq.s32.totalorder %s70, 1
    %p575 = por %p573, %p574
    %p576 = scmp.ne.s32.totalorder %s565, %s566
    %p577 = scmp.eq.s32.totalorder %s70, 0
    %p578 = por %p576, %p577
    %p579 = scmp.ne.s32.totalorder %s565, %s566
    %p580 = scmp.eq.s32.totalorder %s71, 1
    %p581 = por %p579, %p580
    %p583 = scmp.ne.s32.totalorder %s566, %s582
    %p584 = scmp.eq.s32.totalorder %s71, 0
    %p585 = por %p583, %p584
    %s586 = ssub.s32 %s65, %s72
    %p587 = scmp.eq.s32.totalorder %s586, 0
    %s589 = sadd.s32 %s588, 1
    %s590 = scalar_select %p587, %s588, %s589
    %p593 = pneg %p587
    %p594 = scmp.eq.s32.totalorder %s65, 1
    %p595 = por %p593, %p594
    %p596 = scmp.ne.s32.totalorder %s588, %s591
    %p597 = scmp.eq.s32.totalorder %s65, 0
    %p598 = por %p596, %p597
    %p599 = scmp.ne.s32.totalorder %s588, %s591
    %p600 = scmp.eq.s32.totalorder %s70, 1
    %p601 = por %p599, %p600
    %p602 = scmp.ne.s32.totalorder %s591, %s592
    %p603 = scmp.eq.s32.totalorder %s70, 0
    %p604 = por %p602, %p603
    %p605 = scmp.ne.s32.totalorder %s591, %s592
    %p606 = scmp.eq.s32.totalorder %s71, 1
    %p607 = por %p605, %p606
    %p609 = scmp.ne.s32.totalorder %s592, %s608
    %p610 = scmp.eq.s32.totalorder %s71, 0
    %p611 = por %p609, %p610
    %s612 = ssub.s32 %s65, %s72
    %p613 = scmp.eq.s32.totalorder %s612, 0
    %s615 = sadd.s32 %s614, 1
    %s616 = scalar_select %p613, %s614, %s615
    %p619 = pneg %p613
    %p620 = scmp.eq.s32.totalorder %s65, 1
    %p621 = por %p619, %p620
    %p622 = scmp.ne.s32.totalorder %s614, %s617
    %p623 = scmp.eq.s32.totalorder %s65, 0
    %p624 = por %p622, %p623
    %p625 = scmp.ne.s32.totalorder %s614, %s617
    %p626 = scmp.eq.s32.totalorder %s70, 1
    %p627 = por %p625, %p626
    %p628 = scmp.ne.s32.totalorder %s617, %s618
    %p629 = scmp.eq.s32.totalorder %s70, 0
    %p630 = por %p628, %p629
    %p631 = scmp.ne.s32.totalorder %s617, %s618
    %p632 = scmp.eq.s32.totalorder %s71, 1
    %p633 = por %p631, %p632
    %p635 = scmp.ne.s32.totalorder %s618, %s634
    %p636 = scmp.eq.s32.totalorder %s71, 0
    %p637 = por %p635, %p636
    %s638 = ssub.s32 %s65, %s72
    %p639 = scmp.eq.s32.totalorder %s638, 0
    %s641 = sadd.s32 %s640, 1
    %s642 = scalar_select %p639, %s640, %s641
    %p645 = pneg %p639
    %p646 = scmp.eq.s32.totalorder %s65, 1
    %p647 = por %p645, %p646
    %p648 = scmp.ne.s32.totalorder %s640, %s643
    %p649 = scmp.eq.s32.totalorder %s65, 0
    %p650 = por %p648, %p649
    %p651 = scmp.ne.s32.totalorder %s640, %s643
    %p652 = scmp.eq.s32.totalorder %s70, 1
    %p653 = por %p651, %p652
    %p654 = scmp.ne.s32.totalorder %s643, %s644
    %p655 = scmp.eq.s32.totalorder %s70, 0
    %p656 = por %p654, %p655
    %p657 = scmp.ne.s32.totalorder %s643, %s644
    %p658 = scmp.eq.s32.totalorder %s71, 1
    %p659 = por %p657, %p658
    %p661 = scmp.ne.s32.totalorder %s644, %s660
    %p662 = scmp.eq.s32.totalorder %s71, 0
    %p663 = por %p661, %p662
    %s664 = ssub.s32 %s65, %s72
    %p665 = scmp.eq.s32.totalorder %s664, 0
    %s667 = sadd.s32 %s666, 1
    %s668 = scalar_select %p665, %s666, %s667
    %p671 = pneg %p665
    %p672 = scmp.eq.s32.totalorder %s65, 1
    %p673 = por %p671, %p672
    %p674 = scmp.ne.s32.totalorder %s666, %s669
    %p675 = scmp.eq.s32.totalorder %s65, 0
    %p676 = por %p674, %p675
    %p677 = scmp.ne.s32.totalorder %s666, %s669
    %p678 = scmp.eq.s32.totalorder %s70, 1
    %p679 = por %p677, %p678
    %p680 = scmp.ne.s32.totalorder %s669, %s670
    %p681 = scmp.eq.s32.totalorder %s70, 0
    %p682 = por %p680, %p681
    %p683 = scmp.ne.s32.totalorder %s669, %s670
    %p684 = scmp.eq.s32.totalorder %s71, 1
    %p685 = por %p683, %p684
    %p687 = scmp.ne.s32.totalorder %s670, %s686
    %p688 = scmp.eq.s32.totalorder %s71, 0
    %p689 = por %p687, %p688
    %s690 = ssub.s32 %s65, %s72
    %p691 = scmp.eq.s32.totalorder %s690, 0
    %s693 = sadd.s32 %s692, 1
    %s694 = scalar_select %p691, %s692, %s693
    %p697 = pneg %p691
    %p698 = scmp.eq.s32.totalorder %s65, 1
    %p699 = por %p697, %p698
    %p700 = scmp.ne.s32.totalorder %s692, %s695
    %p701 = scmp.eq.s32.totalorder %s65, 0
    %p702 = por %p700, %p701
    %p703 = scmp.ne.s32.totalorder %s692, %s695
    %p704 = scmp.eq.s32.totalorder %s70, 1
    %p705 = por %p703, %p704
    %p706 = scmp.ne.s32.totalorder %s695, %s696
    %p707 = scmp.eq.s32.totalorder %s70, 0
    %p708 = por %p706, %p707
    %p709 = scmp.ne.s32.totalorder %s695, %s696
    %p710 = scmp.eq.s32.totalorder %s71, 1
    %p711 = por %p709, %p710
    %p713 = scmp.ne.s32.totalorder %s696, %s712
    %p714 = scmp.eq.s32.totalorder %s71, 0
    %p715 = por %p713, %p714
    %s716 = ssub.s32 %s65, %s72
    %p717 = scmp.eq.s32.totalorder %s716, 0
    %s719 = sadd.s32 %s718, 1
    %s720 = scalar_select %p717, %s718, %s719
    %p723 = pneg %p717
    %p724 = scmp.eq.s32.totalorder %s65, 1
    %p725 = por %p723, %p724
    %p726 = scmp.ne.s32.totalorder %s718, %s721
    %p727 = scmp.eq.s32.totalorder %s65, 0
    %p728 = por %p726, %p727
    %p729 = scmp.ne.s32.totalorder %s718, %s721
    %p730 = scmp.eq.s32.totalorder %s70, 1
    %p731 = por %p729, %p730
    %p732 = scmp.ne.s32.totalorder %s721, %s722
    %p733 = scmp.eq.s32.totalorder %s70, 0
    %p734 = por %p732, %p733
    %p735 = scmp.ne.s32.totalorder %s721, %s722
    %p736 = scmp.eq.s32.totalorder %s71, 1
    %p737 = por %p735, %p736
    %p739 = scmp.ne.s32.totalorder %s722, %s738
    %p740 = scmp.eq.s32.totalorder %s71, 0
    %p741 = por %p739, %p740
    %s743 = sadd.s32 %s742, 1
    %p746 = scmp.eq.s32.totalorder %s65, 1
    %p747 = scmp.ne.s32.totalorder %s742, %s744
    %p748 = scmp.eq.s32.totalorder %s65, 0
    %p749 = por %p747, %p748
    %p750 = scmp.ne.s32.totalorder %s742, %s744
    %p751 = scmp.eq.s32.totalorder %s70, 1
    %p752 = por %p750, %p751
    %p753 = scmp.ne.s32.totalorder %s744, %s745
    %p754 = scmp.eq.s32.totalorder %s70, 0
    %p755 = por %p753, %p754
    %p756 = scmp.ne.s32.totalorder %s744, %s745
    %p757 = scmp.eq.s32.totalorder %s71, 1
    %p758 = por %p756, %p757
    %p760 = scmp.ne.s32.totalorder %s745, %s759
    %p761 = scmp.eq.s32.totalorder %s71, 0
    %p762 = por %p760, %p761
    %p763 = scmp.le.s32.totalorder 1, %s65
    %p764 = scmp.lt.s32.totalorder %s65, 3
    %p765 = pnand %p763, %p764
    %p766 = pneg %p765
    // Predicated region
    $region9: #{traffic_transformer_forward.1} parent=5 // pred_check
      _
    $region10: #{traffic_transformer_forward.1} parent=5 // pred_check_branch
      %768 = sbr.rel (%p765) target = $region12
    $region11: #{traffic_transformer_forward.1} parent=5 // pred_region
      %s769 = ssub.s32 %s65, 1
      // Predicated region
      $region13: #{traffic_transformer_forward.1} parent=11 // pred_check
        %p770 = pneg %p86
      $region14: #{traffic_transformer_forward.1} parent=11 // pred_check_branch
        %772 = sbr.rel (%p770) target = $region16
      $region15: #{traffic_transformer_forward.1} parent=11 // pred_region
        _
      $region16: #{traffic_transformer_forward.1} parent=11 // pred_fallthru
        _
      // Predicated region
      $region17: #{traffic_transformer_forward.1} parent=11 // pred_check
        %p773 = pneg %p107
      $region18: #{traffic_transformer_forward.1} parent=11 // pred_check_branch
        %775 = sbr.rel (%p773) target = $region20
      $region19: #{traffic_transformer_forward.1} parent=11 // pred_region
        _
      $region20: #{traffic_transformer_forward.1} parent=11 // pred_fallthru
        _
      // Predicated region
      $region21: #{traffic_transformer_forward.1} parent=11 // pred_check
        %p776 = pneg %p128
      $region22: #{traffic_transformer_forward.1} parent=11 // pred_check_branch
        %778 = sbr.rel (%p776) target = $region24
      $region23: #{traffic_transformer_forward.1} parent=11 // pred_region
        _
      $region24: #{traffic_transformer_forward.1} parent=11 // pred_fallthru
        _
      // Predicated region
      $region25: #{traffic_transformer_forward.1} parent=11 // pred_check
        %p779 = pneg %p149
      $region26: #{traffic_transformer_forward.1} parent=11 // pred_check_branch
        %781 = sbr.rel (%p779) target = $region28
      $region27: #{traffic_transformer_forward.1} parent=11 // pred_region
        _
      $region28: #{traffic_transformer_forward.1} parent=11 // pred_fallthru
        _
      // Predicated region
      $region29: #{traffic_transformer_forward.1} parent=11 // pred_check
        %p782 = pneg %p170
      $region30: #{traffic_transformer_forward.1} parent=11 // pred_check_branch
        %784 = sbr.rel (%p782) target = $region32
      $region31: #{traffic_transformer_forward.1} parent=11 // pred_region
        _
      $region32: #{traffic_transformer_forward.1} parent=11 // pred_fallthru
        _
      // Predicated region
      $region33: #{traffic_transformer_forward.1} parent=11 // pred_check
        %p785 = pneg %p191
      $region34: #{traffic_transformer_forward.1} parent=11 // pred_check_branch
        %787 = sbr.rel (%p785) target = $region36
      $region35: #{traffic_transformer_forward.1} parent=11 // pred_region
        _
      $region36: #{traffic_transformer_forward.1} parent=11 // pred_fallthru
        _
      // Predicated region
      $region37: #{traffic_transformer_forward.1} parent=11 // pred_check
        %p788 = pneg %p212
      $region38: #{traffic_transformer_forward.1} parent=11 // pred_check_branch
        %790 = sbr.rel (%p788) target = $region40
      $region39: #{traffic_transformer_forward.1} parent=11 // pred_region
        _
      $region40: #{traffic_transformer_forward.1} parent=11 // pred_fallthru
        _
      // Predicated region
      $region41: #{traffic_transformer_forward.1} parent=11 // pred_check
        %p791 = pneg %p233
      $region42: #{traffic_transformer_forward.1} parent=11 // pred_check_branch
        %793 = sbr.rel (%p791) target = $region44
      $region43: #{traffic_transformer_forward.1} parent=11 // pred_region
        _
      $region44: #{traffic_transformer_forward.1} parent=11 // pred_fallthru
        _
      // Predicated region
      $region45: #{traffic_transformer_forward.1} parent=11 // pred_check
        %p794 = pneg %p254
      $region46: #{traffic_transformer_forward.1} parent=11 // pred_check_branch
        %796 = sbr.rel (%p794) target = $region48
      $region47: #{traffic_transformer_forward.1} parent=11 // pred_region
        _
      $region48: #{traffic_transformer_forward.1} parent=11 // pred_fallthru
        _
      // Predicated region
      $region49: #{traffic_transformer_forward.1} parent=11 // pred_check
        %p797 = pneg %p275
      $region50: #{traffic_transformer_forward.1} parent=11 // pred_check_branch
        %799 = sbr.rel (%p797) target = $region52
      $region51: #{traffic_transformer_forward.1} parent=11 // pred_region
        _
      $region52: #{traffic_transformer_forward.1} parent=11 // pred_fallthru
        _
      // Predicated region
      $region53: #{traffic_transformer_forward.1} parent=11 // pred_check
        %p800 = pneg %p296
      $region54: #{traffic_transformer_forward.1} parent=11 // pred_check_branch
        %802 = sbr.rel (%p800) target = $region56
      $region55: #{traffic_transformer_forward.1} parent=11 // pred_region
        _
      $region56: #{traffic_transformer_forward.1} parent=11 // pred_fallthru
        _
      // Predicated region
      $region57: #{traffic_transformer_forward.1} parent=11 // pred_check
        %p803 = pneg %p317
      $region58: #{traffic_transformer_forward.1} parent=11 // pred_check_branch
        %805 = sbr.rel (%p803) target = $region60
      $region59: #{traffic_transformer_forward.1} parent=11 // pred_region
        _
      $region60: #{traffic_transformer_forward.1} parent=11 // pred_fallthru
        _
      // Predicated region
      $region61: #{traffic_transformer_forward.1} parent=11 // pred_check
        %p806 = pneg %p338
      $region62: #{traffic_transformer_forward.1} parent=11 // pred_check_branch
        %808 = sbr.rel (%p806) target = $region64
      $region63: #{traffic_transformer_forward.1} parent=11 // pred_region
        _
      $region64: #{traffic_transformer_forward.1} parent=11 // pred_fallthru
        _
      // Predicated region
      $region65: #{traffic_transformer_forward.1} parent=11 // pred_check
        %p809 = pneg %p359
      $region66: #{traffic_transformer_forward.1} parent=11 // pred_check_branch
        %811 = sbr.rel (%p809) target = $region68
      $region67: #{traffic_transformer_forward.1} parent=11 // pred_region
        _
      $region68: #{traffic_transformer_forward.1} parent=11 // pred_fallthru
        _
      // Predicated region
      $region69: #{traffic_transformer_forward.1} parent=11 // pred_check
        %p812 = pneg %p380
      $region70: #{traffic_transformer_forward.1} parent=11 // pred_check_branch
        %814 = sbr.rel (%p812) target = $region72
      $region71: #{traffic_transformer_forward.1} parent=11 // pred_region
        _
      $region72: #{traffic_transformer_forward.1} parent=11 // pred_fallthru
        _
      // Predicated region
      $region73: #{traffic_transformer_forward.1} parent=11 // pred_check
        %p815 = pneg %p401
      $region74: #{traffic_transformer_forward.1} parent=11 // pred_check_branch
        %817 = sbr.rel (%p815) target = $region76
      $region75: #{traffic_transformer_forward.1} parent=11 // pred_region
        _
      $region76: #{traffic_transformer_forward.1} parent=11 // pred_fallthru
        _
      // Predicated region
      $region77: #{traffic_transformer_forward.1} parent=11 // pred_check
        %p818 = pneg %p422
      $region78: #{traffic_transformer_forward.1} parent=11 // pred_check_branch
        %820 = sbr.rel (%p818) target = $region80
      $region79: #{traffic_transformer_forward.1} parent=11 // pred_region
        _
      $region80: #{traffic_transformer_forward.1} parent=11 // pred_fallthru
        _
    $region12: #{traffic_transformer_forward.1} parent=5 // pred_fallthru
      _
    %p821 = scmp.lt.s32.totalorder %s65, 2
    // Predicated region
    $region81: #{traffic_transformer_forward.1} parent=5 // pred_check
      %p822 = pneg %p821
    $region82: #{traffic_transformer_forward.1} parent=5 // pred_check_branch
      %824 = sbr.rel (%p822) target = $region84
    $region83: #{traffic_transformer_forward.1} parent=5 // pred_region
      // Predicated region
      $region85: #{traffic_transformer_forward.1} parent=83 // pred_check
        %p825 = pneg %p442
      $region86: #{traffic_transformer_forward.1} parent=83 // pred_check_branch
        %827 = sbr.rel (%p825) target = $region88
      $region87: #{traffic_transformer_forward.1} parent=83 // pred_region
        %p828 = scmp.lt.s32.totalorder %s65, 1
        %s829 = scalar_select %p828, %s65, 1
        %s830 = scalar_lea.vmem %s35, %s829
      $region88: #{traffic_transformer_forward.1} parent=83 // pred_fallthru
        _
      // Predicated region
      $region89: #{traffic_transformer_forward.1} parent=83 // pred_check
        %p831 = pneg %p468
      $region90: #{traffic_transformer_forward.1} parent=83 // pred_check_branch
        %833 = sbr.rel (%p831) target = $region92
      $region91: #{traffic_transformer_forward.1} parent=83 // pred_region
        %p834 = scmp.lt.s32.totalorder %s65, 1
        %s835 = scalar_select %p834, %s65, 1
        %s836 = scalar_lea.vmem %s37, %s835
      $region92: #{traffic_transformer_forward.1} parent=83 // pred_fallthru
        _
      // Predicated region
      $region93: #{traffic_transformer_forward.1} parent=83 // pred_check
        %p837 = pneg %p494
      $region94: #{traffic_transformer_forward.1} parent=83 // pred_check_branch
        %839 = sbr.rel (%p837) target = $region96
      $region95: #{traffic_transformer_forward.1} parent=83 // pred_region
        %p840 = scmp.lt.s32.totalorder %s65, 1
        %s841 = scalar_select %p840, %s65, 1
        %s842 = smul.addr %s841, 96
        %s843 = smul.addr %s842, 4
        %s844 = scalar_lea.vmem %s39, %s843
      $region96: #{traffic_transformer_forward.1} parent=83 // pred_fallthru
        _
      // Predicated region
      $region97: #{traffic_transformer_forward.1} parent=83 // pred_check
        %p845 = pneg %p520
      $region98: #{traffic_transformer_forward.1} parent=83 // pred_check_branch
        %847 = sbr.rel (%p845) target = $region100
      $region99: #{traffic_transformer_forward.1} parent=83 // pred_region
        %p848 = scmp.lt.s32.totalorder %s65, 1
        %s849 = scalar_select %p848, %s65, 1
        %s850 = smul.addr %s849, 12
        %s851 = scalar_lea.vmem %s41, %s850
      $region100: #{traffic_transformer_forward.1} parent=83 // pred_fallthru
        _
      // Predicated region
      $region101: #{traffic_transformer_forward.1} parent=83 // pred_check
        %p852 = pneg %p546
      $region102: #{traffic_transformer_forward.1} parent=83 // pred_check_branch
        %854 = sbr.rel (%p852) target = $region104
      $region103: #{traffic_transformer_forward.1} parent=83 // pred_region
        %p855 = scmp.lt.s32.totalorder %s65, 1
        %s856 = scalar_select %p855, %s65, 1
        %s857 = smul.addr %s856, 64
        %s858 = smul.addr %s857, 4
        %s859 = scalar_lea.vmem %s43, %s858
      $region104: #{traffic_transformer_forward.1} parent=83 // pred_fallthru
        _
      // Predicated region
      $region105: #{traffic_transformer_forward.1} parent=83 // pred_check
        %p860 = pneg %p572
      $region106: #{traffic_transformer_forward.1} parent=83 // pred_check_branch
        %862 = sbr.rel (%p860) target = $region108
      $region107: #{traffic_transformer_forward.1} parent=83 // pred_region
        %p863 = scmp.lt.s32.totalorder %s65, 1
        %s864 = scalar_select %p863, %s65, 1
        %s865 = scalar_lea.vmem %s45, %s864
      $region108: #{traffic_transformer_forward.1} parent=83 // pred_fallthru
        _
      // Predicated region
      $region109: #{traffic_transformer_forward.1} parent=83 // pred_check
        %p866 = pneg %p598
      $region110: #{traffic_transformer_forward.1} parent=83 // pred_check_branch
        %868 = sbr.rel (%p866) target = $region112
      $region111: #{traffic_transformer_forward.1} parent=83 // pred_region
        %p869 = scmp.lt.s32.totalorder %s65, 1
        %s870 = scalar_select %p869, %s65, 1
        %s871 = scalar_lea.vmem %s47, %s870
      $region112: #{traffic_transformer_forward.1} parent=83 // pred_fallthru
        _
      // Predicated region
      $region113: #{traffic_transformer_forward.1} parent=83 // pred_check
        %p872 = pneg %p624
      $region114: #{traffic_transformer_forward.1} parent=83 // pred_check_branch
        %874 = sbr.rel (%p872) target = $region116
      $region115: #{traffic_transformer_forward.1} parent=83 // pred_region
        %p875 = scmp.lt.s32.totalorder %s65, 1
        %s876 = scalar_select %p875, %s65, 1
        %s877 = scalar_lea.vmem %s49, %s876
      $region116: #{traffic_transformer_forward.1} parent=83 // pred_fallthru
        _
      // Predicated region
      $region117: #{traffic_transformer_forward.1} parent=83 // pred_check
        %p878 = pneg %p650
      $region118: #{traffic_transformer_forward.1} parent=83 // pred_check_branch
        %880 = sbr.rel (%p878) target = $region120
      $region119: #{traffic_transformer_forward.1} parent=83 // pred_region
        %p881 = scmp.lt.s32.totalorder %s65, 1
        %s882 = scalar_select %p881, %s65, 1
        %s883 = smul.addr %s882, 8
        %s884 = smul.addr %s883, 4
        %s885 = scalar_lea.vmem %s51, %s884
      $region120: #{traffic_transformer_forward.1} parent=83 // pred_fallthru
        _
      // Predicated region
      $region121: #{traffic_transformer_forward.1} parent=83 // pred_check
        %p886 = pneg %p676
      $region122: #{traffic_transformer_forward.1} parent=83 // pred_check_branch
        %888 = sbr.rel (%p886) target = $region124
      $region123: #{traffic_transformer_forward.1} parent=83 // pred_region
        %p889 = scmp.lt.s32.totalorder %s65, 1
        %s890 = scalar_select %p889, %s65, 1
        %s891 = scalar_lea.vmem %s53, %s890
      $region124: #{traffic_transformer_forward.1} parent=83 // pred_fallthru
        _
      // Predicated region
      $region125: #{traffic_transformer_forward.1} parent=83 // pred_check
        %p892 = pneg %p702
      $region126: #{traffic_transformer_forward.1} parent=83 // pred_check_branch
        %894 = sbr.rel (%p892) target = $region128
      $region127: #{traffic_transformer_forward.1} parent=83 // pred_region
        %p895 = scmp.lt.s32.totalorder %s65, 1
        %s896 = scalar_select %p895, %s65, 1
        %s897 = smul.addr %s896, 16
        %s898 = smul.addr %s897, 4
        %s899 = scalar_lea.vmem %s55, %s898
      $region128: #{traffic_transformer_forward.1} parent=83 // pred_fallthru
        _
      // Predicated region
      $region129: #{traffic_transformer_forward.1} parent=83 // pred_check
        %p900 = pneg %p728
      $region130: #{traffic_transformer_forward.1} parent=83 // pred_check_branch
        %902 = sbr.rel (%p900) target = $region132
      $region131: #{traffic_transformer_forward.1} parent=83 // pred_region
        %p903 = scmp.lt.s32.totalorder %s65, 1
        %s904 = scalar_select %p903, %s65, 1
        %s905 = scalar_lea.vmem %s57, %s904
      $region132: #{traffic_transformer_forward.1} parent=83 // pred_fallthru
        _
    $region84: #{traffic_transformer_forward.1} parent=5 // pred_fallthru
      _
    %p906 = scmp.le.s32.totalorder 1, %s65
    %p907 = scmp.lt.s32.totalorder %s65, 3
    %p908 = pnand %p906, %p907
    %p909 = pneg %p908
    // Predicated region
    $region133: #{traffic_transformer_forward.1} parent=5 // pred_check
      _
    $region134: #{traffic_transformer_forward.1} parent=5 // pred_check_branch
      %911 = sbr.rel (%p908) target = $region136
    $region135: #{traffic_transformer_forward.1} parent=5 // pred_region
      %s912 = ssub.s32 %s65, 1
      %p913 = pneg %p86
      %p914 = pneg %p83
      %p915 = pneg %p107
      %p916 = pneg %p104
      %p917 = pneg %p128
      %p918 = pneg %p125
      %p919 = pneg %p149
      %p920 = pneg %p146
      %p921 = pneg %p170
      %p922 = pneg %p167
      %p923 = pneg %p191
      %p924 = pneg %p188
      %p925 = pneg %p212
      %p926 = pneg %p209
      %p927 = pneg %p233
      %p928 = pneg %p230
      %p929 = pneg %p254
      %p930 = pneg %p251
      %p931 = pneg %p275
      %p932 = pneg %p272
      %p933 = pneg %p296
      %p934 = pneg %p293
      %p935 = pneg %p317
      %p936 = pneg %p314
      %p937 = pneg %p338
      %p938 = pneg %p335
      %p939 = pneg %p359
      %p940 = pneg %p356
      %p941 = pneg %p380
      %p942 = pneg %p377
      %p943 = pneg %p401
      %p944 = pneg %p398
      %p945 = pneg %p422
      %p946 = pneg %p419
      %p947 = scmp.lt.s32.totalorder %s70, 1
      %s948 = scalar_select %p947, %s70, 1
      %s949 = scalar_lea.vmem %s35, %s948
      %p950 = pneg %p448
      %p951 = pneg %p445
      %p952 = scmp.lt.s32.totalorder %s70, 1
      %s953 = scalar_select %p952, %s70, 1
      %s954 = scalar_lea.vmem %s37, %s953
      %p955 = pneg %p474
      %p956 = pneg %p471
      %p957 = scmp.lt.s32.totalorder %s70, 1
      %s958 = scalar_select %p957, %s70, 1
      %s959 = smul.addr %s958, 96
      %s960 = smul.addr %s959, 4
      %s961 = scalar_lea.vmem %s39, %s960
      %p962 = pneg %p500
      %p963 = pneg %p497
      %p964 = scmp.lt.s32.totalorder %s70, 1
      %s965 = scalar_select %p964, %s70, 1
      %s966 = smul.addr %s965, 12
      %s967 = scalar_lea.vmem %s41, %s966
      %p968 = pneg %p526
      %p969 = pneg %p523
      %p970 = scmp.lt.s32.totalorder %s70, 1
      %s971 = scalar_select %p970, %s70, 1
      %s972 = smul.addr %s971, 64
      %s973 = smul.addr %s972, 4
      %s974 = scalar_lea.vmem %s43, %s973
      %p975 = pneg %p552
      %p976 = pneg %p549
      %p977 = scmp.lt.s32.totalorder %s70, 1
      %s978 = scalar_select %p977, %s70, 1
      %s979 = scalar_lea.vmem %s45, %s978
      %p980 = pneg %p578
      %p981 = pneg %p575
      %p982 = scmp.lt.s32.totalorder %s70, 1
      %s983 = scalar_select %p982, %s70, 1
      %s984 = scalar_lea.vmem %s47, %s983
      %p985 = pneg %p604
      %p986 = pneg %p601
      %p987 = scmp.lt.s32.totalorder %s70, 1
      %s988 = scalar_select %p987, %s70, 1
      %s989 = scalar_lea.vmem %s49, %s988
      %p990 = pneg %p630
      %p991 = pneg %p627
      %p992 = scmp.lt.s32.totalorder %s70, 1
      %s993 = scalar_select %p992, %s70, 1
      %s994 = smul.addr %s993, 8
      %s995 = smul.addr %s994, 4
      %s996 = scalar_lea.vmem %s51, %s995
      %p997 = pneg %p656
      %p998 = pneg %p653
      %p999 = scmp.lt.s32.totalorder %s70, 1
      %s1000 = scalar_select %p999, %s70, 1
      %s1001 = scalar_lea.vmem %s53, %s1000
      %p1002 = pneg %p682
      %p1003 = pneg %p679
      %p1004 = scmp.lt.s32.totalorder %s70, 1
      %s1005 = scalar_select %p1004, %s70, 1
      %s1006 = smul.addr %s1005, 16
      %s1007 = smul.addr %s1006, 4
      %s1008 = scalar_lea.vmem %s55, %s1007
      %p1009 = pneg %p708
      %p1010 = pneg %p705
      %p1011 = scmp.lt.s32.totalorder %s70, 1
      %s1012 = scalar_select %p1011, %s70, 1
      %s1013 = scalar_lea.vmem %s57, %s1012
      %p1014 = pneg %p734
      %p1015 = pneg %p731
      %p1016 = pneg %p755
      %p1017 = pneg %p752
      %p1018 = scmp.lt.s32.totalorder %s70, 1
      %s1019 = scalar_select %p1018, %s70, 1
      %s1020 = scalar_lea.vmem %s35, %s1019
      %p1021 = scmp.lt.s32.totalorder %s70, 1
      %s1022 = scalar_select %p1021, %s70, 1
      %s1023 = scalar_lea.vmem %s37, %s1022
      %p1024 = scmp.lt.s32.totalorder %s70, 1
      %s1025 = scalar_select %p1024, %s70, 1
      %s1026 = smul.addr %s1025, 96
      %s1027 = smul.addr %s1026, 4
      %s1028 = scalar_lea.vmem %s39, %s1027
      %p1029 = scmp.lt.s32.totalorder %s70, 1
      %s1030 = scalar_select %p1029, %s70, 1
      %s1031 = smul.addr %s1030, 12
      %s1032 = scalar_lea.vmem %s41, %s1031
      %p1033 = scmp.lt.s32.totalorder %s70, 1
      %s1034 = scalar_select %p1033, %s70, 1
      %s1035 = smul.addr %s1034, 64
      %s1036 = smul.addr %s1035, 4
      %s1037 = scalar_lea.vmem %s43, %s1036
      %p1038 = scmp.lt.s32.totalorder %s70, 1
      %s1039 = scalar_select %p1038, %s70, 1
      %s1040 = scalar_lea.vmem %s45, %s1039
      %p1041 = scmp.lt.s32.totalorder %s70, 1
      %s1042 = scalar_select %p1041, %s70, 1
      %s1043 = scalar_lea.vmem %s47, %s1042
      %p1044 = scmp.lt.s32.totalorder %s70, 1
      %s1045 = scalar_select %p1044, %s70, 1
      %s1046 = scalar_lea.vmem %s49, %s1045
      %p1047 = scmp.lt.s32.totalorder %s70, 1
      %s1048 = scalar_select %p1047, %s70, 1
      %s1049 = smul.addr %s1048, 8
      %s1050 = smul.addr %s1049, 4
      %s1051 = scalar_lea.vmem %s51, %s1050
      %p1052 = scmp.lt.s32.totalorder %s70, 1
      %s1053 = scalar_select %p1052, %s70, 1
      %s1054 = scalar_lea.vmem %s53, %s1053
      %p1055 = scmp.lt.s32.totalorder %s70, 1
      %s1056 = scalar_select %p1055, %s70, 1
      %s1057 = smul.addr %s1056, 16
      %s1058 = smul.addr %s1057, 4
      %s1059 = scalar_lea.vmem %s55, %s1058
      %p1060 = scmp.lt.s32.totalorder %s70, 1
      %s1061 = scalar_select %p1060, %s70, 1
      %s1062 = scalar_lea.vmem %s57, %s1061
      %p1064 = scmp.eq.s32.totalorder %s70, 0
      // Predicated region
      $region137: #{traffic_transformer_forward.1} parent=135 // pred_check
        %p1065 = pneg %p1064
      $region138: #{traffic_transformer_forward.1} parent=135 // pred_check_branch
        %1067 = sbr.rel (%p1065) target = $region140
      $region139: #{traffic_transformer_forward.1} parent=135 // pred_region
        %v1068 = vld [vmem:[%s1] sm:$0xff]
        %v1069 = vld [vmem:[%s1 + $0x8] sm:$0xff]
        %v1070 = vld [vmem:[%s1 + $0x10] sm:$0xff]
        %v1071 = vld [vmem:[%s1 + $0x18] sm:$0xff]
        %v1072 = vld [vmem:[%s1 + $0x20] sm:$0xff]
        %v1073 = vld [vmem:[%s1 + $0x28] sm:$0xff]
        %v1074 = vld [vmem:[%s1 + $0x30] sm:$0xff]
        %v1075 = vld [vmem:[%s1 + $0x38] sm:$0xff]
        %v1076 = vld [vmem:[%s1 + $0x40] sm:$0xff]
        %v1077 = vld [vmem:[%s7] sm:$0xf]
        %v1078 = vld [vmem:[%s7 + $0x4] sm:$0xf]
        %v1079 = vld [vmem:[%s7 + $0x8] sm:$0xf]
        %v1080 = vld [vmem:[%s7 + $0xc] sm:$0xf]
        %v1081 = vld [vmem:[%s7 + $0x10] sm:$0xf]
        %v1082 = vld [vmem:[%s7 + $0x14] sm:$0xf]
        %v1083 = vld [vmem:[%s7 + $0x18] sm:$0xf]
        %v1084 = vld [vmem:[%s7 + $0x1c] sm:$0xf]
        %v1085 = vld [vmem:[%s7 + $0x20] sm:$0xf]
        %v1086 = vld [vmem:[%s7 + $0x24] sm:$0xf]
        %v1087 = vld [vmem:[%s7 + $0x28] sm:$0xf]
        %v1088 = vld [vmem:[%s7 + $0x2c] sm:$0xf]
        %v1089 = vld [vmem:[%s7 + $0x30] sm:$0xf]
        %v1090 = vld [vmem:[%s7 + $0x34] sm:$0xf]
        %v1091 = vld [vmem:[%s7 + $0x38] sm:$0xf]
        %v1092 = vld [vmem:[%s7 + $0x3c] sm:$0xf]
        %v1093 = vld [vmem:[%s7 + $0x40] sm:$0xf]
        %v1094 = vld [vmem:[%s7 + $0x44] sm:$0xf]
        %v1095 = vld [vmem:[%s7 + $0x48] sm:$0xf]
        %v1096 = vld [vmem:[%s7 + $0x4c] sm:$0xf]
        %v1097 = vld [vmem:[%s7 + $0x50] sm:$0xf]
        %v1098 = vld [vmem:[%s7 + $0x54] sm:$0xf]
        %v1099 = vld [vmem:[%s7 + $0x58] sm:$0xf]
        %v1100 = vld [vmem:[%s7 + $0x5c] sm:$0xf]
        %v1101 = vld [vmem:[%s7 + $0x60] sm:$0xf]
        %v1102 = vld [vmem:[%s7 + $0x64] sm:$0xf]
        %v1103 = vld [vmem:[%s7 + $0x68] sm:$0xf]
        %v1104 = vld [vmem:[%s7 + $0x6c] sm:$0xf]
        %v1105 = vld [vmem:[%s7 + $0x70] sm:$0xf]
        %v1106 = vld [vmem:[%s7 + $0x74] sm:$0xf]
        %v1107 = vld [vmem:[%s7 + $0x78] sm:$0xf]
        %v1108 = vld [vmem:[%s7 + $0x7c] sm:$0xf]
        %v1109 = vld [vmem:[%s7 + $0x80] sm:$0xf]
        %v1110 = vld [vmem:[%s7 + $0x84] sm:$0xf]
        %v1111 = vld [vmem:[%s7 + $0x88] sm:$0xf]
        %v1112 = vld [vmem:[%s7 + $0x8c] sm:$0xf]
        %v1113 = vld [vmem:[%s7 + $0x90] sm:$0xf]
        %v1114 = vld [vmem:[%s7 + $0x94] sm:$0xf]
        %v1115 = vld [vmem:[%s7 + $0x98] sm:$0xf]
        %v1116 = vld [vmem:[%s7 + $0x9c] sm:$0xf]
        %v1117 = vld [vmem:[%s7 + $0xa0] sm:$0xf]
        %v1118 = vld [vmem:[%s7 + $0xa4] sm:$0xf]
        %v1119 = vld [vmem:[%s7 + $0xa8] sm:$0xf]
        %v1120 = vld [vmem:[%s7 + $0xac] sm:$0xf]
        %v1121 = vld [vmem:[%s7 + $0xb0] sm:$0xf]
        %v1122 = vld [vmem:[%s7 + $0xb4] sm:$0xf]
        %v1123 = vld [vmem:[%s7 + $0xb8] sm:$0xf]
        %v1124 = vld [vmem:[%s7 + $0xbc] sm:$0xf]
        %v1125 = vld [vmem:[%s7 + $0xc0] sm:$0xf]
        %v1126 = vld [vmem:[%s7 + $0xc4] sm:$0xf]
        %v1127 = vld [vmem:[%s7 + $0xc8] sm:$0xf]
        %v1128 = vld [vmem:[%s7 + $0xcc] sm:$0xf]
        %v1129 = vld [vmem:[%s7 + $0xd0] sm:$0xf]
        %v1130 = vld [vmem:[%s7 + $0xd4] sm:$0xf]
        %v1131 = vld [vmem:[%s7 + $0xd8] sm:$0xf]
        %v1132 = vld [vmem:[%s7 + $0xdc] sm:$0xf]
        %v1133 = vld [vmem:[%s7 + $0xe0] sm:$0xf]
        %v1134 = vld [vmem:[%s7 + $0xe4] sm:$0xf]
        %v1135 = vld [vmem:[%s7 + $0xe8] sm:$0xf]
        %v1136 = vld [vmem:[%s7 + $0xec] sm:$0xf]
        %v1137 = vld [vmem:[%s7 + $0xf0] sm:$0xf]
        %v1138 = vld [vmem:[%s7 + $0xf4] sm:$0xf]
        %v1139 = vld [vmem:[%s7 + $0xf8] sm:$0xf]
        %v1140 = vld [vmem:[%s7 + $0xfc] sm:$0xf]
        %v1141 = vld [vmem:[%s7 + $0x100] sm:$0xf]
        %v1142 = vld [vmem:[%s7 + $0x104] sm:$0xf]
        %v1143 = vld [vmem:[%s7 + $0x108] sm:$0xf]
        %v1144 = vld [vmem:[%s7 + $0x10c] sm:$0xf]
        %v1145 = vld [vmem:[%s7 + $0x110] sm:$0xf]
        %v1146 = vld [vmem:[%s7 + $0x114] sm:$0xf]
        %v1147 = vld [vmem:[%s7 + $0x118] sm:$0xf]
        %v1148 = vld [vmem:[%s7 + $0x11c] sm:$0xf]
        %v1149 = vld [vmem:[%s7 + $0x120] sm:$0xf]
        %v1150 = vld [vmem:[%s7 + $0x124] sm:$0xf]
        %v1151 = vld [vmem:[%s7 + $0x128] sm:$0xf]
        %v1152 = vld [vmem:[%s7 + $0x12c] sm:$0xf]
        %v1153 = vld [vmem:[%s7 + $0x130] sm:$0xf]
        %v1154 = vld [vmem:[%s7 + $0x134] sm:$0xf]
        %v1155 = vld [vmem:[%s7 + $0x138] sm:$0xf]
        %v1156 = vld [vmem:[%s7 + $0x13c] sm:$0xf]
        %v1157 = vld [vmem:[%s7 + $0x140] sm:$0xf]
        %v1158 = vld [vmem:[%s7 + $0x144] sm:$0xf]
        %v1159 = vld [vmem:[%s7 + $0x148] sm:$0xf]
        %v1160 = vld [vmem:[%s7 + $0x14c] sm:$0xf]
        %v1161 = vld [vmem:[%s7 + $0x150] sm:$0xf]
        %v1162 = vld [vmem:[%s7 + $0x154] sm:$0xf]
        %v1163 = vld [vmem:[%s7 + $0x158] sm:$0xf]
        %v1164 = vld [vmem:[%s7 + $0x15c] sm:$0xf]
        %v1165 = vld [vmem:[%s7 + $0x160] sm:$0xf]
        %v1166 = vld [vmem:[%s7 + $0x164] sm:$0xf]
        %v1167 = vld [vmem:[%s7 + $0x168] sm:$0xf]
        %v1168 = vld [vmem:[%s7 + $0x16c] sm:$0xf]
        %v1169 = vld [vmem:[%s7 + $0x170] sm:$0xf]
        %v1170 = vld [vmem:[%s7 + $0x174] sm:$0xf]
        %v1171 = vld [vmem:[%s7 + $0x178] sm:$0xf]
        %v1172 = vld [vmem:[%s7 + $0x17c] sm:$0xf]
        %v1173 = vld [vmem:[%s9] sm:$0x1]
        %v1175 = vlaneseq
        %v1176 = vshrl.u32 %v1175, 7
        %v1177 = vsub.s32 0, %v1176
        %v1178 = vrot.slane %v1173, %v1177
        %v1189 = vunpack.c.l.b16 %v1068
        %v1190 = vunpack.c.h.b16 %v1068
        %v1191 = vunpack.c.l.b16 %v1069
        %v1192 = vunpack.c.h.b16 %v1069
        %v1193 = vunpack.c.l.b16 %v1070
        %v1194 = vunpack.c.h.b16 %v1070
        %v1195 = vunpack.c.l.b16 %v1071
        %v1196 = vunpack.c.h.b16 %v1071
        %v1197 = vunpack.c.l.b16 %v1072
        %v1198 = vunpack.c.h.b16 %v1072
        %v1199 = vunpack.c.l.b16 %v1073
        %v1200 = vunpack.c.h.b16 %v1073
        %v1201 = vunpack.c.l.b16 %v1074
        %v1202 = vunpack.c.h.b16 %v1074
        %v1203 = vunpack.c.l.b16 %v1075
        %v1204 = vunpack.c.h.b16 %v1075
        %v1205 = vunpack.c.l.b16 %v1076
        %v1206 = vunpack.c.h.b16 %v1076
        %v1207 = vpack.c.b16 %v1195, %v1189
        %v1208 = vpack.c.b16 %v1196, %v1190
        %v1209 = vpack.c.b16 %v1197, %v1191
        %v1210 = vpack.c.b16 %v1198, %v1192
        %v1211 = vpack.c.b16 %v1199, %v1193
        %v1212 = vpack.c.b16 %v1200, %v1194
        %v1213 = vpack.c.b16 %v1201, %v1201
        %v1214 = vpack.c.b16 %v1202, %v1202
        %v1215 = vpack.c.b16 %v1203, %v1203
        %v1216 = vpack.c.b16 %v1204, %v1204
        %v1217 = vpack.c.b16 %v1205, %v1205
        %v1218 = vpack.c.b16 %v1206, %v1206
        %v1327 = vunpack.c.l.b16 %v1077
        %v1328 = vunpack.c.l.b16 %v1078
        %v1329 = vunpack.c.l.b16 %v1079
        %v1330 = vunpack.c.l.b16 %v1080
        %v1331 = vunpack.c.l.b16 %v1081
        %v1332 = vunpack.c.l.b16 %v1082
        %v1333 = vunpack.c.l.b16 %v1083
        %v1334 = vunpack.c.l.b16 %v1084
        %v1335 = vunpack.c.l.b16 %v1085
        %v1336 = vunpack.c.l.b16 %v1086
        %v1337 = vunpack.c.l.b16 %v1087
        %v1338 = vunpack.c.l.b16 %v1088
        %v1339 = vunpack.c.l.b16 %v1089
        %v1340 = vunpack.c.l.b16 %v1090
        %v1341 = vunpack.c.l.b16 %v1091
        %v1342 = vunpack.c.l.b16 %v1092
        %v1343 = vunpack.c.l.b16 %v1093
        %v1344 = vunpack.c.l.b16 %v1094
        %v1345 = vunpack.c.l.b16 %v1095
        %v1346 = vunpack.c.l.b16 %v1096
        %v1347 = vunpack.c.l.b16 %v1097
        %v1348 = vunpack.c.l.b16 %v1098
        %v1349 = vunpack.c.l.b16 %v1099
        %v1350 = vunpack.c.l.b16 %v1100
        %v1351 = vunpack.c.l.b16 %v1101
        %v1352 = vunpack.c.l.b16 %v1102
        %v1353 = vunpack.c.l.b16 %v1103
        %v1354 = vunpack.c.l.b16 %v1104
        %v1355 = vunpack.c.l.b16 %v1105
        %v1356 = vunpack.c.l.b16 %v1106
        %v1357 = vunpack.c.l.b16 %v1107
        %v1358 = vunpack.c.l.b16 %v1108
        %v1359 = vunpack.c.l.b16 %v1109
        %v1360 = vunpack.c.l.b16 %v1110
        %v1361 = vunpack.c.l.b16 %v1111
        %v1362 = vunpack.c.l.b16 %v1112
        %v1363 = vunpack.c.l.b16 %v1113
        %v1364 = vunpack.c.l.b16 %v1114
        %v1365 = vunpack.c.l.b16 %v1115
        %v1366 = vunpack.c.l.b16 %v1116
        %v1367 = vunpack.c.l.b16 %v1117
        %v1368 = vunpack.c.l.b16 %v1118
        %v1369 = vunpack.c.l.b16 %v1119
        %v1370 = vunpack.c.l.b16 %v1120
        %v1371 = vunpack.c.l.b16 %v1121
        %v1372 = vunpack.c.l.b16 %v1122
        %v1373 = vunpack.c.l.b16 %v1123
        %v1374 = vunpack.c.l.b16 %v1124
        %v1375 = vunpack.c.l.b16 %v1125
        %v1376 = vunpack.c.l.b16 %v1126
        %v1377 = vunpack.c.l.b16 %v1127
        %v1378 = vunpack.c.l.b16 %v1128
        %v1379 = vunpack.c.l.b16 %v1129
        %v1380 = vunpack.c.l.b16 %v1130
        %v1381 = vunpack.c.l.b16 %v1131
        %v1382 = vunpack.c.l.b16 %v1132
        %v1383 = vunpack.c.l.b16 %v1133
        %v1384 = vunpack.c.l.b16 %v1134
        %v1385 = vunpack.c.l.b16 %v1135
        %v1386 = vunpack.c.l.b16 %v1136
        %v1387 = vunpack.c.l.b16 %v1137
        %v1388 = vunpack.c.l.b16 %v1138
        %v1389 = vunpack.c.l.b16 %v1139
        %v1390 = vunpack.c.l.b16 %v1140
        %v1391 = vunpack.c.l.b16 %v1141
        %v1392 = vunpack.c.l.b16 %v1142
        %v1393 = vunpack.c.l.b16 %v1143
        %v1394 = vunpack.c.l.b16 %v1144
        %v1395 = vunpack.c.l.b16 %v1145
        %v1396 = vunpack.c.l.b16 %v1146
        %v1397 = vunpack.c.l.b16 %v1147
        %v1398 = vunpack.c.l.b16 %v1148
        %v1399 = vunpack.c.l.b16 %v1149
        %v1400 = vunpack.c.l.b16 %v1150
        %v1401 = vunpack.c.l.b16 %v1151
        %v1402 = vunpack.c.l.b16 %v1152
        %v1403 = vunpack.c.l.b16 %v1153
        %v1404 = vunpack.c.l.b16 %v1154
        %v1405 = vunpack.c.l.b16 %v1155
        %v1406 = vunpack.c.l.b16 %v1156
        %v1407 = vunpack.c.l.b16 %v1157
        %v1408 = vunpack.c.l.b16 %v1158
        %v1409 = vunpack.c.l.b16 %v1159
        %v1410 = vunpack.c.l.b16 %v1160
        %v1411 = vunpack.c.l.b16 %v1161
        %v1412 = vunpack.c.l.b16 %v1162
        %v1413 = vunpack.c.l.b16 %v1163
        %v1414 = vunpack.c.l.b16 %v1164
        %v1415 = vunpack.c.l.b16 %v1165
        %v1416 = vunpack.c.l.b16 %v1166
        %v1417 = vunpack.c.l.b16 %v1167
        %v1418 = vunpack.c.l.b16 %v1168
        %v1419 = vunpack.c.l.b16 %v1169
        %v1420 = vunpack.c.l.b16 %v1170
        %v1421 = vunpack.c.l.b16 %v1171
        %v1422 = vunpack.c.l.b16 %v1172
        %v1423 = vpack.c.b16 %v1328, %v1327
        %v1424 = vpack.c.b16 %v1330, %v1329
        %v1425 = vpack.c.b16 %v1332, %v1331
        %v1426 = vpack.c.b16 %v1334, %v1333
        %v1427 = vpack.c.b16 %v1336, %v1335
        %v1428 = vpack.c.b16 %v1338, %v1337
        %v1429 = vpack.c.b16 %v1340, %v1339
        %v1430 = vpack.c.b16 %v1342, %v1341
        %v1431 = vpack.c.b16 %v1344, %v1343
        %v1432 = vpack.c.b16 %v1346, %v1345
        %v1433 = vpack.c.b16 %v1348, %v1347
        %v1434 = vpack.c.b16 %v1350, %v1349
        %v1435 = vpack.c.b16 %v1352, %v1351
        %v1436 = vpack.c.b16 %v1354, %v1353
        %v1437 = vpack.c.b16 %v1356, %v1355
        %v1438 = vpack.c.b16 %v1358, %v1357
        %v1439 = vpack.c.b16 %v1360, %v1359
        %v1440 = vpack.c.b16 %v1362, %v1361
        %v1441 = vpack.c.b16 %v1364, %v1363
        %v1442 = vpack.c.b16 %v1366, %v1365
        %v1443 = vpack.c.b16 %v1368, %v1367
        %v1444 = vpack.c.b16 %v1370, %v1369
        %v1445 = vpack.c.b16 %v1372, %v1371
        %v1446 = vpack.c.b16 %v1374, %v1373
        %v1447 = vpack.c.b16 %v1376, %v1375
        %v1448 = vpack.c.b16 %v1378, %v1377
        %v1449 = vpack.c.b16 %v1380, %v1379
        %v1450 = vpack.c.b16 %v1382, %v1381
        %v1451 = vpack.c.b16 %v1384, %v1383
        %v1452 = vpack.c.b16 %v1386, %v1385
        %v1453 = vpack.c.b16 %v1388, %v1387
        %v1454 = vpack.c.b16 %v1390, %v1389
        %v1455 = vpack.c.b16 %v1392, %v1391
        %v1456 = vpack.c.b16 %v1394, %v1393
        %v1457 = vpack.c.b16 %v1396, %v1395
        %v1458 = vpack.c.b16 %v1398, %v1397
        %v1459 = vpack.c.b16 %v1400, %v1399
        %v1460 = vpack.c.b16 %v1402, %v1401
        %v1461 = vpack.c.b16 %v1404, %v1403
        %v1462 = vpack.c.b16 %v1406, %v1405
        %v1463 = vpack.c.b16 %v1408, %v1407
        %v1464 = vpack.c.b16 %v1410, %v1409
        %v1465 = vpack.c.b16 %v1412, %v1411
        %v1466 = vpack.c.b16 %v1414, %v1413
        %v1467 = vpack.c.b16 %v1416, %v1415
        %v1468 = vpack.c.b16 %v1418, %v1417
        %v1469 = vpack.c.b16 %v1420, %v1419
        %v1470 = vpack.c.b16 %v1422, %v1421
        %1519 = vmatprep.subr.bf16.mxu0 0
        %1520 = vmatpush1.bf16.msra.mxu0 %v1423
        %1521 = vmatprep.subr.bf16.mxu0 0
        %1522 = vmatpush1.bf16.msra.mxu0 %v1424
        %1523 = vmatprep.subr.bf16.mxu0 0
        %1524 = vmatpush1.bf16.msra.mxu0 %v1425
        %1525 = vmatprep.subr.bf16.mxu0 0
        %1526 = vmatpush1.bf16.msra.mxu0 %v1426
        %1527 = vmatprep.subr.bf16.mxu0 0
        %1528 = vmatpush1.bf16.msra.mxu0 %v1427
        %1529 = vmatprep.subr.bf16.mxu0 0
        %1530 = vmatpush1.bf16.msra.mxu0 %v1428
        %1531 = vmatprep.subr.bf16.mxu0 0
        %1532 = vmatpush1.bf16.msra.mxu0 %v1429
        %1533 = vmatprep.subr.bf16.mxu0 0
        %1534 = vmatpush1.bf16.msra.mxu0 %v1430
        %1535 = vmatprep.subr.bf16.mxu0 0
        %1536 = vmatpush1.bf16.msra.mxu0 %v1431
        %1537 = vmatprep.subr.bf16.mxu0 0
        %1538 = vmatpush1.bf16.msra.mxu0 %v1432
        %1539 = vmatprep.subr.bf16.mxu0 0
        %1540 = vmatpush1.bf16.msra.mxu0 %v1433
        %1541 = vmatprep.subr.bf16.mxu0 0
        %1542 = vmatpush1.bf16.msra.mxu0 %v1434
        %1543 = vmatprep.subr.bf16.mxu0 0
        %1544 = vmatpush1.bf16.msra.mxu0 %v1435
        %1545 = vmatprep.subr.bf16.mxu0 0
        %1546 = vmatpush1.bf16.msra.mxu0 %v1436
        %1547 = vmatprep.subr.bf16.mxu0 0
        %1548 = vmatpush1.bf16.msra.mxu0 %v1437
        %1549 = vmatprep.subr.bf16.mxu0 0
        %1550 = vmatpush1.bf16.msra.mxu0 %v1438
        %1551 = vmatprep.mubr.bf16.mxu0 %v1208
        %1552 = vmatmul.mubr.bf16.gmra.mrb[0].mxu0 %v1207
        %v1553 = vpop.f32.mrb[0].mxu0
        %v1554 = vadd.f32 %v1178, %v1553
        %v1555 = vpop.f32.mrb[0].mxu0
        %v1556 = vpop.f32.mrb[0].mxu0
        %v1557 = vadd.f32 %v1178, %v1556
        %v1558 = vpop.f32.mrb[0].mxu0
        %1559 = vmatprep.mubr.bf16.mxu0 %v1214
        %1560 = vmatmul.mubr.bf16.gmra.mrb[0].mxu0 %v1213
        %v1561 = vpop.f32.mrb[0].mxu0
        %v1562 = vadd.f32 %v1178, %v1561
        %v1563 = vpop.f32.mrb[0].mxu0
        %v1564 = vpop.f32.mrb[0].mxu0
        %v1565 = vpop.f32.mrb[0].mxu0
        %1566 = vdwg.mxu0
        %1567 = vmatprep.subr.bf16.mxu0 0
        %1568 = vmatpush1.bf16.msra.mxu0 %v1439
        %1569 = vmatprep.subr.bf16.mxu0 0
        %1570 = vmatpush1.bf16.msra.mxu0 %v1440
        %1571 = vmatprep.subr.bf16.mxu0 0
        %1572 = vmatpush1.bf16.msra.mxu0 %v1441
        %1573 = vmatprep.subr.bf16.mxu0 0
        %1574 = vmatpush1.bf16.msra.mxu0 %v1442
        %1575 = vmatprep.subr.bf16.mxu0 0
        %1576 = vmatpush1.bf16.msra.mxu0 %v1443
        %1577 = vmatprep.subr.bf16.mxu0 0
        %1578 = vmatpush1.bf16.msra.mxu0 %v1444
        %1579 = vmatprep.subr.bf16.mxu0 0
        %1580 = vmatpush1.bf16.msra.mxu0 %v1445
        %1581 = vmatprep.subr.bf16.mxu0 0
        %1582 = vmatpush1.bf16.msra.mxu0 %v1446
        %1583 = vmatprep.subr.bf16.mxu0 0
        %1584 = vmatpush1.bf16.msra.mxu0 %v1447
        %1585 = vmatprep.subr.bf16.mxu0 0
        %1586 = vmatpush1.bf16.msra.mxu0 %v1448
        %1587 = vmatprep.subr.bf16.mxu0 0
        %1588 = vmatpush1.bf16.msra.mxu0 %v1449
        %1589 = vmatprep.subr.bf16.mxu0 0
        %1590 = vmatpush1.bf16.msra.mxu0 %v1450
        %1591 = vmatprep.subr.bf16.mxu0 0
        %1592 = vmatpush1.bf16.msra.mxu0 %v1451
        %1593 = vmatprep.subr.bf16.mxu0 0
        %1594 = vmatpush1.bf16.msra.mxu0 %v1452
        %1595 = vmatprep.subr.bf16.mxu0 0
        %1596 = vmatpush1.bf16.msra.mxu0 %v1453
        %1597 = vmatprep.subr.bf16.mxu0 0
        %1598 = vmatpush1.bf16.msra.mxu0 %v1454
        %1599 = vmatprep.mubr.bf16.mxu0 %v1210
        %1600 = vmatmul.mubr.bf16.gmra.mrb[0].mxu0 %v1209
        %v1601 = vpop.f32.mrb[0].mxu0
        %v1602 = vadd.f32 %v1554, %v1601
        %v1603 = vpop.f32.mrb[0].mxu0
        %v1604 = vpop.f32.mrb[0].mxu0
        %v1605 = vadd.f32 %v1557, %v1604
        %v1606 = vpop.f32.mrb[0].mxu0
        %1607 = vmatprep.mubr.bf16.mxu0 %v1216
        %1608 = vmatmul.mubr.bf16.gmra.mrb[0].mxu0 %v1215
        %v1609 = vpop.f32.mrb[0].mxu0
        %v1610 = vadd.f32 %v1562, %v1609
        %v1611 = vpop.f32.mrb[0].mxu0
        %v1612 = vpop.f32.mrb[0].mxu0
        %v1613 = vpop.f32.mrb[0].mxu0
        %1614 = vdwg.mxu0
        %1615 = vmatprep.subr.bf16.mxu0 0
        %1616 = vmatpush1.bf16.msra.mxu0 %v1455
        %1617 = vmatprep.subr.bf16.mxu0 0
        %1618 = vmatpush1.bf16.msra.mxu0 %v1456
        %1619 = vmatprep.subr.bf16.mxu0 0
        %1620 = vmatpush1.bf16.msra.mxu0 %v1457
        %1621 = vmatprep.subr.bf16.mxu0 0
        %1622 = vmatpush1.bf16.msra.mxu0 %v1458
        %1623 = vmatprep.subr.bf16.mxu0 0
        %1624 = vmatpush1.bf16.msra.mxu0 %v1459
        %1625 = vmatprep.subr.bf16.mxu0 0
        %1626 = vmatpush1.bf16.msra.mxu0 %v1460
        %1627 = vmatprep.subr.bf16.mxu0 0
        %1628 = vmatpush1.bf16.msra.mxu0 %v1461
        %1629 = vmatprep.subr.bf16.mxu0 0
        %1630 = vmatpush1.bf16.msra.mxu0 %v1462
        %1631 = vmatprep.subr.bf16.mxu0 0
        %1632 = vmatpush1.bf16.msra.mxu0 %v1463
        %1633 = vmatprep.subr.bf16.mxu0 0
        %1634 = vmatpush1.bf16.msra.mxu0 %v1464
        %1635 = vmatprep.subr.bf16.mxu0 0
        %1636 = vmatpush1.bf16.msra.mxu0 %v1465
        %1637 = vmatprep.subr.bf16.mxu0 0
        %1638 = vmatpush1.bf16.msra.mxu0 %v1466
        %1639 = vmatprep.subr.bf16.mxu0 0
        %1640 = vmatpush1.bf16.msra.mxu0 %v1467
        %1641 = vmatprep.subr.bf16.mxu0 0
        %1642 = vmatpush1.bf16.msra.mxu0 %v1468
        %1643 = vmatprep.subr.bf16.mxu0 0
        %1644 = vmatpush1.bf16.msra.mxu0 %v1469
        %1645 = vmatprep.subr.bf16.mxu0 0
        %1646 = vmatpush1.bf16.msra.mxu0 %v1470
        %1647 = vmatprep.mubr.bf16.mxu0 %v1212
        %1648 = vmatmul.mubr.bf16.gmra.mrb[0].mxu0 %v1211
        %v1649 = vpop.f32.mrb[0].mxu0
        %v1650 = vadd.f32 %v1602, %v1649
        %v1651 = vpop.f32.mrb[0].mxu0
        %v1652 = vpop.f32.mrb[0].mxu0
        %v1653 = vadd.f32 %v1605, %v1652
        %v1654 = vpop.f32.mrb[0].mxu0
        %1655 = vmatprep.mubr.bf16.mxu0 %v1218
        %1656 = vmatmul.mubr.bf16.gmra.mrb[0].mxu0 %v1217
        %v1657 = vpop.f32.mrb[0].mxu0
        %v1658 = vadd.f32 %v1610, %v1657
        %v1659 = vpop.f32.mrb[0].mxu0
        %v1660 = vpop.f32.mrb[0].mxu0
        %v1661 = vpop.f32.mrb[0].mxu0
        %1662 = vdwg.mxu0
        %v1663 = vld [vmem:[%s3] sm:$0xff]
        %v1664 = vld [vmem:[%s3 + $0x8] sm:$0xff]
        %v1665 = vld [vmem:[%s3 + $0x10] sm:$0xff]
        %v1666 = vld [vmem:[%s3 + $0x18] sm:$0xff]
        %v1667 = vld [vmem:[%s3 + $0x20] sm:$0xff]
        %v1668 = vld [vmem:[%s3 + $0x28] sm:$0xff]
        %v1669 = vld [vmem:[%s5] sm:$0xf]
        %v1670 = vld [vmem:[%s5 + $0x4] sm:$0xf]
        %v1671 = vld [vmem:[%s5 + $0x8] sm:$0xf]
        %v1672 = vld [vmem:[%s5 + $0xc] sm:$0xf]
        %v1673 = vld [vmem:[%s5 + $0x10] sm:$0xf]
        %v1674 = vld [vmem:[%s5 + $0x14] sm:$0xf]
        %v1675 = vpack.c.bf16 %v1653, %v1650
        %v1676 = vpack.c.bf16 %v1658, %v1658
        %v1683 = vunpack.c.l.b16 %v1669
        %v1684 = vunpack.c.l.b16 %v1670
        %v1685 = vunpack.c.l.b16 %v1671
        %v1686 = vunpack.c.l.b16 %v1672
        %v1687 = vunpack.c.l.b16 %v1673
        %v1688 = vunpack.c.l.b16 %v1674
        %v1689 = vpack.c.b16 %v1684, %v1683
        %v1690 = vpack.c.b16 %v1686, %v1685
        %v1691 = vpack.c.b16 %v1688, %v1687
        %vm1692 = vcmask 195584
        %v1694 = vsel %vm1692, %v1689, 0
        %v1697 = vsel %vm1692, %v1690, 0
        %v1700 = vsel %vm1692, %v1691, 0
        %vm1702 = vcmask 1043456
        %v1704 = vsel %vm1702, %v1676, 0
        %1706 = vmatprep.subr.bf16.mxu0 0
        %1707 = vmatpush1.bf16.msra.mxu0 %v1675
        %1708 = vmatprep.subr.bf16.mxu0 0
        %1709 = vmatpush1.bf16.msra.mxu0 %v1704
        %1710 = vmatprep.subr.bf16.mxu0 0
        %1711 = vmatpush1.bf16.msra.mxu0 0
        %1712 = vmatprep.subr.bf16.mxu0 0
        %1713 = vmatpush1.bf16.msra.mxu0 0
        %1714 = vmatprep.subr.bf16.mxu0 0
        %1715 = vmatpush1.bf16.msra.mxu0 0
        %1716 = vmatprep.subr.bf16.mxu0 0
        %1717 = vmatpush1.bf16.msra.mxu0 0
        %1718 = vmatprep.subr.bf16.mxu0 0
        %1719 = vmatpush1.bf16.msra.mxu0 0
        %1720 = vmatprep.subr.bf16.mxu0 0
        %1721 = vmatpush1.bf16.msra.mxu0 0
        %1722 = vmatprep.subr.bf16.mxu0 0
        %1723 = vmatpush1.bf16.msra.mxu0 0
        %1724 = vmatprep.subr.bf16.mxu0 0
        %1725 = vmatpush1.bf16.msra.mxu0 0
        %1726 = vmatprep.subr.bf16.mxu0 0
        %1727 = vmatpush1.bf16.msra.mxu0 0
        %1728 = vmatprep.subr.bf16.mxu0 0
        %1729 = vmatpush1.bf16.msra.mxu0 0
        %1730 = vmatprep.subr.bf16.mxu0 0
        %1731 = vmatpush1.bf16.msra.mxu0 0
        %1732 = vmatprep.subr.bf16.mxu0 0
        %1733 = vmatpush1.bf16.msra.mxu0 0
        %1734 = vmatprep.subr.bf16.mxu0 0
        %1735 = vmatpush1.bf16.msra.mxu0 0
        %1736 = vmatprep.subr.bf16.mxu0 0
        %1737 = vmatpush1.bf16.msra.mxu0 0
        %1738 = vmatprep.mubr.bf16.mxu0 0
        %1739 = vmatmul.mubr.bf16.gmra.mrb[0].mxu0 %v1694
        %v1740 = vpop.f32.mrb[0].mxu0
        %v1741 = vadd.f32 0.0, %v1740
        %v1742 = vpop.f32.mrb[0].mxu0
        %v1743 = vpop.f32.mrb[0].mxu0
        %v1744 = vadd.f32 0.0, %v1743
        %v1745 = vpop.f32.mrb[0].mxu0
        %1746 = vmatprep.mubr.bf16.mxu0 0
        %1747 = vmatmul.mubr.bf16.gmra.mrb[0].mxu0 %v1697
        %v1748 = vpop.f32.mrb[0].mxu0
        %v1749 = vadd.f32 0.0, %v1748
        %v1750 = vpop.f32.mrb[0].mxu0
        %v1751 = vpop.f32.mrb[0].mxu0
        %v1752 = vadd.f32 0.0, %v1751
        %v1753 = vpop.f32.mrb[0].mxu0
        %1754 = vmatprep.mubr.bf16.mxu0 0
        %1755 = vmatmul.mubr.bf16.gmra.mrb[0].mxu0 %v1700
        %v1756 = vpop.f32.mrb[0].mxu0
        %v1757 = vadd.f32 0.0, %v1756
        %v1758 = vpop.f32.mrb[0].mxu0
        %v1759 = vpop.f32.mrb[0].mxu0
        %v1760 = vadd.f32 0.0, %v1759
        %v1761 = vpop.f32.mrb[0].mxu0
        %1762 = vdwg.mxu0
        %v1763 = vadd.f32 %v1663, %v1741
        %v1764 = vadd.f32 %v1664, %v1744
        %v1765 = vadd.f32 %v1665, %v1749
        %v1766 = vadd.f32 %v1666, %v1752
        %v1767 = vadd.f32 %v1667, %v1757
        %v1768 = vadd.f32 %v1668, %v1760
        %vm1769 = vcmask 523264
        %1770 = vst.msk [vmem:[#allocation2] sm:$0xff] %vm1769, %v1763
        %1771 = vst.msk [vmem:[#allocation2 + $0x8] sm:$0xff] %vm1769, %v1764
        %1772 = vst.msk [vmem:[#allocation2 + $0x10] sm:$0xff] %vm1769, %v1765
        %1773 = vst.msk [vmem:[#allocation2 + $0x18] sm:$0xff] %vm1769, %v1766
        %1774 = vst.msk [vmem:[#allocation2 + $0x20] sm:$0xff] %vm1769, %v1767
        %1775 = vst.msk [vmem:[#allocation2 + $0x28] sm:$0xff] %vm1769, %v1768
      $region140: #{traffic_transformer_forward.1} parent=135 // pred_fallthru
        _
      %v1776 = vld [vmem:[#allocation2] sm:$0xff]
      %v1777 = vld [vmem:[#allocation2 + $0x8] sm:$0xff]
      %v1778 = vld [vmem:[#allocation2 + $0x10] sm:$0xff]
      %v1779 = vld [vmem:[#allocation2 + $0x18] sm:$0xff]
      %v1780 = vld [vmem:[#allocation2 + $0x20] sm:$0xff]
      %v1781 = vld [vmem:[#allocation2 + $0x28] sm:$0xff]
      %v1782 = vld [vmem:[%s1020] sm:$0x1]
      %v1783 = vld [vmem:[%s1023] sm:$0x1]
      %vm1784 = vcmask 523264
      %v1785 = vsel %vm1784, %v1776, 0.0
      %1786 = vadd.xlane.f32.xlu0 %v1785
      %v1787 = vpop.xlane.xlu0 %1786
      %v1788 = vsel %vm1784, %v1777, 0.0
      %1789 = vadd.xlane.f32.xlu0 %v1788
      %v1790 = vpop.xlane.xlu0 %1789
      %v1791 = vsel %vm1784, %v1778, 0.0
      %1792 = vadd.xlane.f32.xlu0 %v1791
      %v1793 = vpop.xlane.xlu0 %1792
      %v1794 = vsel %vm1784, %v1779, 0.0
      %1795 = vadd.xlane.f32.xlu0 %v1794
      %v1796 = vpop.xlane.xlu0 %1795
      %v1797 = vsel %vm1784, %v1780, 0.0
      %1798 = vadd.xlane.f32.xlu0 %v1797
      %v1799 = vpop.xlane.xlu0 %1798
      %v1800 = vsel %vm1784, %v1781, 0.0
      %1801 = vadd.xlane.f32.xlu0 %v1800
      %v1802 = vpop.xlane.xlu0 %1801
      %v1803 = vrcp.pop 64.0
      %v1804 = vmul.f32 %v1787, %v1803
      %v1805 = vmul.f32 %v1790, %v1803
      %v1806 = vmul.f32 %v1793, %v1803
      %v1807 = vmul.f32 %v1796, %v1803
      %v1808 = vmul.f32 %v1799, %v1803
      %v1809 = vmul.f32 %v1802, %v1803
      %v1810 = vsub.f32 %v1776, %v1804
      %v1811 = vsub.f32 %v1777, %v1805
      %v1812 = vsub.f32 %v1778, %v1806
      %v1813 = vsub.f32 %v1779, %v1807
      %v1814 = vsub.f32 %v1780, %v1808
      %v1815 = vsub.f32 %v1781, %v1809
      %v1816 = vmul.f32 %v1810, %v1810
      %v1817 = vmul.f32 %v1811, %v1811
      %v1818 = vmul.f32 %v1812, %v1812
      %v1819 = vmul.f32 %v1813, %v1813
      %v1820 = vmul.f32 %v1814, %v1814
      %v1821 = vmul.f32 %v1815, %v1815
      %v1822 = vsel %vm1784, %v1816, 0.0
      %1823 = vadd.xlane.f32.xlu0 %v1822
      %v1824 = vpop.xlane.xlu0 %1823
      %v1825 = vsel %vm1784, %v1817, 0.0
      %1826 = vadd.xlane.f32.xlu0 %v1825
      %v1827 = vpop.xlane.xlu0 %1826
      %v1828 = vsel %vm1784, %v1818, 0.0
      %1829 = vadd.xlane.f32.xlu0 %v1828
      %v1830 = vpop.xlane.xlu0 %1829
      %v1831 = vsel %vm1784, %v1819, 0.0
      %1832 = vadd.xlane.f32.xlu0 %v1831
      %v1833 = vpop.xlane.xlu0 %1832
      %v1834 = vsel %vm1784, %v1820, 0.0
      %1835 = vadd.xlane.f32.xlu0 %v1834
      %v1836 = vpop.xlane.xlu0 %1835
      %v1837 = vsel %vm1784, %v1821, 0.0
      %1838 = vadd.xlane.f32.xlu0 %v1837
      %v1839 = vpop.xlane.xlu0 %1838
      %v1840 = vmul.f32 %v1824, %v1803
      %v1841 = vmul.f32 %v1827, %v1803
      %v1842 = vmul.f32 %v1830, %v1803
      %v1843 = vmul.f32 %v1833, %v1803
      %v1844 = vmul.f32 %v1836, %v1803
      %v1845 = vmul.f32 %v1839, %v1803
      %v1846 = vadd.f32 %v1840, 1e-06
      %v1847 = vadd.f32 %v1841, 1e-06
      %v1848 = vadd.f32 %v1842, 1e-06
      %v1849 = vadd.f32 %v1843, 1e-06
      %v1850 = vadd.f32 %v1844, 1e-06
      %v1851 = vadd.f32 %v1845, 1e-06
      %v1852 = vrsqrt.pop %v1846
      %v1853 = vrsqrt.pop %v1847
      %v1854 = vrsqrt.pop %v1848
      %v1855 = vrsqrt.pop %v1849
      %v1856 = vrsqrt.pop %v1850
      %v1857 = vrsqrt.pop %v1851
      %v1858 = vmul.f32 %v1810, %v1852
      %v1859 = vmul.f32 %v1811, %v1853
      %v1860 = vmul.f32 %v1812, %v1854
      %v1861 = vmul.f32 %v1813, %v1855
      %v1862 = vmul.f32 %v1814, %v1856
      %v1863 = vmul.f32 %v1815, %v1857
      %v1865 = vlaneseq
      %v1866 = vshrl.u32 %v1865, 7
      %v1867 = vsub.s32 0, %v1866
      %v1868 = vrot.slane %v1782, %v1867
      %v1870 = vmul.f32 %v1858, %v1868
      %v1871 = vmul.f32 %v1859, %v1868
      %v1872 = vmul.f32 %v1860, %v1868
      %v1873 = vmul.f32 %v1861, %v1868
      %v1874 = vmul.f32 %v1862, %v1868
      %v1875 = vmul.f32 %v1863, %v1868
      %v1877 = vlaneseq
      %v1878 = vshrl.u32 %v1877, 7
      %v1879 = vsub.s32 0, %v1878
      %v1880 = vrot.slane %v1783, %v1879
      %v1882 = vadd.f32 %v1870, %v1880
      %v1883 = vadd.f32 %v1871, %v1880
      %v1884 = vadd.f32 %v1872, %v1880
      %v1885 = vadd.f32 %v1873, %v1880
      %v1886 = vadd.f32 %v1874, %v1880
      %v1887 = vadd.f32 %v1875, %v1880
      %v1888 = vld [vmem:[%s1028] sm:$0xff]
      %v1889 = vld [vmem:[%s1028 + $0x8] sm:$0xff]
      %v1890 = vld [vmem:[%s1028 + $0x10] sm:$0xff]
      %v1891 = vld [vmem:[%s1028 + $0x18] sm:$0xff]
      %v1892 = vld [vmem:[%s1028 + $0x20] sm:$0xff]
      %v1893 = vld [vmem:[%s1028 + $0x28] sm:$0xff]
      %v1894 = vld [vmem:[%s1028 + $0x30] sm:$0xff]
      %v1895 = vld [vmem:[%s1028 + $0x38] sm:$0xff]
      %v1896 = vld [vmem:[%s1028 + $0x40] sm:$0xff]
      %v1897 = vld [vmem:[%s1028 + $0x48] sm:$0xff]
      %v1898 = vld [vmem:[%s1028 + $0x50] sm:$0xff]
      %v1899 = vld [vmem:[%s1028 + $0x58] sm:$0xff]
      %v1900 = vld [vmem:[%s1028 + $0x60] sm:$0xff]
      %v1901 = vld [vmem:[%s1028 + $0x68] sm:$0xff]
      %v1902 = vld [vmem:[%s1028 + $0x70] sm:$0xff]
      %v1903 = vld [vmem:[%s1028 + $0x78] sm:$0xff]
      %v1904 = vld [vmem:[%s1028 + $0x80] sm:$0xff]
      %v1905 = vld [vmem:[%s1028 + $0x88] sm:$0xff]
      %v1906 = vld [vmem:[%s1028 + $0x90] sm:$0xff]
      %v1907 = vld [vmem:[%s1028 + $0x98] sm:$0xff]
      %v1908 = vld [vmem:[%s1028 + $0xa0] sm:$0xff]
      %v1909 = vld [vmem:[%s1028 + $0xa8] sm:$0xff]
      %v1910 = vld [vmem:[%s1028 + $0xb0] sm:$0xff]
      %v1911 = vld [vmem:[%s1028 + $0xb8] sm:$0xff]
      %v1912 = vld [vmem:[%s1028 + $0xc0] sm:$0xff]
      %v1913 = vld [vmem:[%s1028 + $0xc8] sm:$0xff]
      %v1914 = vld [vmem:[%s1028 + $0xd0] sm:$0xff]
      %v1915 = vld [vmem:[%s1028 + $0xd8] sm:$0xff]
      %v1916 = vld [vmem:[%s1028 + $0xe0] sm:$0xff]
      %v1917 = vld [vmem:[%s1028 + $0xe8] sm:$0xff]
      %v1918 = vld [vmem:[%s1028 + $0xf0] sm:$0xff]
      %v1919 = vld [vmem:[%s1028 + $0xf8] sm:$0xff]
      %v1920 = vld [vmem:[%s1028 + $0x100] sm:$0xff]
      %v1921 = vld [vmem:[%s1028 + $0x108] sm:$0xff]
      %v1922 = vld [vmem:[%s1028 + $0x110] sm:$0xff]
      %v1923 = vld [vmem:[%s1028 + $0x118] sm:$0xff]
      %v1924 = vld [vmem:[%s1028 + $0x120] sm:$0xff]
      %v1925 = vld [vmem:[%s1028 + $0x128] sm:$0xff]
      %v1926 = vld [vmem:[%s1028 + $0x130] sm:$0xff]
      %v1927 = vld [vmem:[%s1028 + $0x138] sm:$0xff]
      %v1928 = vld [vmem:[%s1028 + $0x140] sm:$0xff]
      %v1929 = vld [vmem:[%s1028 + $0x148] sm:$0xff]
      %v1930 = vld [vmem:[%s1028 + $0x150] sm:$0xff]
      %v1931 = vld [vmem:[%s1028 + $0x158] sm:$0xff]
      %v1932 = vld [vmem:[%s1028 + $0x160] sm:$0xff]
      %v1933 = vld [vmem:[%s1028 + $0x168] sm:$0xff]
      %v1934 = vld [vmem:[%s1028 + $0x170] sm:$0xff]
      %v1935 = vld [vmem:[%s1028 + $0x178] sm:$0xff]
      %v1936 = vpack.c.bf16 %v1883, %v1882
      %v1937 = vpack.c.bf16 %v1885, %v1884
      %v1938 = vpack.c.bf16 %v1887, %v1886
      %v1939 = vld [vmem:[%s1032] sm:$0xff]
      %v1940 = vld [vmem:[%s1032 + $0x8] sm:$0xf]
      %v1943 = vlaneseq
      %v1944 = vshrl.u32 %v1943, 7
      %v1945 = vsub.s32 0, %v1944
      %v1946 = vrot.slane %v1939, %v1945
      %v1947 = vlaneseq
      %v1948 = vshrl.u32 %v1947, 7
      %v1949 = vsub.s32 1, %v1948
      %v1950 = vrot.slane %v1939, %v1949
      %v1951 = vlaneseq
      %v1952 = vshrl.u32 %v1951, 7
      %v1953 = vsub.s32 2, %v1952
      %v1954 = vrot.slane %v1939, %v1953
      %v1955 = vlaneseq
      %v1956 = vshrl.u32 %v1955, 7
      %v1957 = vsub.s32 3, %v1956
      %v1958 = vrot.slane %v1939, %v1957
      %v1959 = vlaneseq
      %v1960 = vshrl.u32 %v1959, 7
      %v1961 = vsub.s32 4, %v1960
      %v1962 = vrot.slane %v1939, %v1961
      %v1963 = vlaneseq
      %v1964 = vshrl.u32 %v1963, 7
      %v1965 = vsub.s32 5, %v1964
      %v1966 = vrot.slane %v1939, %v1965
      %v1967 = vlaneseq
      %v1968 = vshrl.u32 %v1967, 7
      %v1969 = vsub.s32 6, %v1968
      %v1970 = vrot.slane %v1939, %v1969
      %v1971 = vlaneseq
      %v1972 = vshrl.u32 %v1971, 7
      %v1973 = vsub.s32 7, %v1972
      %v1974 = vrot.slane %v1939, %v1973
      %v1975 = vlaneseq
      %v1976 = vshrl.u32 %v1975, 7
      %v1977 = vsub.s32 0, %v1976
      %v1978 = vrot.slane %v1940, %v1977
      %v1979 = vlaneseq
      %v1980 = vshrl.u32 %v1979, 7
      %v1981 = vsub.s32 1, %v1980
      %v1982 = vrot.slane %v1940, %v1981
      %v1983 = vlaneseq
      %v1984 = vshrl.u32 %v1983, 7
      %v1985 = vsub.s32 2, %v1984
      %v1986 = vrot.slane %v1940, %v1985
      %v1987 = vlaneseq
      %v1988 = vshrl.u32 %v1987, 7
      %v1989 = vsub.s32 3, %v1988
      %v1990 = vrot.slane %v1940, %v1989
      %v2051 = vunpack.c.l.b16 %v1888
      %v2052 = vunpack.c.h.b16 %v1888
      %v2053 = vunpack.c.l.b16 %v1889
      %v2054 = vunpack.c.h.b16 %v1889
      %v2055 = vunpack.c.l.b16 %v1890
      %v2056 = vunpack.c.h.b16 %v1890
      %v2057 = vunpack.c.l.b16 %v1891
      %v2058 = vunpack.c.h.b16 %v1891
      %v2059 = vunpack.c.l.b16 %v1892
      %v2060 = vunpack.c.h.b16 %v1892
      %v2061 = vunpack.c.l.b16 %v1893
      %v2062 = vunpack.c.h.b16 %v1893
      %v2063 = vunpack.c.l.b16 %v1894
      %v2064 = vunpack.c.h.b16 %v1894
      %v2065 = vunpack.c.l.b16 %v1895
      %v2066 = vunpack.c.h.b16 %v1895
      %v2067 = vunpack.c.l.b16 %v1896
      %v2068 = vunpack.c.h.b16 %v1896
      %v2069 = vunpack.c.l.b16 %v1897
      %v2070 = vunpack.c.h.b16 %v1897
      %v2071 = vunpack.c.l.b16 %v1898
      %v2072 = vunpack.c.h.b16 %v1898
      %v2073 = vunpack.c.l.b16 %v1899
      %v2074 = vunpack.c.h.b16 %v1899
      %v2075 = vunpack.c.l.b16 %v1900
      %v2076 = vunpack.c.h.b16 %v1900
      %v2077 = vunpack.c.l.b16 %v1901
      %v2078 = vunpack.c.h.b16 %v1901
      %v2079 = vunpack.c.l.b16 %v1902
      %v2080 = vunpack.c.h.b16 %v1902
      %v2081 = vunpack.c.l.b16 %v1903
      %v2082 = vunpack.c.h.b16 %v1903
      %v2083 = vunpack.c.l.b16 %v1904
      %v2084 = vunpack.c.h.b16 %v1904
      %v2085 = vunpack.c.l.b16 %v1905
      %v2086 = vunpack.c.h.b16 %v1905
      %v2087 = vunpack.c.l.b16 %v1906
      %v2088 = vunpack.c.h.b16 %v1906
      %v2089 = vunpack.c.l.b16 %v1907
      %v2090 = vunpack.c.h.b16 %v1907
      %v2091 = vunpack.c.l.b16 %v1908
      %v2092 = vunpack.c.h.b16 %v1908
      %v2093 = vunpack.c.l.b16 %v1909
      %v2094 = vunpack.c.h.b16 %v1909
      %v2095 = vunpack.c.l.b16 %v1910
      %v2096 = vunpack.c.h.b16 %v1910
      %v2097 = vunpack.c.l.b16 %v1911
      %v2098 = vunpack.c.h.b16 %v1911
      %v2099 = vunpack.c.l.b16 %v1912
      %v2100 = vunpack.c.h.b16 %v1912
      %v2101 = vunpack.c.l.b16 %v1913
      %v2102 = vunpack.c.h.b16 %v1913
      %v2103 = vunpack.c.l.b16 %v1914
      %v2104 = vunpack.c.h.b16 %v1914
      %v2105 = vunpack.c.l.b16 %v1915
      %v2106 = vunpack.c.h.b16 %v1915
      %v2107 = vunpack.c.l.b16 %v1916
      %v2108 = vunpack.c.h.b16 %v1916
      %v2109 = vunpack.c.l.b16 %v1917
      %v2110 = vunpack.c.h.b16 %v1917
      %v2111 = vunpack.c.l.b16 %v1918
      %v2112 = vunpack.c.h.b16 %v1918
      %v2113 = vunpack.c.l.b16 %v1919
      %v2114 = vunpack.c.h.b16 %v1919
      %v2115 = vunpack.c.l.b16 %v1920
      %v2116 = vunpack.c.h.b16 %v1920
      %v2117 = vunpack.c.l.b16 %v1921
      %v2118 = vunpack.c.h.b16 %v1921
      %v2119 = vunpack.c.l.b16 %v1922
      %v2120 = vunpack.c.h.b16 %v1922
      %v2121 = vunpack.c.l.b16 %v1923
      %v2122 = vunpack.c.h.b16 %v1923
      %v2123 = vunpack.c.l.b16 %v1924
      %v2124 = vunpack.c.h.b16 %v1924
      %v2125 = vunpack.c.l.b16 %v1925
      %v2126 = vunpack.c.h.b16 %v1925
      %v2127 = vunpack.c.l.b16 %v1926
      %v2128 = vunpack.c.h.b16 %v1926
      %v2129 = vunpack.c.l.b16 %v1927
      %v2130 = vunpack.c.h.b16 %v1927
      %v2131 = vunpack.c.l.b16 %v1928
      %v2132 = vunpack.c.h.b16 %v1928
      %v2133 = vunpack.c.l.b16 %v1929
      %v2134 = vunpack.c.h.b16 %v1929
      %v2135 = vunpack.c.l.b16 %v1930
      %v2136 = vunpack.c.h.b16 %v1930
      %v2137 = vunpack.c.l.b16 %v1931
      %v2138 = vunpack.c.h.b16 %v1931
      %v2139 = vunpack.c.l.b16 %v1932
      %v2140 = vunpack.c.h.b16 %v1932
      %v2141 = vunpack.c.l.b16 %v1933
      %v2142 = vunpack.c.h.b16 %v1933
      %v2143 = vunpack.c.l.b16 %v1934
      %v2144 = vunpack.c.h.b16 %v1934
      %v2145 = vunpack.c.l.b16 %v1935
      %v2146 = vunpack.c.h.b16 %v1935
      %v2147 = vpack.c.b16 %v2063, %v2051
      %v2148 = vpack.c.b16 %v2064, %v2052
      %v2149 = vpack.c.b16 %v2065, %v2053
      %v2150 = vpack.c.b16 %v2066, %v2054
      %v2151 = vpack.c.b16 %v2067, %v2055
      %v2152 = vpack.c.b16 %v2068, %v2056
      %v2153 = vpack.c.b16 %v2069, %v2057
      %v2154 = vpack.c.b16 %v2070, %v2058
      %v2155 = vpack.c.b16 %v2071, %v2059
      %v2156 = vpack.c.b16 %v2072, %v2060
      %v2157 = vpack.c.b16 %v2073, %v2061
      %v2158 = vpack.c.b16 %v2074, %v2062
      %v2159 = vpack.c.b16 %v2087, %v2075
      %v2160 = vpack.c.b16 %v2088, %v2076
      %v2161 = vpack.c.b16 %v2089, %v2077
      %v2162 = vpack.c.b16 %v2090, %v2078
      %v2163 = vpack.c.b16 %v2091, %v2079
      %v2164 = vpack.c.b16 %v2092, %v2080
      %v2165 = vpack.c.b16 %v2093, %v2081
      %v2166 = vpack.c.b16 %v2094, %v2082
      %v2167 = vpack.c.b16 %v2095, %v2083
      %v2168 = vpack.c.b16 %v2096, %v2084
      %v2169 = vpack.c.b16 %v2097, %v2085
      %v2170 = vpack.c.b16 %v2098, %v2086
      %v2171 = vpack.c.b16 %v2111, %v2099
      %v2172 = vpack.c.b16 %v2112, %v2100
      %v2173 = vpack.c.b16 %v2113, %v2101
      %v2174 = vpack.c.b16 %v2114, %v2102
      %v2175 = vpack.c.b16 %v2115, %v2103
      %v2176 = vpack.c.b16 %v2116, %v2104
      %v2177 = vpack.c.b16 %v2117, %v2105
      %v2178 = vpack.c.b16 %v2118, %v2106
      %v2179 = vpack.c.b16 %v2119, %v2107
      %v2180 = vpack.c.b16 %v2120, %v2108
      %v2181 = vpack.c.b16 %v2121, %v2109
      %v2182 = vpack.c.b16 %v2122, %v2110
      %v2183 = vpack.c.b16 %v2135, %v2123
      %v2184 = vpack.c.b16 %v2136, %v2124
      %v2185 = vpack.c.b16 %v2137, %v2125
      %v2186 = vpack.c.b16 %v2138, %v2126
      %v2187 = vpack.c.b16 %v2139, %v2127
      %v2188 = vpack.c.b16 %v2140, %v2128
      %v2189 = vpack.c.b16 %v2141, %v2129
      %v2190 = vpack.c.b16 %v2142, %v2130
      %v2191 = vpack.c.b16 %v2143, %v2131
      %v2192 = vpack.c.b16 %v2144, %v2132
      %v2193 = vpack.c.b16 %v2145, %v2133
      %v2194 = vpack.c.b16 %v2146, %v2134
      %v2244 = vsel %vm1784, %v1936, 0
      %v2247 = vsel %vm1784, %v1937, 0
      %v2250 = vsel %vm1784, %v1938, 0
      %2252 = vmatprep.subr.bf16.mxu0 %v2148
      %2253 = vmatpush1.bf16.msra.mxu0 %v2147
      %2254 = vmatprep.subr.bf16.mxu0 %v2160
      %2255 = vmatpush1.bf16.msra.mxu0 %v2159
      %2256 = vmatprep.subr.bf16.mxu0 %v2172
      %2257 = vmatpush1.bf16.msra.mxu0 %v2171
      %2258 = vmatprep.subr.bf16.mxu0 %v2184
      %2259 = vmatpush1.bf16.msra.mxu0 %v2183
      %2260 = vmatprep.subr.bf16.mxu0 0
      %2261 = vmatpush1.bf16.msra.mxu0 0
      %2262 = vmatprep.subr.bf16.mxu0 0
      %2263 = vmatpush1.bf16.msra.mxu0 0
      %2264 = vmatprep.subr.bf16.mxu0 0
      %2265 = vmatpush1.bf16.msra.mxu0 0
      %2266 = vmatprep.subr.bf16.mxu0 0
      %2267 = vmatpush1.bf16.msra.mxu0 0
      %2268 = vmatprep.subr.bf16.mxu0 0
      %2269 = vmatpush1.bf16.msra.mxu0 0
      %2270 = vmatprep.subr.bf16.mxu0 0
      %2271 = vmatpush1.bf16.msra.mxu0 0
      %2272 = vmatprep.subr.bf16.mxu0 0
      %2273 = vmatpush1.bf16.msra.mxu0 0
      %2274 = vmatprep.subr.bf16.mxu0 0
      %2275 = vmatpush1.bf16.msra.mxu0 0
      %2276 = vmatprep.subr.bf16.mxu0 0
      %2277 = vmatpush1.bf16.msra.mxu0 0
      %2278 = vmatprep.subr.bf16.mxu0 0
      %2279 = vmatpush1.bf16.msra.mxu0 0
      %2280 = vmatprep.subr.bf16.mxu0 0
      %2281 = vmatpush1.bf16.msra.mxu0 0
      %2282 = vmatprep.subr.bf16.mxu0 0
      %2283 = vmatpush1.bf16.msra.mxu0 0
      %2284 = vmatprep.mubr.bf16.mxu0 0
      %2285 = vmatmul.mubr.bf16.gmra.mrb[0].mxu0 %v2244
      %v2286 = vpop.f32.mrb[0].mxu0
      %v2287 = vadd.f32 %v1946, %v2286
      %v2288 = vpop.f32.mrb[0].mxu0
      %v2289 = vadd.f32 %v1950, %v2288
      %v2290 = vpop.f32.mrb[0].mxu0
      %v2291 = vadd.f32 %v1946, %v2290
      %v2292 = vpop.f32.mrb[0].mxu0
      %v2293 = vadd.f32 %v1950, %v2292
      %2294 = vmatprep.mubr.bf16.mxu0 0
      %2295 = vmatmul.mubr.bf16.gmra.mrb[0].mxu0 %v2247
      %v2296 = vpop.f32.mrb[0].mxu0
      %v2297 = vadd.f32 %v1946, %v2296
      %v2298 = vpop.f32.mrb[0].mxu0
      %v2299 = vadd.f32 %v1950, %v2298
      %v2300 = vpop.f32.mrb[0].mxu0
      %v2301 = vadd.f32 %v1946, %v2300
      %v2302 = vpop.f32.mrb[0].mxu0
      %v2303 = vadd.f32 %v1950, %v2302
      %2304 = vmatprep.mubr.bf16.mxu0 0
      %2305 = vmatmul.mubr.bf16.gmra.mrb[0].mxu0 %v2250
      %v2306 = vpop.f32.mrb[0].mxu0
      %v2307 = vadd.f32 %v1946, %v2306
      %v2308 = vpop.f32.mrb[0].mxu0
      %v2309 = vadd.f32 %v1950, %v2308
      %v2310 = vpop.f32.mrb[0].mxu0
      %v2311 = vadd.f32 %v1946, %v2310
      %v2312 = vpop.f32.mrb[0].mxu0
      %v2313 = vadd.f32 %v1950, %v2312
      %2314 = vdwg.mxu0
      %2315 = vmatprep.subr.bf16.mxu0 %v2150
      %2316 = vmatpush1.bf16.msra.mxu0 %v2149
      %2317 = vmatprep.subr.bf16.mxu0 %v2162
      %2318 = vmatpush1.bf16.msra.mxu0 %v2161
      %2319 = vmatprep.subr.bf16.mxu0 %v2174
      %2320 = vmatpush1.bf16.msra.mxu0 %v2173
      %2321 = vmatprep.subr.bf16.mxu0 %v2186
      %2322 = vmatpush1.bf16.msra.mxu0 %v2185
      %2323 = vmatprep.subr.bf16.mxu0 0
      %2324 = vmatpush1.bf16.msra.mxu0 0
      %2325 = vmatprep.subr.bf16.mxu0 0
      %2326 = vmatpush1.bf16.msra.mxu0 0
      %2327 = vmatprep.subr.bf16.mxu0 0
      %2328 = vmatpush1.bf16.msra.mxu0 0
      %2329 = vmatprep.subr.bf16.mxu0 0
      %2330 = vmatpush1.bf16.msra.mxu0 0
      %2331 = vmatprep.subr.bf16.mxu0 0
      %2332 = vmatpush1.bf16.msra.mxu0 0
      %2333 = vmatprep.subr.bf16.mxu0 0
      %2334 = vmatpush1.bf16.msra.mxu0 0
      %2335 = vmatprep.subr.bf16.mxu0 0
      %2336 = vmatpush1.bf16.msra.mxu0 0
      %2337 = vmatprep.subr.bf16.mxu0 0
      %2338 = vmatpush1.bf16.msra.mxu0 0
      %2339 = vmatprep.subr.bf16.mxu0 0
      %2340 = vmatpush1.bf16.msra.mxu0 0
      %2341 = vmatprep.subr.bf16.mxu0 0
      %2342 = vmatpush1.bf16.msra.mxu0 0
      %2343 = vmatprep.subr.bf16.mxu0 0
      %2344 = vmatpush1.bf16.msra.mxu0 0
      %2345 = vmatprep.subr.bf16.mxu0 0
      %2346 = vmatpush1.bf16.msra.mxu0 0
      %2347 = vmatprep.mubr.bf16.mxu0 0
      %2348 = vmatmul.mubr.bf16.gmra.mrb[0].mxu0 %v2244
      %v2349 = vpop.f32.mrb[0].mxu0
      %v2350 = vadd.f32 %v1954, %v2349
      %v2351 = vpop.f32.mrb[0].mxu0
      %v2352 = vadd.f32 %v1958, %v2351
      %v2353 = vpop.f32.mrb[0].mxu0
      %v2354 = vadd.f32 %v1954, %v2353
      %v2355 = vpop.f32.mrb[0].mxu0
      %v2356 = vadd.f32 %v1958, %v2355
      %2357 = vmatprep.mubr.bf16.mxu0 0
      %2358 = vmatmul.mubr.bf16.gmra.mrb[0].mxu0 %v2247
      %v2359 = vpop.f32.mrb[0].mxu0
      %v2360 = vadd.f32 %v1954, %v2359
      %v2361 = vpop.f32.mrb[0].mxu0
      %v2362 = vadd.f32 %v1958, %v2361
      %v2363 = vpop.f32.mrb[0].mxu0
      %v2364 = vadd.f32 %v1954, %v2363
      %v2365 = vpop.f32.mrb[0].mxu0
      %v2366 = vadd.f32 %v1958, %v2365
      %2367 = vmatprep.mubr.bf16.mxu0 0
      %2368 = vmatmul.mubr.bf16.gmra.mrb[0].mxu0 %v2250
      %v2369 = vpop.f32.mrb[0].mxu0
      %v2370 = vadd.f32 %v1954, %v2369
      %v2371 = vpop.f32.mrb[0].mxu0
      %v2372 = vadd.f32 %v1958, %v2371
      %v2373 = vpop.f32.mrb[0].mxu0
      %v2374 = vadd.f32 %v1954, %v2373
      %v2375 = vpop.f32.mrb[0].mxu0
      %v2376 = vadd.f32 %v1958, %v2375
      %2377 = vdwg.mxu0
      %2378 = vmatprep.subr.bf16.mxu0 %v2152
      %2379 = vmatpush1.bf16.msra.mxu0 %v2151
      %2380 = vmatprep.subr.bf16.mxu0 %v2164
      %2381 = vmatpush1.bf16.msra.mxu0 %v2163
      %2382 = vmatprep.subr.bf16.mxu0 %v2176
      %2383 = vmatpush1.bf16.msra.mxu0 %v2175
      %2384 = vmatprep.subr.bf16.mxu0 %v2188
      %2385 = vmatpush1.bf16.msra.mxu0 %v2187
      %2386 = vmatprep.subr.bf16.mxu0 0
      %2387 = vmatpush1.bf16.msra.mxu0 0
      %2388 = vmatprep.subr.bf16.mxu0 0
      %2389 = vmatpush1.bf16.msra.mxu0 0
      %2390 = vmatprep.subr.bf16.mxu0 0
      %2391 = vmatpush1.bf16.msra.mxu0 0
      %2392 = vmatprep.subr.bf16.mxu0 0
      %2393 = vmatpush1.bf16.msra.mxu0 0
      %2394 = vmatprep.subr.bf16.mxu0 0
      %2395 = vmatpush1.bf16.msra.mxu0 0
      %2396 = vmatprep.subr.bf16.mxu0 0
      %2397 = vmatpush1.bf16.msra.mxu0 0
      %2398 = vmatprep.subr.bf16.mxu0 0
      %2399 = vmatpush1.bf16.msra.mxu0 0
      %2400 = vmatprep.subr.bf16.mxu0 0
      %2401 = vmatpush1.bf16.msra.mxu0 0
      %2402 = vmatprep.subr.bf16.mxu0 0
      %2403 = vmatpush1.bf16.msra.mxu0 0
      %2404 = vmatprep.subr.bf16.mxu0 0
      %2405 = vmatpush1.bf16.msra.mxu0 0
      %2406 = vmatprep.subr.bf16.mxu0 0
      %2407 = vmatpush1.bf16.msra.mxu0 0
      %2408 = vmatprep.subr.bf16.mxu0 0
      %2409 = vmatpush1.bf16.msra.mxu0 0
      %2410 = vmatprep.mubr.bf16.mxu0 0
      %2411 = vmatmul.mubr.bf16.gmra.mrb[0].mxu0 %v2244
      %v2412 = vpop.f32.mrb[0].mxu0
      %v2413 = vadd.f32 %v1962, %v2412
      %v2414 = vpop.f32.mrb[0].mxu0
      %v2415 = vadd.f32 %v1966, %v2414
      %v2416 = vpop.f32.mrb[0].mxu0
      %v2417 = vadd.f32 %v1962, %v2416
      %v2418 = vpop.f32.mrb[0].mxu0
      %v2419 = vadd.f32 %v1966, %v2418
      %2420 = vmatprep.mubr.bf16.mxu0 0
      %2421 = vmatmul.mubr.bf16.gmra.mrb[0].mxu0 %v2247
      %v2422 = vpop.f32.mrb[0].mxu0
      %v2423 = vadd.f32 %v1962, %v2422
      %v2424 = vpop.f32.mrb[0].mxu0
      %v2425 = vadd.f32 %v1966, %v2424
      %v2426 = vpop.f32.mrb[0].mxu0
      %v2427 = vadd.f32 %v1962, %v2426
      %v2428 = vpop.f32.mrb[0].mxu0
      %v2429 = vadd.f32 %v1966, %v2428
      %2430 = vmatprep.mubr.bf16.mxu0 0
      %2431 = vmatmul.mubr.bf16.gmra.mrb[0].mxu0 %v2250
      %v2432 = vpop.f32.mrb[0].mxu0
      %v2433 = vadd.f32 %v1962, %v2432
      %v2434 = vpop.f32.mrb[0].mxu0
      %v2435 = vadd.f32 %v1966, %v2434
      %v2436 = vpop.f32.mrb[0].mxu0
      %v2437 = vadd.f32 %v1962, %v2436
      %v2438 = vpop.f32.mrb[0].mxu0
      %v2439 = vadd.f32 %v1966, %v2438
      %2440 = vdwg.mxu0
      %2441 = vmatprep.subr.bf16.mxu0 %v2154
      %2442 = vmatpush1.bf16.msra.mxu0 %v2153
      %2443 = vmatprep.subr.bf16.mxu0 %v2166
      %2444 = vmatpush1.bf16.msra.mxu0 %v2165
      %2445 = vmatprep.subr.bf16.mxu0 %v2178
      %2446 = vmatpush1.bf16.msra.mxu0 %v2177
      %2447 = vmatprep.subr.bf16.mxu0 %v2190
      %2448 = vmatpush1.bf16.msra.mxu0 %v2189
      %2449 = vmatprep.subr.bf16.mxu0 0
      %2450 = vmatpush1.bf16.msra.mxu0 0
      %2451 = vmatprep.subr.bf16.mxu0 0
      %2452 = vmatpush1.bf16.msra.mxu0 0
      %2453 = vmatprep.subr.bf16.mxu0 0
      %2454 = vmatpush1.bf16.msra.mxu0 0
      %2455 = vmatprep.subr.bf16.mxu0 0
      %2456 = vmatpush1.bf16.msra.mxu0 0
      %2457 = vmatprep.subr.bf16.mxu0 0
      %2458 = vmatpush1.bf16.msra.mxu0 0
      %2459 = vmatprep.subr.bf16.mxu0 0
      %2460 = vmatpush1.bf16.msra.mxu0 0
      %2461 = vmatprep.subr.bf16.mxu0 0
      %2462 = vmatpush1.bf16.msra.mxu0 0
      %2463 = vmatprep.subr.bf16.mxu0 0
      %2464 = vmatpush1.bf16.msra.mxu0 0
      %2465 = vmatprep.subr.bf16.mxu0 0
      %2466 = vmatpush1.bf16.msra.mxu0 0
      %2467 = vmatprep.subr.bf16.mxu0 0
      %2468 = vmatpush1.bf16.msra.mxu0 0
      %2469 = vmatprep.subr.bf16.mxu0 0
      %2470 = vmatpush1.bf16.msra.mxu0 0
      %2471 = vmatprep.subr.bf16.mxu0 0
      %2472 = vmatpush1.bf16.msra.mxu0 0
      %2473 = vmatprep.mubr.bf16.mxu0 0
      %2474 = vmatmul.mubr.bf16.gmra.mrb[0].mxu0 %v2244
      %v2475 = vpop.f32.mrb[0].mxu0
      %v2476 = vadd.f32 %v1970, %v2475
      %v2477 = vpop.f32.mrb[0].mxu0
      %v2478 = vadd.f32 %v1974, %v2477
      %v2479 = vpop.f32.mrb[0].mxu0
      %v2480 = vadd.f32 %v1970, %v2479
      %v2481 = vpop.f32.mrb[0].mxu0
      %v2482 = vadd.f32 %v1974, %v2481
      %2483 = vmatprep.mubr.bf16.mxu0 0
      %2484 = vmatmul.mubr.bf16.gmra.mrb[0].mxu0 %v2247
      %v2485 = vpop.f32.mrb[0].mxu0
      %v2486 = vadd.f32 %v1970, %v2485
      %v2487 = vpop.f32.mrb[0].mxu0
      %v2488 = vadd.f32 %v1974, %v2487
      %v2489 = vpop.f32.mrb[0].mxu0
      %v2490 = vadd.f32 %v1970, %v2489
      %v2491 = vpop.f32.mrb[0].mxu0
      %v2492 = vadd.f32 %v1974, %v2491
      %2493 = vmatprep.mubr.bf16.mxu0 0
      %2494 = vmatmul.mubr.bf16.gmra.mrb[0].mxu0 %v2250
      %v2495 = vpop.f32.mrb[0].mxu0
      %v2496 = vadd.f32 %v1970, %v2495
      %v2497 = vpop.f32.mrb[0].mxu0
      %v2498 = vadd.f32 %v1974, %v2497
      %v2499 = vpop.f32.mrb[0].mxu0
      %v2500 = vadd.f32 %v1970, %v2499
      %v2501 = vpop.f32.mrb[0].mxu0
      %v2502 = vadd.f32 %v1974, %v2501
      %2503 = vdwg.mxu0
      %2504 = vmatprep.subr.bf16.mxu0 %v2156
      %2505 = vmatpush1.bf16.msra.mxu0 %v2155
      %2506 = vmatprep.subr.bf16.mxu0 %v2168
      %2507 = vmatpush1.bf16.msra.mxu0 %v2167
      %2508 = vmatprep.subr.bf16.mxu0 %v2180
      %2509 = vmatpush1.bf16.msra.mxu0 %v2179
      %2510 = vmatprep.subr.bf16.mxu0 %v2192
      %2511 = vmatpush1.bf16.msra.mxu0 %v2191
      %2512 = vmatprep.subr.bf16.mxu0 0
      %2513 = vmatpush1.bf16.msra.mxu0 0
      %2514 = vmatprep.subr.bf16.mxu0 0
      %2515 = vmatpush1.bf16.msra.mxu0 0
      %2516 = vmatprep.subr.bf16.mxu0 0
      %2517 = vmatpush1.bf16.msra.mxu0 0
      %2518 = vmatprep.subr.bf16.mxu0 0
      %2519 = vmatpush1.bf16.msra.mxu0 0
      %2520 = vmatprep.subr.bf16.mxu0 0
      %2521 = vmatpush1.bf16.msra.mxu0 0
      %2522 = vmatprep.subr.bf16.mxu0 0
      %2523 = vmatpush1.bf16.msra.mxu0 0
      %2524 = vmatprep.subr.bf16.mxu0 0
      %2525 = vmatpush1.bf16.msra.mxu0 0
      %2526 = vmatprep.subr.bf16.mxu0 0
      %2527 = vmatpush1.bf16.msra.mxu0 0
      %2528 = vmatprep.subr.bf16.mxu0 0
      %2529 = vmatpush1.bf16.msra.mxu0 0
      %2530 = vmatprep.subr.bf16.mxu0 0
      %2531 = vmatpush1.bf16.msra.mxu0 0
      %2532 = vmatprep.subr.bf16.mxu0 0
      %2533 = vmatpush1.bf16.msra.mxu0 0
      %2534 = vmatprep.subr.bf16.mxu0 0
      %2535 = vmatpush1.bf16.msra.mxu0 0
      %2536 = vmatprep.mubr.bf16.mxu0 0
      %2537 = vmatmul.mubr.bf16.gmra.mrb[0].mxu0 %v2244
      %v2538 = vpop.f32.mrb[0].mxu0
      %v2539 = vadd.f32 %v1978, %v2538
      %v2540 = vpop.f32.mrb[0].mxu0
      %v2541 = vadd.f32 %v1982, %v2540
      %v2542 = vpop.f32.mrb[0].mxu0
      %v2543 = vadd.f32 %v1978, %v2542
      %v2544 = vpop.f32.mrb[0].mxu0
      %v2545 = vadd.f32 %v1982, %v2544
      %2546 = vmatprep.mubr.bf16.mxu0 0
      %2547 = vmatmul.mubr.bf16.gmra.mrb[0].mxu0 %v2247
      %v2548 = vpop.f32.mrb[0].mxu0
      %v2549 = vadd.f32 %v1978, %v2548
      %v2550 = vpop.f32.mrb[0].mxu0
      %v2551 = vadd.f32 %v1982, %v2550
      %v2552 = vpop.f32.mrb[0].mxu0
      %v2553 = vadd.f32 %v1978, %v2552
      %v2554 = vpop.f32.mrb[0].mxu0
      %v2555 = vadd.f32 %v1982, %v2554
      %2556 = vmatprep.mubr.bf16.mxu0 0
      %2557 = vmatmul.mubr.bf16.gmra.mrb[0].mxu0 %v2250
      %v2558 = vpop.f32.mrb[0].mxu0
      %v2559 = vadd.f32 %v1978, %v2558
      %v2560 = vpop.f32.mrb[0].mxu0
      %v2561 = vadd.f32 %v1982, %v2560
      %v2562 = vpop.f32.mrb[0].mxu0
      %v2563 = vadd.f32 %v1978, %v2562
      %v2564 = vpop.f32.mrb[0].mxu0
      %v2565 = vadd.f32 %v1982, %v2564
      %2566 = vdwg.mxu0
      %2567 = vmatprep.subr.bf16.mxu0 %v2158
      %2568 = vmatpush1.bf16.msra.mxu0 %v2157
      %2569 = vmatprep.subr.bf16.mxu0 %v2170
      %2570 = vmatpush1.bf16.msra.mxu0 %v2169
      %2571 = vmatprep.subr.bf16.mxu0 %v2182
      %2572 = vmatpush1.bf16.msra.mxu0 %v2181
      %2573 = vmatprep.subr.bf16.mxu0 %v2194
      %2574 = vmatpush1.bf16.msra.mxu0 %v2193
      %2575 = vmatprep.subr.bf16.mxu0 0
      %2576 = vmatpush1.bf16.msra.mxu0 0
      %2577 = vmatprep.subr.bf16.mxu0 0
      %2578 = vmatpush1.bf16.msra.mxu0 0
      %2579 = vmatprep.subr.bf16.mxu0 0
      %2580 = vmatpush1.bf16.msra.mxu0 0
      %2581 = vmatprep.subr.bf16.mxu0 0
      %2582 = vmatpush1.bf16.msra.mxu0 0
      %2583 = vmatprep.subr.bf16.mxu0 0
      %2584 = vmatpush1.bf16.msra.mxu0 0
      %2585 = vmatprep.subr.bf16.mxu0 0
      %2586 = vmatpush1.bf16.msra.mxu0 0
      %2587 = vmatprep.subr.bf16.mxu0 0
      %2588 = vmatpush1.bf16.msra.mxu0 0
      %2589 = vmatprep.subr.bf16.mxu0 0
      %2590 = vmatpush1.bf16.msra.mxu0 0
      %2591 = vmatprep.subr.bf16.mxu0 0
      %2592 = vmatpush1.bf16.msra.mxu0 0
      %2593 = vmatprep.subr.bf16.mxu0 0
      %2594 = vmatpush1.bf16.msra.mxu0 0
      %2595 = vmatprep.subr.bf16.mxu0 0
      %2596 = vmatpush1.bf16.msra.mxu0 0
      %2597 = vmatprep.subr.bf16.mxu0 0
      %2598 = vmatpush1.bf16.msra.mxu0 0
      %2599 = vmatprep.mubr.bf16.mxu0 0
      %2600 = vmatmul.mubr.bf16.gmra.mrb[0].mxu0 %v2244
      %v2601 = vpop.f32.mrb[0].mxu0
      %v2602 = vadd.f32 %v1986, %v2601
      %v2603 = vpop.f32.mrb[0].mxu0
      %v2604 = vadd.f32 %v1990, %v2603
      %v2605 = vpop.f32.mrb[0].mxu0
      %v2606 = vadd.f32 %v1986, %v2605
      %v2607 = vpop.f32.mrb[0].mxu0
      %v2608 = vadd.f32 %v1990, %v2607
      %2609 = vmatprep.mubr.bf16.mxu0 0
      %2610 = vmatmul.mubr.bf16.gmra.mrb[0].mxu0 %v2247
      %v2611 = vpop.f32.mrb[0].mxu0
      %v2612 = vadd.f32 %v1986, %v2611
      %v2613 = vpop.f32.mrb[0].mxu0
      %v2614 = vadd.f32 %v1990, %v2613
      %v2615 = vpop.f32.mrb[0].mxu0
      %v2616 = vadd.f32 %v1986, %v2615
      %v2617 = vpop.f32.mrb[0].mxu0
      %v2618 = vadd.f32 %v1990, %v2617
      %2619 = vmatprep.mubr.bf16.mxu0 0
      %2620 = vmatmul.mubr.bf16.gmra.mrb[0].mxu0 %v2250
      %v2621 = vpop.f32.mrb[0].mxu0
      %v2622 = vadd.f32 %v1986, %v2621
      %v2623 = vpop.f32.mrb[0].mxu0
      %v2624 = vadd.f32 %v1990, %v2623
      %v2625 = vpop.f32.mrb[0].mxu0
      %v2626 = vadd.f32 %v1986, %v2625
      %v2627 = vpop.f32.mrb[0].mxu0
      %v2628 = vadd.f32 %v1990, %v2627
      %2629 = vdwg.mxu0
      %v2630 = vld [vmem:[%s11] sm:$0xff]
      %v2631 = vld [vmem:[%s11 + $0x8] sm:$0xff]
      %v2632 = vld [vmem:[%s11 + $0x10] sm:$0xff]
      %v2633 = vld [vmem:[%s11 + $0x18] sm:$0xff]
      %v2634 = vld [vmem:[%s11 + $0x20] sm:$0xff]
      %v2635 = vld [vmem:[%s11 + $0x28] sm:$0xff]
      %v2636 = vpack.c.bf16 %v2291, %v2287
      %v2637 = vpack.c.bf16 %v2301, %v2297
      %v2638 = vpack.c.bf16 %v2311, %v2307
      %v2639 = vpack.c.bf16 %v2417, %v2413
      %v2640 = vpack.c.bf16 %v2427, %v2423
      %v2641 = vpack.c.bf16 %v2437, %v2433
      %2642 = vmatprep.subr.bf16.mxu0 0
      %2643 = vmatpush1.bf16.xpose.msra.mxu0 %v2639
      %2644 = vmatprep.subr.bf16.mxu0 0
      %2645 = vmatpush1.bf16.xpose.msra.mxu0 %v2640
      %2646 = vmatprep.subr.bf16.mxu0 0
      %2647 = vmatpush1.bf16.xpose.msra.mxu0 %v2641
      %2648 = vmatprep.subr.bf16.mxu0 0
      %2649 = vmatpush1.bf16.xpose.msra.mxu0 0
      %2650 = vmatprep.subr.bf16.mxu0 0
      %2651 = vmatpush1.bf16.xpose.msra.mxu0 0
      %2652 = vmatprep.subr.bf16.mxu0 0
      %2653 = vmatpush1.bf16.xpose.msra.mxu0 0
      %2654 = vmatprep.subr.bf16.mxu0 0
      %2655 = vmatpush1.bf16.xpose.msra.mxu0 0
      %2656 = vmatprep.subr.bf16.mxu0 0
      %2657 = vmatpush1.bf16.xpose.msra.mxu0 0
      %2658 = vmatprep.subr.bf16.mxu0 0
      %2659 = vmatpush1.bf16.xpose.msra.mxu0 0
      %2660 = vmatprep.subr.bf16.mxu0 0
      %2661 = vmatpush1.bf16.xpose.msra.mxu0 0
      %2662 = vmatprep.subr.bf16.mxu0 0
      %2663 = vmatpush1.bf16.xpose.msra.mxu0 0
      %2664 = vmatprep.subr.bf16.mxu0 0
      %2665 = vmatpush1.bf16.xpose.msra.mxu0 0
      %2666 = vmatprep.subr.bf16.mxu0 0
      %2667 = vmatpush1.bf16.xpose.msra.mxu0 0
      %2668 = vmatprep.subr.bf16.mxu0 0
      %2669 = vmatpush1.bf16.xpose.msra.mxu0 0
      %2670 = vmatprep.subr.bf16.mxu0 0
      %2671 = vmatpush1.bf16.xpose.msra.mxu0 0
      %2672 = vmatprep.subr.bf16.mxu0 0
      %2673 = vmatpush1.bf16.xpose.msra.mxu0 0
      %2674 = vmatprep.mubr.bf16.mxu0 0
      %2675 = vmatmul.mubr.bf16.gmra.mrb[0].mxu0 %v2636
      %v2676 = vpop.f32.mrb[0].mxu0
      %v2677 = vadd.f32 0.0, %v2676
      %v2678 = vpop.f32.mrb[0].mxu0
      %v2679 = vpop.f32.mrb[0].mxu0
      %v2680 = vadd.f32 0.0, %v2679
      %v2681 = vpop.f32.mrb[0].mxu0
      %2682 = vmatprep.mubr.bf16.mxu0 0
      %2683 = vmatmul.mubr.bf16.gmra.mrb[0].mxu0 %v2637
      %v2684 = vpop.f32.mrb[0].mxu0
      %v2685 = vadd.f32 0.0, %v2684
      %v2686 = vpop.f32.mrb[0].mxu0
      %v2687 = vpop.f32.mrb[0].mxu0
      %v2688 = vadd.f32 0.0, %v2687
      %v2689 = vpop.f32.mrb[0].mxu0
      %2690 = vmatprep.mubr.bf16.mxu0 0
      %2691 = vmatmul.mubr.bf16.gmra.mrb[0].mxu0 %v2638
      %v2692 = vpop.f32.mrb[0].mxu0
      %v2693 = vadd.f32 0.0, %v2692
      %v2694 = vpop.f32.mrb[0].mxu0
      %v2695 = vpop.f32.mrb[0].mxu0
      %v2696 = vadd.f32 0.0, %v2695
      %v2697 = vpop.f32.mrb[0].mxu0
      %2698 = vdwg.mxu0
      %v2699 = vmul.f32 %v2677, 0.25
      %v2700 = vmul.f32 %v2680, 0.25
      %v2701 = vmul.f32 %v2685, 0.25
      %v2702 = vmul.f32 %v2688, 0.25
      %v2703 = vmul.f32 %v2693, 0.25
      %v2704 = vmul.f32 %v2696, 0.25
      %v2705 = vadd.f32 %v2699, %v2630
      %v2706 = vadd.f32 %v2700, %v2631
      %v2707 = vadd.f32 %v2701, %v2632
      %v2708 = vadd.f32 %v2702, %v2633
      %v2709 = vadd.f32 %v2703, %v2634
      %v2710 = vadd.f32 %v2704, %v2635
      %vm2711 = vcmask 392192
      %v2712 = vsel %vm2711, %v2705, -inf
      %2713 = vmax.xlane.f32.xlu0 %v2712
      %v2714 = vpop.xlane.xlu0 %2713
      %v2715 = vsel %vm2711, %v2706, -inf
      %2716 = vmax.xlane.f32.xlu0 %v2715
      %v2717 = vpop.xlane.xlu0 %2716
      %v2718 = vsel %vm2711, %v2707, -inf
      %2719 = vmax.xlane.f32.xlu0 %v2718
      %v2720 = vpop.xlane.xlu0 %2719
      %v2721 = vsel %vm2711, %v2708, -inf
      %2722 = vmax.xlane.f32.xlu0 %v2721
      %v2723 = vpop.xlane.xlu0 %2722
      %v2724 = vsel %vm2711, %v2709, -inf
      %2725 = vmax.xlane.f32.xlu0 %v2724
      %v2726 = vpop.xlane.xlu0 %2725
      %v2727 = vsel %vm2711, %v2710, -inf
      %2728 = vmax.xlane.f32.xlu0 %v2727
      %v2729 = vpop.xlane.xlu0 %2728
      %v2730 = vsub.f32 %v2705, %v2714
      %v2731 = vsub.f32 %v2706, %v2717
      %v2732 = vsub.f32 %v2707, %v2720
      %v2733 = vsub.f32 %v2708, %v2723
      %v2734 = vsub.f32 %v2709, %v2726
      %v2735 = vsub.f32 %v2710, %v2729
      %v2736 = vmul.f32 %v2730, 1.442695
      %v2737 = vpow.pop %v2736
      %v2738 = vmul.f32 %v2731, 1.442695
      %v2739 = vpow.pop %v2738
      %v2740 = vmul.f32 %v2732, 1.442695
      %v2741 = vpow.pop %v2740
      %v2742 = vmul.f32 %v2733, 1.442695
      %v2743 = vpow.pop %v2742
      %v2744 = vmul.f32 %v2734, 1.442695
      %v2745 = vpow.pop %v2744
      %v2746 = vmul.f32 %v2735, 1.442695
      %v2747 = vpow.pop %v2746
      %v2748 = vsel %vm2711, %v2737, 0.0
      %2749 = vadd.xlane.f32.xlu0 %v2748
      %v2750 = vpop.xlane.xlu0 %2749
      %v2751 = vsel %vm2711, %v2739, 0.0
      %2752 = vadd.xlane.f32.xlu0 %v2751
      %v2753 = vpop.xlane.xlu0 %2752
      %v2754 = vsel %vm2711, %v2741, 0.0
      %2755 = vadd.xlane.f32.xlu0 %v2754
      %v2756 = vpop.xlane.xlu0 %2755
      %v2757 = vsel %vm2711, %v2743, 0.0
      %2758 = vadd.xlane.f32.xlu0 %v2757
      %v2759 = vpop.xlane.xlu0 %2758
      %v2760 = vsel %vm2711, %v2745, 0.0
      %2761 = vadd.xlane.f32.xlu0 %v2760
      %v2762 = vpop.xlane.xlu0 %2761
      %v2763 = vsel %vm2711, %v2747, 0.0
      %2764 = vadd.xlane.f32.xlu0 %v2763
      %v2765 = vpop.xlane.xlu0 %2764
      %v2766 = vrcp.pop %v2750
      %v2767 = vrcp.pop %v2753
      %v2768 = vrcp.pop %v2756
      %v2769 = vrcp.pop %v2759
      %v2770 = vrcp.pop %v2762
      %v2771 = vrcp.pop %v2765
      %v2772 = vmul.f32 %v2737, %v2766
      %v2773 = vmul.f32 %v2739, %v2767
      %v2774 = vmul.f32 %v2741, %v2768
      %v2775 = vmul.f32 %v2743, %v2769
      %v2776 = vmul.f32 %v2745, %v2770
      %v2777 = vmul.f32 %v2747, %v2771
      %v2778 = vpack.c.bf16 %v2773, %v2772
      %v2779 = vpack.c.bf16 %v2775, %v2774
      %v2780 = vpack.c.bf16 %v2777, %v2776
      %v2781 = vpack.c.bf16 %v2543, %v2539
      %v2782 = vpack.c.bf16 %v2553, %v2549
      %v2783 = vpack.c.bf16 %v2563, %v2559
      %v2785 = vsel %vm2711, %v2778, 0
      %v2788 = vsel %vm2711, %v2779, 0
      %v2791 = vsel %vm2711, %v2780, 0
      %2793 = vmatprep.subr.bf16.mxu0 0
      %2794 = vmatpush1.bf16.msra.mxu0 %v2781
      %2795 = vmatprep.subr.bf16.mxu0 0
      %2796 = vmatpush1.bf16.msra.mxu0 %v2782
      %2797 = vmatprep.subr.bf16.mxu0 0
      %2798 = vmatpush1.bf16.msra.mxu0 %v2783
      %2799 = vmatprep.subr.bf16.mxu0 0
      %2800 = vmatpush1.bf16.msra.mxu0 0
      %2801 = vmatprep.subr.bf16.mxu0 0
      %2802 = vmatpush1.bf16.msra.mxu0 0
      %2803 = vmatprep.subr.bf16.mxu0 0
      %2804 = vmatpush1.bf16.msra.mxu0 0
      %2805 = vmatprep.subr.bf16.mxu0 0
      %2806 = vmatpush1.bf16.msra.mxu0 0
      %2807 = vmatprep.subr.bf16.mxu0 0
      %2808 = vmatpush1.bf16.msra.mxu0 0
      %2809 = vmatprep.subr.bf16.mxu0 0
      %2810 = vmatpush1.bf16.msra.mxu0 0
      %2811 = vmatprep.subr.bf16.mxu0 0
      %2812 = vmatpush1.bf16.msra.mxu0 0
      %2813 = vmatprep.subr.bf16.mxu0 0
      %2814 = vmatpush1.bf16.msra.mxu0 0
      %2815 = vmatprep.subr.bf16.mxu0 0
      %2816 = vmatpush1.bf16.msra.mxu0 0
      %2817 = vmatprep.subr.bf16.mxu0 0
      %2818 = vmatpush1.bf16.msra.mxu0 0
      %2819 = vmatprep.subr.bf16.mxu0 0
      %2820 = vmatpush1.bf16.msra.mxu0 0
      %2821 = vmatprep.subr.bf16.mxu0 0
      %2822 = vmatpush1.bf16.msra.mxu0 0
      %2823 = vmatprep.subr.bf16.mxu0 0
      %2824 = vmatpush1.bf16.msra.mxu0 0
      %2825 = vmatprep.mubr.bf16.mxu0 0
      %2826 = vmatmul.mubr.bf16.gmra.mrb[0].mxu0 %v2785
      %v2827 = vpop.f32.mrb[0].mxu0
      %v2828 = vadd.f32 0.0, %v2827
      %v2829 = vpop.f32.mrb[0].mxu0
      %v2830 = vpop.f32.mrb[0].mxu0
      %v2831 = vadd.f32 0.0, %v2830
      %v2832 = vpop.f32.mrb[0].mxu0
      %2833 = vmatprep.mubr.bf16.mxu0 0
      %2834 = vmatmul.mubr.bf16.gmra.mrb[0].mxu0 %v2788
      %v2835 = vpop.f32.mrb[0].mxu0
      %v2836 = vadd.f32 0.0, %v2835
      %v2837 = vpop.f32.mrb[0].mxu0
      %v2838 = vpop.f32.mrb[0].mxu0
      %v2839 = vadd.f32 0.0, %v2838
      %v2840 = vpop.f32.mrb[0].mxu0
      %2841 = vmatprep.mubr.bf16.mxu0 0
      %2842 = vmatmul.mubr.bf16.gmra.mrb[0].mxu0 %v2791
      %v2843 = vpop.f32.mrb[0].mxu0
      %v2844 = vadd.f32 0.0, %v2843
      %v2845 = vpop.f32.mrb[0].mxu0
      %v2846 = vpop.f32.mrb[0].mxu0
      %v2847 = vadd.f32 0.0, %v2846
      %v2848 = vpop.f32.mrb[0].mxu0
      %2849 = vdwg.mxu0
      %v2850 = vpack.c.bf16 %v2293, %v2289
      %v2851 = vpack.c.bf16 %v2303, %v2299
      %v2852 = vpack.c.bf16 %v2313, %v2309
      %v2853 = vpack.c.bf16 %v2419, %v2415
      %v2854 = vpack.c.bf16 %v2429, %v2425
      %v2855 = vpack.c.bf16 %v2439, %v2435
      %2856 = vmatprep.subr.bf16.mxu0 0
      %2857 = vmatpush1.bf16.xpose.msra.mxu0 %v2853
      %2858 = vmatprep.subr.bf16.mxu0 0
      %2859 = vmatpush1.bf16.xpose.msra.mxu0 %v2854
      %2860 = vmatprep.subr.bf16.mxu0 0
      %2861 = vmatpush1.bf16.xpose.msra.mxu0 %v2855
      %2862 = vmatprep.subr.bf16.mxu0 0
      %2863 = vmatpush1.bf16.xpose.msra.mxu0 0
      %2864 = vmatprep.subr.bf16.mxu0 0
      %2865 = vmatpush1.bf16.xpose.msra.mxu0 0
      %2866 = vmatprep.subr.bf16.mxu0 0
      %2867 = vmatpush1.bf16.xpose.msra.mxu0 0
      %2868 = vmatprep.subr.bf16.mxu0 0
      %2869 = vmatpush1.bf16.xpose.msra.mxu0 0
      %2870 = vmatprep.subr.bf16.mxu0 0
      %2871 = vmatpush1.bf16.xpose.msra.mxu0 0
      %2872 = vmatprep.subr.bf16.mxu0 0
      %2873 = vmatpush1.bf16.xpose.msra.mxu0 0
      %2874 = vmatprep.subr.bf16.mxu0 0
      %2875 = vmatpush1.bf16.xpose.msra.mxu0 0
      %2876 = vmatprep.subr.bf16.mxu0 0
      %2877 = vmatpush1.bf16.xpose.msra.mxu0 0
      %2878 = vmatprep.subr.bf16.mxu0 0
      %2879 = vmatpush1.bf16.xpose.msra.mxu0 0
      %2880 = vmatprep.subr.bf16.mxu0 0
      %2881 = vmatpush1.bf16.xpose.msra.mxu0 0
      %2882 = vmatprep.subr.bf16.mxu0 0
      %2883 = vmatpush1.bf16.xpose.msra.mxu0 0
      %2884 = vmatprep.subr.bf16.mxu0 0
      %2885 = vmatpush1.bf16.xpose.msra.mxu0 0
      %2886 = vmatprep.subr.bf16.mxu0 0
      %2887 = vmatpush1.bf16.xpose.msra.mxu0 0
      %2888 = vmatprep.mubr.bf16.mxu0 0
      %2889 = vmatmul.mubr.bf16.gmra.mrb[0].mxu0 %v2850
      %v2890 = vpop.f32.mrb[0].mxu0
      %v2891 = vadd.f32 0.0, %v2890
      %v2892 = vpop.f32.mrb[0].mxu0
      %v2893 = vpop.f32.mrb[0].mxu0
      %v2894 = vadd.f32 0.0, %v2893
      %v2895 = vpop.f32.mrb[0].mxu0
      %2896 = vmatprep.mubr.bf16.mxu0 0
      %2897 = vmatmul.mubr.bf16.gmra.mrb[0].mxu0 %v2851
      %v2898 = vpop.f32.mrb[0].mxu0
      %v2899 = vadd.f32 0.0, %v2898
      %v2900 = vpop.f32.mrb[0].mxu0
      %v2901 = vpop.f32.mrb[0].mxu0
      %v2902 = vadd.f32 0.0, %v2901
      %v2903 = vpop.f32.mrb[0].mxu0
      %2904 = vmatprep.mubr.bf16.mxu0 0
      %2905 = vmatmul.mubr.bf16.gmra.mrb[0].mxu0 %v2852
      %v2906 = vpop.f32.mrb[0].mxu0
      %v2907 = vadd.f32 0.0, %v2906
      %v2908 = vpop.f32.mrb[0].mxu0
      %v2909 = vpop.f32.mrb[0].mxu0
      %v2910 = vadd.f32 0.0, %v2909
      %v2911 = vpop.f32.mrb[0].mxu0
      %2912 = vdwg.mxu0
      %v2913 = vmul.f32 %v2891, 0.25
      %v2914 = vmul.f32 %v2894, 0.25
      %v2915 = vmul.f32 %v2899, 0.25
      %v2916 = vmul.f32 %v2902, 0.25
      %v2917 = vmul.f32 %v2907, 0.25
      %v2918 = vmul.f32 %v2910, 0.25
      %v2919 = vadd.f32 %v2913, %v2630
      %v2920 = vadd.f32 %v2914, %v2631
      %v2921 = vadd.f32 %v2915, %v2632
      %v2922 = vadd.f32 %v2916, %v2633
      %v2923 = vadd.f32 %v2917, %v2634
      %v2924 = vadd.f32 %v2918, %v2635
      %v2925 = vsel %vm2711, %v2919, -inf
      %2926 = vmax.xlane.f32.xlu0 %v2925
      %v2927 = vpop.xlane.xlu0 %2926
      %v2928 = vsel %vm2711, %v2920, -inf
      %2929 = vmax.xlane.f32.xlu0 %v2928
      %v2930 = vpop.xlane.xlu0 %2929
      %v2931 = vsel %vm2711, %v2921, -inf
      %2932 = vmax.xlane.f32.xlu0 %v2931
      %v2933 = vpop.xlane.xlu0 %2932
      %v2934 = vsel %vm2711, %v2922, -inf
      %2935 = vmax.xlane.f32.xlu0 %v2934
      %v2936 = vpop.xlane.xlu0 %2935
      %v2937 = vsel %vm2711, %v2923, -inf
      %2938 = vmax.xlane.f32.xlu0 %v2937
      %v2939 = vpop.xlane.xlu0 %2938
      %v2940 = vsel %vm2711, %v2924, -inf
      %2941 = vmax.xlane.f32.xlu0 %v2940
      %v2942 = vpop.xlane.xlu0 %2941
      %v2943 = vsub.f32 %v2919, %v2927
      %v2944 = vsub.f32 %v2920, %v2930
      %v2945 = vsub.f32 %v2921, %v2933
      %v2946 = vsub.f32 %v2922, %v2936
      %v2947 = vsub.f32 %v2923, %v2939
      %v2948 = vsub.f32 %v2924, %v2942
      %v2949 = vmul.f32 %v2943, 1.442695
      %v2950 = vpow.pop %v2949
      %v2951 = vmul.f32 %v2944, 1.442695
      %v2952 = vpow.pop %v2951
      %v2953 = vmul.f32 %v2945, 1.442695
      %v2954 = vpow.pop %v2953
      %v2955 = vmul.f32 %v2946, 1.442695
      %v2956 = vpow.pop %v2955
      %v2957 = vmul.f32 %v2947, 1.442695
      %v2958 = vpow.pop %v2957
      %v2959 = vmul.f32 %v2948, 1.442695
      %v2960 = vpow.pop %v2959
      %v2961 = vsel %vm2711, %v2950, 0.0
      %2962 = vadd.xlane.f32.xlu0 %v2961
      %v2963 = vpop.xlane.xlu0 %2962
      %v2964 = vsel %vm2711, %v2952, 0.0
      %2965 = vadd.xlane.f32.xlu0 %v2964
      %v2966 = vpop.xlane.xlu0 %2965
      %v2967 = vsel %vm2711, %v2954, 0.0
      %2968 = vadd.xlane.f32.xlu0 %v2967
      %v2969 = vpop.xlane.xlu0 %2968
      %v2970 = vsel %vm2711, %v2956, 0.0
      %2971 = vadd.xlane.f32.xlu0 %v2970
      %v2972 = vpop.xlane.xlu0 %2971
      %v2973 = vsel %vm2711, %v2958, 0.0
      %2974 = vadd.xlane.f32.xlu0 %v2973
      %v2975 = vpop.xlane.xlu0 %2974
      %v2976 = vsel %vm2711, %v2960, 0.0
      %2977 = vadd.xlane.f32.xlu0 %v2976
      %v2978 = vpop.xlane.xlu0 %2977
      %v2979 = vrcp.pop %v2963
      %v2980 = vrcp.pop %v2966
      %v2981 = vrcp.pop %v2969
      %v2982 = vrcp.pop %v2972
      %v2983 = vrcp.pop %v2975
      %v2984 = vrcp.pop %v2978
      %v2985 = vmul.f32 %v2950, %v2979
      %v2986 = vmul.f32 %v2952, %v2980
      %v2987 = vmul.f32 %v2954, %v2981
      %v2988 = vmul.f32 %v2956, %v2982
      %v2989 = vmul.f32 %v2958, %v2983
      %v2990 = vmul.f32 %v2960, %v2984
      %v2991 = vpack.c.bf16 %v2986, %v2985
      %v2992 = vpack.c.bf16 %v2988, %v2987
      %v2993 = vpack.c.bf16 %v2990, %v2989
      %v2994 = vpack.c.bf16 %v2545, %v2541
      %v2995 = vpack.c.bf16 %v2555, %v2551
      %v2996 = vpack.c.bf16 %v2565, %v2561
      %v2998 = vsel %vm2711, %v2991, 0
      %v3001 = vsel %vm2711, %v2992, 0
      %v3004 = vsel %vm2711, %v2993, 0
      %3006 = vmatprep.subr.bf16.mxu0 0
      %3007 = vmatpush1.bf16.msra.mxu0 %v2994
      %3008 = vmatprep.subr.bf16.mxu0 0
      %3009 = vmatpush1.bf16.msra.mxu0 %v2995
      %3010 = vmatprep.subr.bf16.mxu0 0
      %3011 = vmatpush1.bf16.msra.mxu0 %v2996
      %3012 = vmatprep.subr.bf16.mxu0 0
      %3013 = vmatpush1.bf16.msra.mxu0 0
      %3014 = vmatprep.subr.bf16.mxu0 0
      %3015 = vmatpush1.bf16.msra.mxu0 0
      %3016 = vmatprep.subr.bf16.mxu0 0
      %3017 = vmatpush1.bf16.msra.mxu0 0
      %3018 = vmatprep.subr.bf16.mxu0 0
      %3019 = vmatpush1.bf16.msra.mxu0 0
      %3020 = vmatprep.subr.bf16.mxu0 0
      %3021 = vmatpush1.bf16.msra.mxu0 0
      %3022 = vmatprep.subr.bf16.mxu0 0
      %3023 = vmatpush1.bf16.msra.mxu0 0
      %3024 = vmatprep.subr.bf16.mxu0 0
      %3025 = vmatpush1.bf16.msra.mxu0 0
      %3026 = vmatprep.subr.bf16.mxu0 0
      %3027 = vmatpush1.bf16.msra.mxu0 0
      %3028 = vmatprep.subr.bf16.mxu0 0
      %3029 = vmatpush1.bf16.msra.mxu0 0
      %3030 = vmatprep.subr.bf16.mxu0 0
      %3031 = vmatpush1.bf16.msra.mxu0 0
      %3032 = vmatprep.subr.bf16.mxu0 0
      %3033 = vmatpush1.bf16.msra.mxu0 0
      %3034 = vmatprep.subr.bf16.mxu0 0
      %3035 = vmatpush1.bf16.msra.mxu0 0
      %3036 = vmatprep.subr.bf16.mxu0 0
      %3037 = vmatpush1.bf16.msra.mxu0 0
      %3038 = vmatprep.mubr.bf16.mxu0 0
      %3039 = vmatmul.mubr.bf16.gmra.mrb[0].mxu0 %v2998
      %v3040 = vpop.f32.mrb[0].mxu0
      %v3041 = vadd.f32 0.0, %v3040
      %v3042 = vpop.f32.mrb[0].mxu0
      %v3043 = vpop.f32.mrb[0].mxu0
      %v3044 = vadd.f32 0.0, %v3043
      %v3045 = vpop.f32.mrb[0].mxu0
      %3046 = vmatprep.mubr.bf16.mxu0 0
      %3047 = vmatmul.mubr.bf16.gmra.mrb[0].mxu0 %v3001
      %v3048 = vpop.f32.mrb[0].mxu0
      %v3049 = vadd.f32 0.0, %v3048
      %v3050 = vpop.f32.mrb[0].mxu0
      %v3051 = vpop.f32.mrb[0].mxu0
      %v3052 = vadd.f32 0.0, %v3051
      %v3053 = vpop.f32.mrb[0].mxu0
      %3054 = vmatprep.mubr.bf16.mxu0 0
      %3055 = vmatmul.mubr.bf16.gmra.mrb[0].mxu0 %v3004
      %v3056 = vpop.f32.mrb[0].mxu0
      %v3057 = vadd.f32 0.0, %v3056
      %v3058 = vpop.f32.mrb[0].mxu0
      %v3059 = vpop.f32.mrb[0].mxu0
      %v3060 = vadd.f32 0.0, %v3059
      %v3061 = vpop.f32.mrb[0].mxu0
      %3062 = vdwg.mxu0
      %v3063 = vpack.c.bf16 %v2354, %v2350
      %v3064 = vpack.c.bf16 %v2364, %v2360
      %v3065 = vpack.c.bf16 %v2374, %v2370
      %v3066 = vpack.c.bf16 %v2480, %v2476
      %v3067 = vpack.c.bf16 %v2490, %v2486
      %v3068 = vpack.c.bf16 %v2500, %v2496
      %3069 = vmatprep.subr.bf16.mxu0 0
      %3070 = vmatpush1.bf16.xpose.msra.mxu0 %v3066
      %3071 = vmatprep.subr.bf16.mxu0 0
      %3072 = vmatpush1.bf16.xpose.msra.mxu0 %v3067
      %3073 = vmatprep.subr.bf16.mxu0 0
      %3074 = vmatpush1.bf16.xpose.msra.mxu0 %v3068
      %3075 = vmatprep.subr.bf16.mxu0 0
      %3076 = vmatpush1.bf16.xpose.msra.mxu0 0
      %3077 = vmatprep.subr.bf16.mxu0 0
      %3078 = vmatpush1.bf16.xpose.msra.mxu0 0
      %3079 = vmatprep.subr.bf16.mxu0 0
      %3080 = vmatpush1.bf16.xpose.msra.mxu0 0
      %3081 = vmatprep.subr.bf16.mxu0 0
      %3082 = vmatpush1.bf16.xpose.msra.mxu0 0
      %3083 = vmatprep.subr.bf16.mxu0 0
      %3084 = vmatpush1.bf16.xpose.msra.mxu0 0
      %3085 = vmatprep.subr.bf16.mxu0 0
      %3086 = vmatpush1.bf16.xpose.msra.mxu0 0
      %3087 = vmatprep.subr.bf16.mxu0 0
      %3088 = vmatpush1.bf16.xpose.msra.mxu0 0
      %3089 = vmatprep.subr.bf16.mxu0 0
      %3090 = vmatpush1.bf16.xpose.msra.mxu0 0
      %3091 = vmatprep.subr.bf16.mxu0 0
      %3092 = vmatpush1.bf16.xpose.msra.mxu0 0
      %3093 = vmatprep.subr.bf16.mxu0 0
      %3094 = vmatpush1.bf16.xpose.msra.mxu0 0
      %3095 = vmatprep.subr.bf16.mxu0 0
      %3096 = vmatpush1.bf16.xpose.msra.mxu0 0
      %3097 = vmatprep.subr.bf16.mxu0 0
      %3098 = vmatpush1.bf16.xpose.msra.mxu0 0
      %3099 = vmatprep.subr.bf16.mxu0 0
      %3100 = vmatpush1.bf16.xpose.msra.mxu0 0
      %3101 = vmatprep.mubr.bf16.mxu0 0
      %3102 = vmatmul.mubr.bf16.gmra.mrb[0].mxu0 %v3063
      %v3103 = vpop.f32.mrb[0].mxu0
      %v3104 = vadd.f32 0.0, %v3103
      %v3105 = vpop.f32.mrb[0].mxu0
      %v3106 = vpop.f32.mrb[0].mxu0
      %v3107 = vadd.f32 0.0, %v3106
      %v3108 = vpop.f32.mrb[0].mxu0
      %3109 = vmatprep.mubr.bf16.mxu0 0
      %3110 = vmatmul.mubr.bf16.gmra.mrb[0].mxu0 %v3064
      %v3111 = vpop.f32.mrb[0].mxu0
      %v3112 = vadd.f32 0.0, %v3111
      %v3113 = vpop.f32.mrb[0].mxu0
      %v3114 = vpop.f32.mrb[0].mxu0
      %v3115 = vadd.f32 0.0, %v3114
      %v3116 = vpop.f32.mrb[0].mxu0
      %3117 = vmatprep.mubr.bf16.mxu0 0
      %3118 = vmatmul.mubr.bf16.gmra.mrb[0].mxu0 %v3065
      %v3119 = vpop.f32.mrb[0].mxu0
      %v3120 = vadd.f32 0.0, %v3119
      %v3121 = vpop.f32.mrb[0].mxu0
      %v3122 = vpop.f32.mrb[0].mxu0
      %v3123 = vadd.f32 0.0, %v3122
      %v3124 = vpop.f32.mrb[0].mxu0
      %3125 = vdwg.mxu0
      %v3126 = vmul.f32 %v3104, 0.25
      %v3127 = vmul.f32 %v3107, 0.25
      %v3128 = vmul.f32 %v3112, 0.25
      %v3129 = vmul.f32 %v3115, 0.25
      %v3130 = vmul.f32 %v3120, 0.25
      %v3131 = vmul.f32 %v3123, 0.25
      %v3132 = vadd.f32 %v3126, %v2630
      %v3133 = vadd.f32 %v3127, %v2631
      %v3134 = vadd.f32 %v3128, %v2632
      %v3135 = vadd.f32 %v3129, %v2633
      %v3136 = vadd.f32 %v3130, %v2634
      %v3137 = vadd.f32 %v3131, %v2635
      %v3138 = vsel %vm2711, %v3132, -inf
      %3139 = vmax.xlane.f32.xlu0 %v3138
      %v3140 = vpop.xlane.xlu0 %3139
      %v3141 = vsel %vm2711, %v3133, -inf
      %3142 = vmax.xlane.f32.xlu0 %v3141
      %v3143 = vpop.xlane.xlu0 %3142
      %v3144 = vsel %vm2711, %v3134, -inf
      %3145 = vmax.xlane.f32.xlu0 %v3144
      %v3146 = vpop.xlane.xlu0 %3145
      %v3147 = vsel %vm2711, %v3135, -inf
      %3148 = vmax.xlane.f32.xlu0 %v3147
      %v3149 = vpop.xlane.xlu0 %3148
      %v3150 = vsel %vm2711, %v3136, -inf
      %3151 = vmax.xlane.f32.xlu0 %v3150
      %v3152 = vpop.xlane.xlu0 %3151
      %v3153 = vsel %vm2711, %v3137, -inf
      %3154 = vmax.xlane.f32.xlu0 %v3153
      %v3155 = vpop.xlane.xlu0 %3154
      %v3156 = vsub.f32 %v3132, %v3140
      %v3157 = vsub.f32 %v3133, %v3143
      %v3158 = vsub.f32 %v3134, %v3146
      %v3159 = vsub.f32 %v3135, %v3149
      %v3160 = vsub.f32 %v3136, %v3152
      %v3161 = vsub.f32 %v3137, %v3155
      %v3162 = vmul.f32 %v3156, 1.442695
      %v3163 = vpow.pop %v3162
      %v3164 = vmul.f32 %v3157, 1.442695
      %v3165 = vpow.pop %v3164
      %v3166 = vmul.f32 %v3158, 1.442695
      %v3167 = vpow.pop %v3166
      %v3168 = vmul.f32 %v3159, 1.442695
      %v3169 = vpow.pop %v3168
      %v3170 = vmul.f32 %v3160, 1.442695
      %v3171 = vpow.pop %v3170
      %v3172 = vmul.f32 %v3161, 1.442695
      %v3173 = vpow.pop %v3172
      %v3174 = vsel %vm2711, %v3163, 0.0
      %3175 = vadd.xlane.f32.xlu0 %v3174
      %v3176 = vpop.xlane.xlu0 %3175
      %v3177 = vsel %vm2711, %v3165, 0.0
      %3178 = vadd.xlane.f32.xlu0 %v3177
      %v3179 = vpop.xlane.xlu0 %3178
      %v3180 = vsel %vm2711, %v3167, 0.0
      %3181 = vadd.xlane.f32.xlu0 %v3180
      %v3182 = vpop.xlane.xlu0 %3181
      %v3183 = vsel %vm2711, %v3169, 0.0
      %3184 = vadd.xlane.f32.xlu0 %v3183
      %v3185 = vpop.xlane.xlu0 %3184
      %v3186 = vsel %vm2711, %v3171, 0.0
      %3187 = vadd.xlane.f32.xlu0 %v3186
      %v3188 = vpop.xlane.xlu0 %3187
      %v3189 = vsel %vm2711, %v3173, 0.0
      %3190 = vadd.xlane.f32.xlu0 %v3189
      %v3191 = vpop.xlane.xlu0 %3190
      %v3192 = vrcp.pop %v3176
      %v3193 = vrcp.pop %v3179
      %v3194 = vrcp.pop %v3182
      %v3195 = vrcp.pop %v3185
      %v3196 = vrcp.pop %v3188
      %v3197 = vrcp.pop %v3191
      %v3198 = vmul.f32 %v3163, %v3192
      %v3199 = vmul.f32 %v3165, %v3193
      %v3200 = vmul.f32 %v3167, %v3194
      %v3201 = vmul.f32 %v3169, %v3195
      %v3202 = vmul.f32 %v3171, %v3196
      %v3203 = vmul.f32 %v3173, %v3197
      %v3204 = vpack.c.bf16 %v3199, %v3198
      %v3205 = vpack.c.bf16 %v3201, %v3200
      %v3206 = vpack.c.bf16 %v3203, %v3202
      %v3207 = vpack.c.bf16 %v2606, %v2602
      %v3208 = vpack.c.bf16 %v2616, %v2612
      %v3209 = vpack.c.bf16 %v2626, %v2622
      %v3211 = vsel %vm2711, %v3204, 0
      %v3214 = vsel %vm2711, %v3205, 0
      %v3217 = vsel %vm2711, %v3206, 0
      %3219 = vmatprep.subr.bf16.mxu0 0
      %3220 = vmatpush1.bf16.msra.mxu0 %v3207
      %3221 = vmatprep.subr.bf16.mxu0 0
      %3222 = vmatpush1.bf16.msra.mxu0 %v3208
      %3223 = vmatprep.subr.bf16.mxu0 0
      %3224 = vmatpush1.bf16.msra.mxu0 %v3209
      %3225 = vmatprep.subr.bf16.mxu0 0
      %3226 = vmatpush1.bf16.msra.mxu0 0
      %3227 = vmatprep.subr.bf16.mxu0 0
      %3228 = vmatpush1.bf16.msra.mxu0 0
      %3229 = vmatprep.subr.bf16.mxu0 0
      %3230 = vmatpush1.bf16.msra.mxu0 0
      %3231 = vmatprep.subr.bf16.mxu0 0
      %3232 = vmatpush1.bf16.msra.mxu0 0
      %3233 = vmatprep.subr.bf16.mxu0 0
      %3234 = vmatpush1.bf16.msra.mxu0 0
      %3235 = vmatprep.subr.bf16.mxu0 0
      %3236 = vmatpush1.bf16.msra.mxu0 0
      %3237 = vmatprep.subr.bf16.mxu0 0
      %3238 = vmatpush1.bf16.msra.mxu0 0
      %3239 = vmatprep.subr.bf16.mxu0 0
      %3240 = vmatpush1.bf16.msra.mxu0 0
      %3241 = vmatprep.subr.bf16.mxu0 0
      %3242 = vmatpush1.bf16.msra.mxu0 0
      %3243 = vmatprep.subr.bf16.mxu0 0
      %3244 = vmatpush1.bf16.msra.mxu0 0
      %3245 = vmatprep.subr.bf16.mxu0 0
      %3246 = vmatpush1.bf16.msra.mxu0 0
      %3247 = vmatprep.subr.bf16.mxu0 0
      %3248 = vmatpush1.bf16.msra.mxu0 0
      %3249 = vmatprep.subr.bf16.mxu0 0
      %3250 = vmatpush1.bf16.msra.mxu0 0
      %3251 = vmatprep.mubr.bf16.mxu0 0
      %3252 = vmatmul.mubr.bf16.gmra.mrb[0].mxu0 %v3211
      %v3253 = vpop.f32.mrb[0].mxu0
      %v3254 = vadd.f32 0.0, %v3253
      %v3255 = vpop.f32.mrb[0].mxu0
      %v3256 = vpop.f32.mrb[0].mxu0
      %v3257 = vadd.f32 0.0, %v3256
      %v3258 = vpop.f32.mrb[0].mxu0
      %3259 = vmatprep.mubr.bf16.mxu0 0
      %3260 = vmatmul.mubr.bf16.gmra.mrb[0].mxu0 %v3214
      %v3261 = vpop.f32.mrb[0].mxu0
      %v3262 = vadd.f32 0.0, %v3261
      %v3263 = vpop.f32.mrb[0].mxu0
      %v3264 = vpop.f32.mrb[0].mxu0
      %v3265 = vadd.f32 0.0, %v3264
      %v3266 = vpop.f32.mrb[0].mxu0
      %3267 = vmatprep.mubr.bf16.mxu0 0
      %3268 = vmatmul.mubr.bf16.gmra.mrb[0].mxu0 %v3217
      %v3269 = vpop.f32.mrb[0].mxu0
      %v3270 = vadd.f32 0.0, %v3269
      %v3271 = vpop.f32.mrb[0].mxu0
      %v3272 = vpop.f32.mrb[0].mxu0
      %v3273 = vadd.f32 0.0, %v3272
      %v3274 = vpop.f32.mrb[0].mxu0
      %3275 = vdwg.mxu0
      %v3276 = vpack.c.bf16 %v2356, %v2352
      %v3277 = vpack.c.bf16 %v2366, %v2362
      %v3278 = vpack.c.bf16 %v2376, %v2372
      %v3279 = vpack.c.bf16 %v2482, %v2478
      %v3280 = vpack.c.bf16 %v2492, %v2488
      %v3281 = vpack.c.bf16 %v2502, %v2498
      %3282 = vmatprep.subr.bf16.mxu0 0
      %3283 = vmatpush1.bf16.xpose.msra.mxu0 %v3279
      %3284 = vmatprep.subr.bf16.mxu0 0
      %3285 = vmatpush1.bf16.xpose.msra.mxu0 %v3280
      %3286 = vmatprep.subr.bf16.mxu0 0
      %3287 = vmatpush1.bf16.xpose.msra.mxu0 %v3281
      %3288 = vmatprep.subr.bf16.mxu0 0
      %3289 = vmatpush1.bf16.xpose.msra.mxu0 0
      %3290 = vmatprep.subr.bf16.mxu0 0
      %3291 = vmatpush1.bf16.xpose.msra.mxu0 0
      %3292 = vmatprep.subr.bf16.mxu0 0
      %3293 = vmatpush1.bf16.xpose.msra.mxu0 0
      %3294 = vmatprep.subr.bf16.mxu0 0
      %3295 = vmatpush1.bf16.xpose.msra.mxu0 0
      %3296 = vmatprep.subr.bf16.mxu0 0
      %3297 = vmatpush1.bf16.xpose.msra.mxu0 0
      %3298 = vmatprep.subr.bf16.mxu0 0
      %3299 = vmatpush1.bf16.xpose.msra.mxu0 0
      %3300 = vmatprep.subr.bf16.mxu0 0
      %3301 = vmatpush1.bf16.xpose.msra.mxu0 0
      %3302 = vmatprep.subr.bf16.mxu0 0
      %3303 = vmatpush1.bf16.xpose.msra.mxu0 0
      %3304 = vmatprep.subr.bf16.mxu0 0
      %3305 = vmatpush1.bf16.xpose.msra.mxu0 0
      %3306 = vmatprep.subr.bf16.mxu0 0
      %3307 = vmatpush1.bf16.xpose.msra.mxu0 0
      %3308 = vmatprep.subr.bf16.mxu0 0
      %3309 = vmatpush1.bf16.xpose.msra.mxu0 0
      %3310 = vmatprep.subr.bf16.mxu0 0
      %3311 = vmatpush1.bf16.xpose.msra.mxu0 0
      %3312 = vmatprep.subr.bf16.mxu0 0
      %3313 = vmatpush1.bf16.xpose.msra.mxu0 0
      %3314 = vmatprep.mubr.bf16.mxu0 0
      %3315 = vmatmul.mubr.bf16.gmra.mrb[0].mxu0 %v3276
      %v3316 = vpop.f32.mrb[0].mxu0
      %v3317 = vadd.f32 0.0, %v3316
      %v3318 = vpop.f32.mrb[0].mxu0
      %v3319 = vpop.f32.mrb[0].mxu0
      %v3320 = vadd.f32 0.0, %v3319
      %v3321 = vpop.f32.mrb[0].mxu0
      %3322 = vmatprep.mubr.bf16.mxu0 0
      %3323 = vmatmul.mubr.bf16.gmra.mrb[0].mxu0 %v3277
      %v3324 = vpop.f32.mrb[0].mxu0
      %v3325 = vadd.f32 0.0, %v3324
      %v3326 = vpop.f32.mrb[0].mxu0
      %v3327 = vpop.f32.mrb[0].mxu0
      %v3328 = vadd.f32 0.0, %v3327
      %v3329 = vpop.f32.mrb[0].mxu0
      %3330 = vmatprep.mubr.bf16.mxu0 0
      %3331 = vmatmul.mubr.bf16.gmra.mrb[0].mxu0 %v3278
      %v3332 = vpop.f32.mrb[0].mxu0
      %v3333 = vadd.f32 0.0, %v3332
      %v3334 = vpop.f32.mrb[0].mxu0
      %v3335 = vpop.f32.mrb[0].mxu0
      %v3336 = vadd.f32 0.0, %v3335
      %v3337 = vpop.f32.mrb[0].mxu0
      %3338 = vdwg.mxu0
      %v3339 = vmul.f32 %v3317, 0.25
      %v3340 = vmul.f32 %v3320, 0.25
      %v3341 = vmul.f32 %v3325, 0.25
      %v3342 = vmul.f32 %v3328, 0.25
      %v3343 = vmul.f32 %v3333, 0.25
      %v3344 = vmul.f32 %v3336, 0.25
      %v3345 = vadd.f32 %v3339, %v2630
      %v3346 = vadd.f32 %v3340, %v2631
      %v3347 = vadd.f32 %v3341, %v2632
      %v3348 = vadd.f32 %v3342, %v2633
      %v3349 = vadd.f32 %v3343, %v2634
      %v3350 = vadd.f32 %v3344, %v2635
      %v3351 = vsel %vm2711, %v3345, -inf
      %3352 = vmax.xlane.f32.xlu0 %v3351
      %v3353 = vpop.xlane.xlu0 %3352
      %v3354 = vsel %vm2711, %v3346, -inf
      %3355 = vmax.xlane.f32.xlu0 %v3354
      %v3356 = vpop.xlane.xlu0 %3355
      %v3357 = vsel %vm2711, %v3347, -inf
      %3358 = vmax.xlane.f32.xlu0 %v3357
      %v3359 = vpop.xlane.xlu0 %3358
      %v3360 = vsel %vm2711, %v3348, -inf
      %3361 = vmax.xlane.f32.xlu0 %v3360
      %v3362 = vpop.xlane.xlu0 %3361
      %v3363 = vsel %vm2711, %v3349, -inf
      %3364 = vmax.xlane.f32.xlu0 %v3363
      %v3365 = vpop.xlane.xlu0 %3364
      %v3366 = vsel %vm2711, %v3350, -inf
      %3367 = vmax.xlane.f32.xlu0 %v3366
      %v3368 = vpop.xlane.xlu0 %3367
      %v3369 = vsub.f32 %v3345, %v3353
      %v3370 = vsub.f32 %v3346, %v3356
      %v3371 = vsub.f32 %v3347, %v3359
      %v3372 = vsub.f32 %v3348, %v3362
      %v3373 = vsub.f32 %v3349, %v3365
      %v3374 = vsub.f32 %v3350, %v3368
      %v3375 = vmul.f32 %v3369, 1.442695
      %v3376 = vpow.pop %v3375
      %v3377 = vmul.f32 %v3370, 1.442695
      %v3378 = vpow.pop %v3377
      %v3379 = vmul.f32 %v3371, 1.442695
      %v3380 = vpow.pop %v3379
      %v3381 = vmul.f32 %v3372, 1.442695
      %v3382 = vpow.pop %v3381
      %v3383 = vmul.f32 %v3373, 1.442695
      %v3384 = vpow.pop %v3383
      %v3385 = vmul.f32 %v3374, 1.442695
      %v3386 = vpow.pop %v3385
      %v3387 = vsel %vm2711, %v3376, 0.0
      %3388 = vadd.xlane.f32.xlu0 %v3387
      %v3389 = vpop.xlane.xlu0 %3388
      %v3390 = vsel %vm2711, %v3378, 0.0
      %3391 = vadd.xlane.f32.xlu0 %v3390
      %v3392 = vpop.xlane.xlu0 %3391
      %v3393 = vsel %vm2711, %v3380, 0.0
      %3394 = vadd.xlane.f32.xlu0 %v3393
      %v3395 = vpop.xlane.xlu0 %3394
      %v3396 = vsel %vm2711, %v3382, 0.0
      %3397 = vadd.xlane.f32.xlu0 %v3396
      %v3398 = vpop.xlane.xlu0 %3397
      %v3399 = vsel %vm2711, %v3384, 0.0
      %3400 = vadd.xlane.f32.xlu0 %v3399
      %v3401 = vpop.xlane.xlu0 %3400
      %v3402 = vsel %vm2711, %v3386, 0.0
      %3403 = vadd.xlane.f32.xlu0 %v3402
      %v3404 = vpop.xlane.xlu0 %3403
      %v3405 = vrcp.pop %v3389
      %v3406 = vrcp.pop %v3392
      %v3407 = vrcp.pop %v3395
      %v3408 = vrcp.pop %v3398
      %v3409 = vrcp.pop %v3401
      %v3410 = vrcp.pop %v3404
      %v3411 = vmul.f32 %v3376, %v3405
      %v3412 = vmul.f32 %v3378, %v3406
      %v3413 = vmul.f32 %v3380, %v3407
      %v3414 = vmul.f32 %v3382, %v3408
      %v3415 = vmul.f32 %v3384, %v3409
      %v3416 = vmul.f32 %v3386, %v3410
      %v3417 = vpack.c.bf16 %v3412, %v3411
      %v3418 = vpack.c.bf16 %v3414, %v3413
      %v3419 = vpack.c.bf16 %v3416, %v3415
      %v3420 = vpack.c.bf16 %v2608, %v2604
      %v3421 = vpack.c.bf16 %v2618, %v2614
      %v3422 = vpack.c.bf16 %v2628, %v2624
      %v3424 = vsel %vm2711, %v3417, 0
      %v3427 = vsel %vm2711, %v3418, 0
      %v3430 = vsel %vm2711, %v3419, 0
      %3432 = vmatprep.subr.bf16.mxu0 0
      %3433 = vmatpush1.bf16.msra.mxu0 %v3420
      %3434 = vmatprep.subr.bf16.mxu0 0
      %3435 = vmatpush1.bf16.msra.mxu0 %v3421
      %3436 = vmatprep.subr.bf16.mxu0 0
      %3437 = vmatpush1.bf16.msra.mxu0 %v3422
      %3438 = vmatprep.subr.bf16.mxu0 0
      %3439 = vmatpush1.bf16.msra.mxu0 0
      %3440 = vmatprep.subr.bf16.mxu0 0
      %3441 = vmatpush1.bf16.msra.mxu0 0
      %3442 = vmatprep.subr.bf16.mxu0 0
      %3443 = vmatpush1.bf16.msra.mxu0 0
      %3444 = vmatprep.subr.bf16.mxu0 0
      %3445 = vmatpush1.bf16.msra.mxu0 0
      %3446 = vmatprep.subr.bf16.mxu0 0
      %3447 = vmatpush1.bf16.msra.mxu0 0
      %3448 = vmatprep.subr.bf16.mxu0 0
      %3449 = vmatpush1.bf16.msra.mxu0 0
      %3450 = vmatprep.subr.bf16.mxu0 0
      %3451 = vmatpush1.bf16.msra.mxu0 0
      %3452 = vmatprep.subr.bf16.mxu0 0
      %3453 = vmatpush1.bf16.msra.mxu0 0
      %3454 = vmatprep.subr.bf16.mxu0 0
      %3455 = vmatpush1.bf16.msra.mxu0 0
      %3456 = vmatprep.subr.bf16.mxu0 0
      %3457 = vmatpush1.bf16.msra.mxu0 0
      %3458 = vmatprep.subr.bf16.mxu0 0
      %3459 = vmatpush1.bf16.msra.mxu0 0
      %3460 = vmatprep.subr.bf16.mxu0 0
      %3461 = vmatpush1.bf16.msra.mxu0 0
      %3462 = vmatprep.subr.bf16.mxu0 0
      %3463 = vmatpush1.bf16.msra.mxu0 0
      %3464 = vmatprep.mubr.bf16.mxu0 0
      %3465 = vmatmul.mubr.bf16.gmra.mrb[0].mxu0 %v3424
      %v3466 = vpop.f32.mrb[0].mxu0
      %v3467 = vadd.f32 0.0, %v3466
      %v3468 = vpop.f32.mrb[0].mxu0
      %v3469 = vpop.f32.mrb[0].mxu0
      %v3470 = vadd.f32 0.0, %v3469
      %v3471 = vpop.f32.mrb[0].mxu0
      %3472 = vmatprep.mubr.bf16.mxu0 0
      %3473 = vmatmul.mubr.bf16.gmra.mrb[0].mxu0 %v3427
      %v3474 = vpop.f32.mrb[0].mxu0
      %v3475 = vadd.f32 0.0, %v3474
      %v3476 = vpop.f32.mrb[0].mxu0
      %v3477 = vpop.f32.mrb[0].mxu0
      %v3478 = vadd.f32 0.0, %v3477
      %v3479 = vpop.f32.mrb[0].mxu0
      %3480 = vmatprep.mubr.bf16.mxu0 0
      %3481 = vmatmul.mubr.bf16.gmra.mrb[0].mxu0 %v3430
      %v3482 = vpop.f32.mrb[0].mxu0
      %v3483 = vadd.f32 0.0, %v3482
      %v3484 = vpop.f32.mrb[0].mxu0
      %v3485 = vpop.f32.mrb[0].mxu0
      %v3486 = vadd.f32 0.0, %v3485
      %v3487 = vpop.f32.mrb[0].mxu0
      %3488 = vdwg.mxu0
      %v3489 = vld [vmem:[%s1037] sm:$0xf]
      %v3490 = vld [vmem:[%s1037 + $0x4] sm:$0xf]
      %v3491 = vld [vmem:[%s1037 + $0x8] sm:$0xf]
      %v3492 = vld [vmem:[%s1037 + $0xc] sm:$0xf]
      %v3493 = vld [vmem:[%s1037 + $0x10] sm:$0xf]
      %v3494 = vld [vmem:[%s1037 + $0x14] sm:$0xf]
      %v3495 = vld [vmem:[%s1037 + $0x18] sm:$0xf]
      %v3496 = vld [vmem:[%s1037 + $0x1c] sm:$0xf]
      %v3497 = vld [vmem:[%s1037 + $0x20] sm:$0xf]
      %v3498 = vld [vmem:[%s1037 + $0x24] sm:$0xf]
      %v3499 = vld [vmem:[%s1037 + $0x28] sm:$0xf]
      %v3500 = vld [vmem:[%s1037 + $0x2c] sm:$0xf]
      %v3501 = vld [vmem:[%s1037 + $0x30] sm:$0xf]
      %v3502 = vld [vmem:[%s1037 + $0x34] sm:$0xf]
      %v3503 = vld [vmem:[%s1037 + $0x38] sm:$0xf]
      %v3504 = vld [vmem:[%s1037 + $0x3c] sm:$0xf]
      %v3505 = vld [vmem:[%s1037 + $0x40] sm:$0xf]
      %v3506 = vld [vmem:[%s1037 + $0x44] sm:$0xf]
      %v3507 = vld [vmem:[%s1037 + $0x48] sm:$0xf]
      %v3508 = vld [vmem:[%s1037 + $0x4c] sm:$0xf]
      %v3509 = vld [vmem:[%s1037 + $0x50] sm:$0xf]
      %v3510 = vld [vmem:[%s1037 + $0x54] sm:$0xf]
      %v3511 = vld [vmem:[%s1037 + $0x58] sm:$0xf]
      %v3512 = vld [vmem:[%s1037 + $0x5c] sm:$0xf]
      %v3513 = vld [vmem:[%s1037 + $0x60] sm:$0xf]
      %v3514 = vld [vmem:[%s1037 + $0x64] sm:$0xf]
      %v3515 = vld [vmem:[%s1037 + $0x68] sm:$0xf]
      %v3516 = vld [vmem:[%s1037 + $0x6c] sm:$0xf]
      %v3517 = vld [vmem:[%s1037 + $0x70] sm:$0xf]
      %v3518 = vld [vmem:[%s1037 + $0x74] sm:$0xf]
      %v3519 = vld [vmem:[%s1037 + $0x78] sm:$0xf]
      %v3520 = vld [vmem:[%s1037 + $0x7c] sm:$0xf]
      %v3521 = vld [vmem:[%s1037 + $0x80] sm:$0xf]
      %v3522 = vld [vmem:[%s1037 + $0x84] sm:$0xf]
      %v3523 = vld [vmem:[%s1037 + $0x88] sm:$0xf]
      %v3524 = vld [vmem:[%s1037 + $0x8c] sm:$0xf]
      %v3525 = vld [vmem:[%s1037 + $0x90] sm:$0xf]
      %v3526 = vld [vmem:[%s1037 + $0x94] sm:$0xf]
      %v3527 = vld [vmem:[%s1037 + $0x98] sm:$0xf]
      %v3528 = vld [vmem:[%s1037 + $0x9c] sm:$0xf]
      %v3529 = vld [vmem:[%s1037 + $0xa0] sm:$0xf]
      %v3530 = vld [vmem:[%s1037 + $0xa4] sm:$0xf]
      %v3531 = vld [vmem:[%s1037 + $0xa8] sm:$0xf]
      %v3532 = vld [vmem:[%s1037 + $0xac] sm:$0xf]
      %v3533 = vld [vmem:[%s1037 + $0xb0] sm:$0xf]
      %v3534 = vld [vmem:[%s1037 + $0xb4] sm:$0xf]
      %v3535 = vld [vmem:[%s1037 + $0xb8] sm:$0xf]
      %v3536 = vld [vmem:[%s1037 + $0xbc] sm:$0xf]
      %v3537 = vld [vmem:[%s1037 + $0xc0] sm:$0xf]
      %v3538 = vld [vmem:[%s1037 + $0xc4] sm:$0xf]
      %v3539 = vld [vmem:[%s1037 + $0xc8] sm:$0xf]
      %v3540 = vld [vmem:[%s1037 + $0xcc] sm:$0xf]
      %v3541 = vld [vmem:[%s1037 + $0xd0] sm:$0xf]
      %v3542 = vld [vmem:[%s1037 + $0xd4] sm:$0xf]
      %v3543 = vld [vmem:[%s1037 + $0xd8] sm:$0xf]
      %v3544 = vld [vmem:[%s1037 + $0xdc] sm:$0xf]
      %v3545 = vld [vmem:[%s1037 + $0xe0] sm:$0xf]
      %v3546 = vld [vmem:[%s1037 + $0xe4] sm:$0xf]
      %v3547 = vld [vmem:[%s1037 + $0xe8] sm:$0xf]
      %v3548 = vld [vmem:[%s1037 + $0xec] sm:$0xf]
      %v3549 = vld [vmem:[%s1037 + $0xf0] sm:$0xf]
      %v3550 = vld [vmem:[%s1037 + $0xf4] sm:$0xf]
      %v3551 = vld [vmem:[%s1037 + $0xf8] sm:$0xf]
      %v3552 = vld [vmem:[%s1037 + $0xfc] sm:$0xf]
      %v3553 = vpack.c.bf16 %v2831, %v2828
      %v3554 = vpack.c.bf16 %v3044, %v3041
      %v3555 = vpack.c.bf16 %v3257, %v3254
      %v3556 = vpack.c.bf16 %v3470, %v3467
      %v3557 = vpack.c.bf16 %v2839, %v2836
      %v3558 = vpack.c.bf16 %v3052, %v3049
      %v3559 = vpack.c.bf16 %v3265, %v3262
      %v3560 = vpack.c.bf16 %v3478, %v3475
      %v3561 = vpack.c.bf16 %v2847, %v2844
      %v3562 = vpack.c.bf16 %v3060, %v3057
      %v3563 = vpack.c.bf16 %v3273, %v3270
      %v3564 = vpack.c.bf16 %v3486, %v3483
      %v3629 = vunpack.c.l.b16 %v3489
      %v3630 = vunpack.c.l.b16 %v3490
      %v3631 = vunpack.c.l.b16 %v3491
      %v3632 = vunpack.c.l.b16 %v3492
      %v3633 = vunpack.c.l.b16 %v3493
      %v3634 = vunpack.c.l.b16 %v3494
      %v3635 = vunpack.c.l.b16 %v3495
      %v3636 = vunpack.c.l.b16 %v3496
      %v3637 = vunpack.c.l.b16 %v3497
      %v3638 = vunpack.c.l.b16 %v3498
      %v3639 = vunpack.c.l.b16 %v3499
      %v3640 = vunpack.c.l.b16 %v3500
      %v3641 = vunpack.c.l.b16 %v3501
      %v3642 = vunpack.c.l.b16 %v3502
      %v3643 = vunpack.c.l.b16 %v3503
      %v3644 = vunpack.c.l.b16 %v3504
      %v3645 = vunpack.c.l.b16 %v3505
      %v3646 = vunpack.c.l.b16 %v3506
      %v3647 = vunpack.c.l.b16 %v3507
      %v3648 = vunpack.c.l.b16 %v3508
      %v3649 = vunpack.c.l.b16 %v3509
      %v3650 = vunpack.c.l.b16 %v3510
      %v3651 = vunpack.c.l.b16 %v3511
      %v3652 = vunpack.c.l.b16 %v3512
      %v3653 = vunpack.c.l.b16 %v3513
      %v3654 = vunpack.c.l.b16 %v3514
      %v3655 = vunpack.c.l.b16 %v3515
      %v3656 = vunpack.c.l.b16 %v3516
      %v3657 = vunpack.c.l.b16 %v3517
      %v3658 = vunpack.c.l.b16 %v3518
      %v3659 = vunpack.c.l.b16 %v3519
      %v3660 = vunpack.c.l.b16 %v3520
      %v3661 = vunpack.c.l.b16 %v3521
      %v3662 = vunpack.c.l.b16 %v3522
      %v3663 = vunpack.c.l.b16 %v3523
      %v3664 = vunpack.c.l.b16 %v3524
      %v3665 = vunpack.c.l.b16 %v3525
      %v3666 = vunpack.c.l.b16 %v3526
      %v3667 = vunpack.c.l.b16 %v3527
      %v3668 = vunpack.c.l.b16 %v3528
      %v3669 = vunpack.c.l.b16 %v3529
      %v3670 = vunpack.c.l.b16 %v3530
      %v3671 = vunpack.c.l.b16 %v3531
      %v3672 = vunpack.c.l.b16 %v3532
      %v3673 = vunpack.c.l.b16 %v3533
      %v3674 = vunpack.c.l.b16 %v3534
      %v3675 = vunpack.c.l.b16 %v3535
      %v3676 = vunpack.c.l.b16 %v3536
      %v3677 = vunpack.c.l.b16 %v3537
      %v3678 = vunpack.c.l.b16 %v3538
      %v3679 = vunpack.c.l.b16 %v3539
      %v3680 = vunpack.c.l.b16 %v3540
      %v3681 = vunpack.c.l.b16 %v3541
      %v3682 = vunpack.c.l.b16 %v3542
      %v3683 = vunpack.c.l.b16 %v3543
      %v3684 = vunpack.c.l.b16 %v3544
      %v3685 = vunpack.c.l.b16 %v3545
      %v3686 = vunpack.c.l.b16 %v3546
      %v3687 = vunpack.c.l.b16 %v3547
      %v3688 = vunpack.c.l.b16 %v3548
      %v3689 = vunpack.c.l.b16 %v3549
      %v3690 = vunpack.c.l.b16 %v3550
      %v3691 = vunpack.c.l.b16 %v3551
      %v3692 = vunpack.c.l.b16 %v3552
      %v3693 = vpack.c.b16 %v3630, %v3629
      %v3694 = vpack.c.b16 %v3632, %v3631
      %v3695 = vpack.c.b16 %v3634, %v3633
      %v3696 = vpack.c.b16 %v3636, %v3635
      %v3697 = vpack.c.b16 %v3638, %v3637
      %v3698 = vpack.c.b16 %v3640, %v3639
      %v3699 = vpack.c.b16 %v3642, %v3641
      %v3700 = vpack.c.b16 %v3644, %v3643
      %v3701 = vpack.c.b16 %v3646, %v3645
      %v3702 = vpack.c.b16 %v3648, %v3647
      %v3703 = vpack.c.b16 %v3650, %v3649
      %v3704 = vpack.c.b16 %v3652, %v3651
      %v3705 = vpack.c.b16 %v3654, %v3653
      %v3706 = vpack.c.b16 %v3656, %v3655
      %v3707 = vpack.c.b16 %v3658, %v3657
      %v3708 = vpack.c.b16 %v3660, %v3659
      %v3709 = vpack.c.b16 %v3662, %v3661
      %v3710 = vpack.c.b16 %v3664, %v3663
      %v3711 = vpack.c.b16 %v3666, %v3665
      %v3712 = vpack.c.b16 %v3668, %v3667
      %v3713 = vpack.c.b16 %v3670, %v3669
      %v3714 = vpack.c.b16 %v3672, %v3671
      %v3715 = vpack.c.b16 %v3674, %v3673
      %v3716 = vpack.c.b16 %v3676, %v3675
      %v3717 = vpack.c.b16 %v3678, %v3677
      %v3718 = vpack.c.b16 %v3680, %v3679
      %v3719 = vpack.c.b16 %v3682, %v3681
      %v3720 = vpack.c.b16 %v3684, %v3683
      %v3721 = vpack.c.b16 %v3686, %v3685
      %v3722 = vpack.c.b16 %v3688, %v3687
      %v3723 = vpack.c.b16 %v3690, %v3689
      %v3724 = vpack.c.b16 %v3692, %v3691
      %3757 = vmatprep.subr.bf16.mxu0 0
      %3758 = vmatpush1.bf16.msra.mxu0 %v3693
      %3759 = vmatprep.subr.bf16.mxu0 0
      %3760 = vmatpush1.bf16.msra.mxu0 %v3694
      %3761 = vmatprep.subr.bf16.mxu0 0
      %3762 = vmatpush1.bf16.msra.mxu0 %v3695
      %3763 = vmatprep.subr.bf16.mxu0 0
      %3764 = vmatpush1.bf16.msra.mxu0 %v3696
      %3765 = vmatprep.subr.bf16.mxu0 0
      %3766 = vmatpush1.bf16.msra.mxu0 %v3697
      %3767 = vmatprep.subr.bf16.mxu0 0
      %3768 = vmatpush1.bf16.msra.mxu0 %v3698
      %3769 = vmatprep.subr.bf16.mxu0 0
      %3770 = vmatpush1.bf16.msra.mxu0 %v3699
      %3771 = vmatprep.subr.bf16.mxu0 0
      %3772 = vmatpush1.bf16.msra.mxu0 %v3700
      %3773 = vmatprep.subr.bf16.mxu0 0
      %3774 = vmatpush1.bf16.msra.mxu0 %v3701
      %3775 = vmatprep.subr.bf16.mxu0 0
      %3776 = vmatpush1.bf16.msra.mxu0 %v3702
      %3777 = vmatprep.subr.bf16.mxu0 0
      %3778 = vmatpush1.bf16.msra.mxu0 %v3703
      %3779 = vmatprep.subr.bf16.mxu0 0
      %3780 = vmatpush1.bf16.msra.mxu0 %v3704
      %3781 = vmatprep.subr.bf16.mxu0 0
      %3782 = vmatpush1.bf16.msra.mxu0 %v3705
      %3783 = vmatprep.subr.bf16.mxu0 0
      %3784 = vmatpush1.bf16.msra.mxu0 %v3706
      %3785 = vmatprep.subr.bf16.mxu0 0
      %3786 = vmatpush1.bf16.msra.mxu0 %v3707
      %3787 = vmatprep.subr.bf16.mxu0 0
      %3788 = vmatpush1.bf16.msra.mxu0 %v3708
      %3789 = vmatprep.mubr.bf16.mxu0 %v3554
      %3790 = vmatmul.mubr.bf16.gmra.mrb[0].mxu0 %v3553
      %v3791 = vpop.f32.mrb[0].mxu0
      %v3792 = vadd.f32 0.0, %v3791
      %v3793 = vpop.f32.mrb[0].mxu0
      %v3794 = vpop.f32.mrb[0].mxu0
      %v3795 = vadd.f32 0.0, %v3794
      %v3796 = vpop.f32.mrb[0].mxu0
      %3797 = vmatprep.mubr.bf16.mxu0 %v3558
      %3798 = vmatmul.mubr.bf16.gmra.mrb[0].mxu0 %v3557
      %v3799 = vpop.f32.mrb[0].mxu0
      %v3800 = vadd.f32 0.0, %v3799
      %v3801 = vpop.f32.mrb[0].mxu0
      %v3802 = vpop.f32.mrb[0].mxu0
      %v3803 = vadd.f32 0.0, %v3802
      %v3804 = vpop.f32.mrb[0].mxu0
      %3805 = vmatprep.mubr.bf16.mxu0 %v3562
      %3806 = vmatmul.mubr.bf16.gmra.mrb[0].mxu0 %v3561
      %v3807 = vpop.f32.mrb[0].mxu0
      %v3808 = vadd.f32 0.0, %v3807
      %v3809 = vpop.f32.mrb[0].mxu0
      %v3810 = vpop.f32.mrb[0].mxu0
      %v3811 = vadd.f32 0.0, %v3810
      %v3812 = vpop.f32.mrb[0].mxu0
      %3813 = vdwg.mxu0
      %3814 = vmatprep.subr.bf16.mxu0 0
      %3815 = vmatpush1.bf16.msra.mxu0 %v3709
      %3816 = vmatprep.subr.bf16.mxu0 0
      %3817 = vmatpush1.bf16.msra.mxu0 %v3710
      %3818 = vmatprep.subr.bf16.mxu0 0
      %3819 = vmatpush1.bf16.msra.mxu0 %v3711
      %3820 = vmatprep.subr.bf16.mxu0 0
      %3821 = vmatpush1.bf16.msra.mxu0 %v3712
      %3822 = vmatprep.subr.bf16.mxu0 0
      %3823 = vmatpush1.bf16.msra.mxu0 %v3713
      %3824 = vmatprep.subr.bf16.mxu0 0
      %3825 = vmatpush1.bf16.msra.mxu0 %v3714
      %3826 = vmatprep.subr.bf16.mxu0 0
      %3827 = vmatpush1.bf16.msra.mxu0 %v3715
      %3828 = vmatprep.subr.bf16.mxu0 0
      %3829 = vmatpush1.bf16.msra.mxu0 %v3716
      %3830 = vmatprep.subr.bf16.mxu0 0
      %3831 = vmatpush1.bf16.msra.mxu0 %v3717
      %3832 = vmatprep.subr.bf16.mxu0 0
      %3833 = vmatpush1.bf16.msra.mxu0 %v3718
      %3834 = vmatprep.subr.bf16.mxu0 0
      %3835 = vmatpush1.bf16.msra.mxu0 %v3719
      %3836 = vmatprep.subr.bf16.mxu0 0
      %3837 = vmatpush1.bf16.msra.mxu0 %v3720
      %3838 = vmatprep.subr.bf16.mxu0 0
      %3839 = vmatpush1.bf16.msra.mxu0 %v3721
      %3840 = vmatprep.subr.bf16.mxu0 0
      %3841 = vmatpush1.bf16.msra.mxu0 %v3722
      %3842 = vmatprep.subr.bf16.mxu0 0
      %3843 = vmatpush1.bf16.msra.mxu0 %v3723
      %3844 = vmatprep.subr.bf16.mxu0 0
      %3845 = vmatpush1.bf16.msra.mxu0 %v3724
      %3846 = vmatprep.mubr.bf16.mxu0 %v3556
      %3847 = vmatmul.mubr.bf16.gmra.mrb[0].mxu0 %v3555
      %v3848 = vpop.f32.mrb[0].mxu0
      %v3849 = vadd.f32 %v3792, %v3848
      %v3850 = vpop.f32.mrb[0].mxu0
      %v3851 = vpop.f32.mrb[0].mxu0
      %v3852 = vadd.f32 %v3795, %v3851
      %v3853 = vpop.f32.mrb[0].mxu0
      %3854 = vmatprep.mubr.bf16.mxu0 %v3560
      %3855 = vmatmul.mubr.bf16.gmra.mrb[0].mxu0 %v3559
      %v3856 = vpop.f32.mrb[0].mxu0
      %v3857 = vadd.f32 %v3800, %v3856
      %v3858 = vpop.f32.mrb[0].mxu0
      %v3859 = vpop.f32.mrb[0].mxu0
      %v3860 = vadd.f32 %v3803, %v3859
      %v3861 = vpop.f32.mrb[0].mxu0
      %3862 = vmatprep.mubr.bf16.mxu0 %v3564
      %3863 = vmatmul.mubr.bf16.gmra.mrb[0].mxu0 %v3563
      %v3864 = vpop.f32.mrb[0].mxu0
      %v3865 = vadd.f32 %v3808, %v3864
      %v3866 = vpop.f32.mrb[0].mxu0
      %v3867 = vpop.f32.mrb[0].mxu0
      %v3868 = vadd.f32 %v3811, %v3867
      %v3869 = vpop.f32.mrb[0].mxu0
      %3870 = vdwg.mxu0
      %v3871 = vadd.f32 %v1776, %v3849
      %v3872 = vadd.f32 %v1777, %v3852
      %v3873 = vadd.f32 %v1778, %v3857
      %v3874 = vadd.f32 %v1779, %v3860
      %v3875 = vadd.f32 %v1780, %v3865
      %v3876 = vadd.f32 %v1781, %v3868
      %v3877 = vld [vmem:[%s1040] sm:$0x1]
      %v3879 = vlaneseq
      %v3880 = vshrl.u32 %v3879, 7
      %v3881 = vsub.s32 0, %v3880
      %v3882 = vrot.slane %v3877, %v3881
      %v3884 = vadd.f32 %v3871, %v3882
      %v3885 = vadd.f32 %v3872, %v3882
      %v3886 = vadd.f32 %v3873, %v3882
      %v3887 = vadd.f32 %v3874, %v3882
      %v3888 = vadd.f32 %v3875, %v3882
      %v3889 = vadd.f32 %v3876, %v3882
      %v3890 = vld [vmem:[%s1043] sm:$0x1]
      %v3891 = vld [vmem:[%s1046] sm:$0x1]
      %v3892 = vsel %vm1784, %v3884, 0.0
      %3893 = vadd.xlane.f32.xlu0 %v3892
      %v3894 = vpop.xlane.xlu0 %3893
      %v3895 = vsel %vm1784, %v3885, 0.0
      %3896 = vadd.xlane.f32.xlu0 %v3895
      %v3897 = vpop.xlane.xlu0 %3896
      %v3898 = vsel %vm1784, %v3886, 0.0
      %3899 = vadd.xlane.f32.xlu0 %v3898
      %v3900 = vpop.xlane.xlu0 %3899
      %v3901 = vsel %vm1784, %v3887, 0.0
      %3902 = vadd.xlane.f32.xlu0 %v3901
      %v3903 = vpop.xlane.xlu0 %3902
      %v3904 = vsel %vm1784, %v3888, 0.0
      %3905 = vadd.xlane.f32.xlu0 %v3904
      %v3906 = vpop.xlane.xlu0 %3905
      %v3907 = vsel %vm1784, %v3889, 0.0
      %3908 = vadd.xlane.f32.xlu0 %v3907
      %v3909 = vpop.xlane.xlu0 %3908
      %v3910 = vmul.f32 %v3894, %v1803
      %v3911 = vmul.f32 %v3897, %v1803
      %v3912 = vmul.f32 %v3900, %v1803
      %v3913 = vmul.f32 %v3903, %v1803
      %v3914 = vmul.f32 %v3906, %v1803
      %v3915 = vmul.f32 %v3909, %v1803
      %v3916 = vsub.f32 %v3884, %v3910
      %v3917 = vsub.f32 %v3885, %v3911
      %v3918 = vsub.f32 %v3886, %v3912
      %v3919 = vsub.f32 %v3887, %v3913
      %v3920 = vsub.f32 %v3888, %v3914
      %v3921 = vsub.f32 %v3889, %v3915
      %v3922 = vmul.f32 %v3916, %v3916
      %v3923 = vmul.f32 %v3917, %v3917
      %v3924 = vmul.f32 %v3918, %v3918
      %v3925 = vmul.f32 %v3919, %v3919
      %v3926 = vmul.f32 %v3920, %v3920
      %v3927 = vmul.f32 %v3921, %v3921
      %v3928 = vsel %vm1784, %v3922, 0.0
      %3929 = vadd.xlane.f32.xlu0 %v3928
      %v3930 = vpop.xlane.xlu0 %3929
      %v3931 = vsel %vm1784, %v3923, 0.0
      %3932 = vadd.xlane.f32.xlu0 %v3931
      %v3933 = vpop.xlane.xlu0 %3932
      %v3934 = vsel %vm1784, %v3924, 0.0
      %3935 = vadd.xlane.f32.xlu0 %v3934
      %v3936 = vpop.xlane.xlu0 %3935
      %v3937 = vsel %vm1784, %v3925, 0.0
      %3938 = vadd.xlane.f32.xlu0 %v3937
      %v3939 = vpop.xlane.xlu0 %3938
      %v3940 = vsel %vm1784, %v3926, 0.0
      %3941 = vadd.xlane.f32.xlu0 %v3940
      %v3942 = vpop.xlane.xlu0 %3941
      %v3943 = vsel %vm1784, %v3927, 0.0
      %3944 = vadd.xlane.f32.xlu0 %v3943
      %v3945 = vpop.xlane.xlu0 %3944
      %v3946 = vmul.f32 %v3930, %v1803
      %v3947 = vmul.f32 %v3933, %v1803
      %v3948 = vmul.f32 %v3936, %v1803
      %v3949 = vmul.f32 %v3939, %v1803
      %v3950 = vmul.f32 %v3942, %v1803
      %v3951 = vmul.f32 %v3945, %v1803
      %v3952 = vadd.f32 %v3946, 1e-06
      %v3953 = vadd.f32 %v3947, 1e-06
      %v3954 = vadd.f32 %v3948, 1e-06
      %v3955 = vadd.f32 %v3949, 1e-06
      %v3956 = vadd.f32 %v3950, 1e-06
      %v3957 = vadd.f32 %v3951, 1e-06
      %v3958 = vrsqrt.pop %v3952
      %v3959 = vrsqrt.pop %v3953
      %v3960 = vrsqrt.pop %v3954
      %v3961 = vrsqrt.pop %v3955
      %v3962 = vrsqrt.pop %v3956
      %v3963 = vrsqrt.pop %v3957
      %v3964 = vmul.f32 %v3916, %v3958
      %v3965 = vmul.f32 %v3917, %v3959
      %v3966 = vmul.f32 %v3918, %v3960
      %v3967 = vmul.f32 %v3919, %v3961
      %v3968 = vmul.f32 %v3920, %v3962
      %v3969 = vmul.f32 %v3921, %v3963
      %v3971 = vlaneseq
      %v3972 = vshrl.u32 %v3971, 7
      %v3973 = vsub.s32 0, %v3972
      %v3974 = vrot.slane %v3890, %v3973
      %v3976 = vmul.f32 %v3964, %v3974
      %v3977 = vmul.f32 %v3965, %v3974
      %v3978 = vmul.f32 %v3966, %v3974
      %v3979 = vmul.f32 %v3967, %v3974
      %v3980 = vmul.f32 %v3968, %v3974
      %v3981 = vmul.f32 %v3969, %v3974
      %v3983 = vlaneseq
      %v3984 = vshrl.u32 %v3983, 7
      %v3985 = vsub.s32 0, %v3984
      %v3986 = vrot.slane %v3891, %v3985
      %v3988 = vadd.f32 %v3976, %v3986
      %v3989 = vadd.f32 %v3977, %v3986
      %v3990 = vadd.f32 %v3978, %v3986
      %v3991 = vadd.f32 %v3979, %v3986
      %v3992 = vadd.f32 %v3980, %v3986
      %v3993 = vadd.f32 %v3981, %v3986
      %v3994 = vld [vmem:[%s1051] sm:$0xf]
      %v3995 = vld [vmem:[%s1051 + $0x4] sm:$0xf]
      %v3996 = vld [vmem:[%s1051 + $0x8] sm:$0xf]
      %v3997 = vld [vmem:[%s1051 + $0xc] sm:$0xf]
      %v3998 = vld [vmem:[%s1051 + $0x10] sm:$0xf]
      %v3999 = vld [vmem:[%s1051 + $0x14] sm:$0xf]
      %v4000 = vld [vmem:[%s1051 + $0x18] sm:$0xf]
      %v4001 = vld [vmem:[%s1051 + $0x1c] sm:$0xf]
      %v4002 = vpack.c.bf16 %v3989, %v3988
      %v4003 = vpack.c.bf16 %v3991, %v3990
      %v4004 = vpack.c.bf16 %v3993, %v3992
      %v4005 = vld [vmem:[%s1054] sm:$0x1]
      %v4007 = vlaneseq
      %v4008 = vshrl.u32 %v4007, 7
      %v4009 = vsub.s32 0, %v4008
      %v4010 = vrot.slane %v4005, %v4009
      %v4020 = vunpack.c.l.b16 %v3994
      %v4021 = vunpack.c.l.b16 %v3995
      %v4022 = vunpack.c.l.b16 %v3996
      %v4023 = vunpack.c.l.b16 %v3997
      %v4024 = vunpack.c.l.b16 %v3998
      %v4025 = vunpack.c.l.b16 %v3999
      %v4026 = vunpack.c.l.b16 %v4000
      %v4027 = vunpack.c.l.b16 %v4001
      %v4028 = vpack.c.b16 %v4021, %v4020
      %v4029 = vpack.c.b16 %v4023, %v4022
      %v4030 = vpack.c.b16 %v4025, %v4024
      %v4031 = vpack.c.b16 %v4027, %v4026
      %v4037 = vsel %vm1784, %v4002, 0
      %v4040 = vsel %vm1784, %v4003, 0
      %v4043 = vsel %vm1784, %v4004, 0
      %4045 = vmatprep.subr.bf16.mxu0 0
      %4046 = vmatpush1.bf16.msra.mxu0 %v4028
      %4047 = vmatprep.subr.bf16.mxu0 0
      %4048 = vmatpush1.bf16.msra.mxu0 %v4029
      %4049 = vmatprep.subr.bf16.mxu0 0
      %4050 = vmatpush1.bf16.msra.mxu0 %v4030
      %4051 = vmatprep.subr.bf16.mxu0 0
      %4052 = vmatpush1.bf16.msra.mxu0 %v4031
      %4053 = vmatprep.subr.bf16.mxu0 0
      %4054 = vmatpush1.bf16.msra.mxu0 0
      %4055 = vmatprep.subr.bf16.mxu0 0
      %4056 = vmatpush1.bf16.msra.mxu0 0
      %4057 = vmatprep.subr.bf16.mxu0 0
      %4058 = vmatpush1.bf16.msra.mxu0 0
      %4059 = vmatprep.subr.bf16.mxu0 0
      %4060 = vmatpush1.bf16.msra.mxu0 0
      %4061 = vmatprep.subr.bf16.mxu0 0
      %4062 = vmatpush1.bf16.msra.mxu0 0
      %4063 = vmatprep.subr.bf16.mxu0 0
      %4064 = vmatpush1.bf16.msra.mxu0 0
      %4065 = vmatprep.subr.bf16.mxu0 0
      %4066 = vmatpush1.bf16.msra.mxu0 0
      %4067 = vmatprep.subr.bf16.mxu0 0
      %4068 = vmatpush1.bf16.msra.mxu0 0
      %4069 = vmatprep.subr.bf16.mxu0 0
      %4070 = vmatpush1.bf16.msra.mxu0 0
      %4071 = vmatprep.subr.bf16.mxu0 0
      %4072 = vmatpush1.bf16.msra.mxu0 0
      %4073 = vmatprep.subr.bf16.mxu0 0
      %4074 = vmatpush1.bf16.msra.mxu0 0
      %4075 = vmatprep.subr.bf16.mxu0 0
      %4076 = vmatpush1.bf16.msra.mxu0 0
      %4077 = vmatprep.mubr.bf16.mxu0 0
      %4078 = vmatmul.mubr.bf16.gmra.mrb[0].mxu0 %v4037
      %v4079 = vpop.f32.mrb[0].mxu0
      %v4080 = vadd.f32 %v4010, %v4079
      %v4081 = vpop.f32.mrb[0].mxu0
      %v4082 = vpop.f32.mrb[0].mxu0
      %v4083 = vadd.f32 %v4010, %v4082
      %v4084 = vpop.f32.mrb[0].mxu0
      %4085 = vmatprep.mubr.bf16.mxu0 0
      %4086 = vmatmul.mubr.bf16.gmra.mrb[0].mxu0 %v4040
      %v4087 = vpop.f32.mrb[0].mxu0
      %v4088 = vadd.f32 %v4010, %v4087
      %v4089 = vpop.f32.mrb[0].mxu0
      %v4090 = vpop.f32.mrb[0].mxu0
      %v4091 = vadd.f32 %v4010, %v4090
      %v4092 = vpop.f32.mrb[0].mxu0
      %4093 = vmatprep.mubr.bf16.mxu0 0
      %4094 = vmatmul.mubr.bf16.gmra.mrb[0].mxu0 %v4043
      %v4095 = vpop.f32.mrb[0].mxu0
      %v4096 = vadd.f32 %v4010, %v4095
      %v4097 = vpop.f32.mrb[0].mxu0
      %v4098 = vpop.f32.mrb[0].mxu0
      %v4099 = vadd.f32 %v4010, %v4098
      %v4100 = vpop.f32.mrb[0].mxu0
      %4101 = vdwg.mxu0
      %v4102 = vmul.f32 %v4080, 0.5
      %v4103 = vmul.f32 %v4083, 0.5
      %v4104 = vmul.f32 %v4088, 0.5
      %v4105 = vmul.f32 %v4091, 0.5
      %v4106 = vmul.f32 %v4096, 0.5
      %v4107 = vmul.f32 %v4099, 0.5
      %v4108 = vmul.f32 %v4080, 0.70710677
      %v4109 = vmul.f32 %v4083, 0.70710677
      %v4110 = vmul.f32 %v4088, 0.70710677
      %v4111 = vmul.f32 %v4091, 0.70710677
      %v4112 = vmul.f32 %v4096, 0.70710677
      %v4113 = vmul.f32 %v4099, 0.70710677
      %v4114 = verf.f32.pop %v4108
      %v4115 = verf.f32.pop %v4109
      %v4116 = verf.f32.pop %v4110
      %v4117 = verf.f32.pop %v4111
      %v4118 = verf.f32.pop %v4112
      %v4119 = verf.f32.pop %v4113
      %v4120 = vadd.f32 %v4114, 1.0
      %v4121 = vadd.f32 %v4115, 1.0
      %v4122 = vadd.f32 %v4116, 1.0
      %v4123 = vadd.f32 %v4117, 1.0
      %v4124 = vadd.f32 %v4118, 1.0
      %v4125 = vadd.f32 %v4119, 1.0
      %v4126 = vmul.f32 %v4102, %v4120
      %v4127 = vmul.f32 %v4103, %v4121
      %v4128 = vmul.f32 %v4104, %v4122
      %v4129 = vmul.f32 %v4105, %v4123
      %v4130 = vmul.f32 %v4106, %v4124
      %v4131 = vmul.f32 %v4107, %v4125
      %v4132 = vld [vmem:[%s1059] sm:$0xf]
      %v4133 = vld [vmem:[%s1059 + $0x4] sm:$0xf]
      %v4134 = vld [vmem:[%s1059 + $0x8] sm:$0xf]
      %v4135 = vld [vmem:[%s1059 + $0xc] sm:$0xf]
      %v4136 = vld [vmem:[%s1059 + $0x10] sm:$0xf]
      %v4137 = vld [vmem:[%s1059 + $0x14] sm:$0xf]
      %v4138 = vld [vmem:[%s1059 + $0x18] sm:$0xf]
      %v4139 = vld [vmem:[%s1059 + $0x1c] sm:$0xf]
      %v4140 = vld [vmem:[%s1059 + $0x20] sm:$0xf]
      %v4141 = vld [vmem:[%s1059 + $0x24] sm:$0xf]
      %v4142 = vld [vmem:[%s1059 + $0x28] sm:$0xf]
      %v4143 = vld [vmem:[%s1059 + $0x2c] sm:$0xf]
      %v4144 = vld [vmem:[%s1059 + $0x30] sm:$0xf]
      %v4145 = vld [vmem:[%s1059 + $0x34] sm:$0xf]
      %v4146 = vld [vmem:[%s1059 + $0x38] sm:$0xf]
      %v4147 = vld [vmem:[%s1059 + $0x3c] sm:$0xf]
      %v4148 = vpack.c.bf16 %v4127, %v4126
      %v4149 = vpack.c.bf16 %v4129, %v4128
      %v4150 = vpack.c.bf16 %v4131, %v4130
      %v4167 = vunpack.c.l.b16 %v4132
      %v4168 = vunpack.c.l.b16 %v4133
      %v4169 = vunpack.c.l.b16 %v4134
      %v4170 = vunpack.c.l.b16 %v4135
      %v4171 = vunpack.c.l.b16 %v4136
      %v4172 = vunpack.c.l.b16 %v4137
      %v4173 = vunpack.c.l.b16 %v4138
      %v4174 = vunpack.c.l.b16 %v4139
      %v4175 = vunpack.c.l.b16 %v4140
      %v4176 = vunpack.c.l.b16 %v4141
      %v4177 = vunpack.c.l.b16 %v4142
      %v4178 = vunpack.c.l.b16 %v4143
      %v4179 = vunpack.c.l.b16 %v4144
      %v4180 = vunpack.c.l.b16 %v4145
      %v4181 = vunpack.c.l.b16 %v4146
      %v4182 = vunpack.c.l.b16 %v4147
      %v4183 = vpack.c.b16 %v4168, %v4167
      %v4184 = vpack.c.b16 %v4170, %v4169
      %v4185 = vpack.c.b16 %v4172, %v4171
      %v4186 = vpack.c.b16 %v4174, %v4173
      %v4187 = vpack.c.b16 %v4176, %v4175
      %v4188 = vpack.c.b16 %v4178, %v4177
      %v4189 = vpack.c.b16 %v4180, %v4179
      %v4190 = vpack.c.b16 %v4182, %v4181
      %4199 = vmatprep.subr.bf16.mxu0 0
      %4200 = vmatpush1.bf16.msra.mxu0 %v4183
      %4201 = vmatprep.subr.bf16.mxu0 0
      %4202 = vmatpush1.bf16.msra.mxu0 %v4184
      %4203 = vmatprep.subr.bf16.mxu0 0
      %4204 = vmatpush1.bf16.msra.mxu0 %v4185
      %4205 = vmatprep.subr.bf16.mxu0 0
      %4206 = vmatpush1.bf16.msra.mxu0 %v4186
      %4207 = vmatprep.subr.bf16.mxu0 0
      %4208 = vmatpush1.bf16.msra.mxu0 %v4187
      %4209 = vmatprep.subr.bf16.mxu0 0
      %4210 = vmatpush1.bf16.msra.mxu0 %v4188
      %4211 = vmatprep.subr.bf16.mxu0 0
      %4212 = vmatpush1.bf16.msra.mxu0 %v4189
      %4213 = vmatprep.subr.bf16.mxu0 0
      %4214 = vmatpush1.bf16.msra.mxu0 %v4190
      %4215 = vmatprep.subr.bf16.mxu0 0
      %4216 = vmatpush1.bf16.msra.mxu0 0
      %4217 = vmatprep.subr.bf16.mxu0 0
      %4218 = vmatpush1.bf16.msra.mxu0 0
      %4219 = vmatprep.subr.bf16.mxu0 0
      %4220 = vmatpush1.bf16.msra.mxu0 0
      %4221 = vmatprep.subr.bf16.mxu0 0
      %4222 = vmatpush1.bf16.msra.mxu0 0
      %4223 = vmatprep.subr.bf16.mxu0 0
      %4224 = vmatpush1.bf16.msra.mxu0 0
      %4225 = vmatprep.subr.bf16.mxu0 0
      %4226 = vmatpush1.bf16.msra.mxu0 0
      %4227 = vmatprep.subr.bf16.mxu0 0
      %4228 = vmatpush1.bf16.msra.mxu0 0
      %4229 = vmatprep.subr.bf16.mxu0 0
      %4230 = vmatpush1.bf16.msra.mxu0 0
      %4231 = vmatprep.mubr.bf16.mxu0 0
      %4232 = vmatmul.mubr.bf16.gmra.mrb[0].mxu0 %v4148
      %v4233 = vpop.f32.mrb[0].mxu0
      %v4234 = vadd.f32 0.0, %v4233
      %v4235 = vpop.f32.mrb[0].mxu0
      %v4236 = vpop.f32.mrb[0].mxu0
      %v4237 = vadd.f32 0.0, %v4236
      %v4238 = vpop.f32.mrb[0].mxu0
      %4239 = vmatprep.mubr.bf16.mxu0 0
      %4240 = vmatmul.mubr.bf16.gmra.mrb[0].mxu0 %v4149
      %v4241 = vpop.f32.mrb[0].mxu0
      %v4242 = vadd.f32 0.0, %v4241
      %v4243 = vpop.f32.mrb[0].mxu0
      %v4244 = vpop.f32.mrb[0].mxu0
      %v4245 = vadd.f32 0.0, %v4244
      %v4246 = vpop.f32.mrb[0].mxu0
      %4247 = vmatprep.mubr.bf16.mxu0 0
      %4248 = vmatmul.mubr.bf16.gmra.mrb[0].mxu0 %v4150
      %v4249 = vpop.f32.mrb[0].mxu0
      %v4250 = vadd.f32 0.0, %v4249
      %v4251 = vpop.f32.mrb[0].mxu0
      %v4252 = vpop.f32.mrb[0].mxu0
      %v4253 = vadd.f32 0.0, %v4252
      %v4254 = vpop.f32.mrb[0].mxu0
      %4255 = vdwg.mxu0
      %v4256 = vadd.f32 %v3884, %v4234
      %v4257 = vadd.f32 %v3885, %v4237
      %v4258 = vadd.f32 %v3886, %v4242
      %v4259 = vadd.f32 %v3887, %v4245
      %v4260 = vadd.f32 %v3888, %v4250
      %v4261 = vadd.f32 %v3889, %v4253
      %v4262 = vld [vmem:[%s1062] sm:$0x1]
      %v4264 = vlaneseq
      %v4265 = vshrl.u32 %v4264, 7
      %v4266 = vsub.s32 0, %v4265
      %v4267 = vrot.slane %v4262, %v4266
      %v4269 = vadd.f32 %v4256, %v4267
      %v4270 = vadd.f32 %v4257, %v4267
      %v4271 = vadd.f32 %v4258, %v4267
      %v4272 = vadd.f32 %v4259, %v4267
      %v4273 = vadd.f32 %v4260, %v4267
      %v4274 = vadd.f32 %v4261, %v4267
      %4275 = vst.msk [vmem:[#allocation2] sm:$0xff] %vm1784, %v4269
      %4276 = vst.msk [vmem:[#allocation2 + $0x8] sm:$0xff] %vm1784, %v4270
      %4277 = vst.msk [vmem:[#allocation2 + $0x10] sm:$0xff] %vm1784, %v4271
      %4278 = vst.msk [vmem:[#allocation2 + $0x18] sm:$0xff] %vm1784, %v4272
      %4279 = vst.msk [vmem:[#allocation2 + $0x20] sm:$0xff] %vm1784, %v4273
      %4280 = vst.msk [vmem:[#allocation2 + $0x28] sm:$0xff] %vm1784, %v4274
      %p4281 = scmp.eq.s32.totalorder %s70, 1
      // Predicated region
      $region141: #{traffic_transformer_forward.1} parent=135 // pred_check
        %p4282 = pneg %p4281
      $region142: #{traffic_transformer_forward.1} parent=135 // pred_check_branch
        %4284 = sbr.rel (%p4282) target = $region144
      $region143: #{traffic_transformer_forward.1} parent=135 // pred_region
        %v4285 = vld [vmem:[#allocation2] ss:$8 sm:$0xf]
        %v4286 = vld [vmem:[#allocation2] ss:$8 sm:$0x30]
        %v4287 = vor.u32 %v4285, %v4286
        %v4288 = vld [vmem:[%s15] sm:$0x1]
        %v4289 = vld [vmem:[%s17] sm:$0x1]
        %vm4290 = vcmask 521216
        %v4291 = vsel %vm4290, %v4287, 0.0
        %4292 = vadd.xlane.f32.xlu0 %v4291
        %v4293 = vpop.xlane.xlu0 %4292
        %v4294 = vmul.f32 %v4293, %v1803
        %v4295 = vsub.f32 %v4287, %v4294
        %v4296 = vmul.f32 %v4295, %v4295
        %v4297 = vsel %vm4290, %v4296, 0.0
        %4298 = vadd.xlane.f32.xlu0 %v4297
        %v4299 = vpop.xlane.xlu0 %4298
        %v4300 = vmul.f32 %v4299, %v1803
        %v4301 = vadd.f32 %v4300, 1e-06
        %v4302 = vrsqrt.pop %v4301
        %v4303 = vmul.f32 %v4295, %v4302
        %v4305 = vlaneseq
        %v4306 = vshrl.u32 %v4305, 7
        %v4307 = vsub.s32 0, %v4306
        %v4308 = vrot.slane %v4288, %v4307
        %v4310 = vmul.f32 %v4303, %v4308
        %v4312 = vlaneseq
        %v4313 = vshrl.u32 %v4312, 7
        %v4314 = vsub.s32 0, %v4313
        %v4315 = vrot.slane %v4289, %v4314
        %v4317 = vadd.f32 %v4310, %v4315
        %v4318 = vld [vmem:[%s13] sm:$0x1]
        %v4319 = vpack.c.bf16 %v4317, %v4317
        %vm4320 = vcmask 48128
        %v4322 = vsel %vm4320, %v4318, 0
        %vm4324 = vcmask 1042432
        %v4326 = vsel %vm4324, %v4319, 0
        %4328 = vmatprep.subr.bf16.mxu0 0
        %4329 = vmatpush1.bf16.msra.mxu0 %v4326
        %4330 = vmatprep.subr.bf16.mxu0 0
        %4331 = vmatpush1.bf16.msra.mxu0 0
        %4332 = vmatprep.subr.bf16.mxu0 0
        %4333 = vmatpush1.bf16.msra.mxu0 0
        %4334 = vmatprep.subr.bf16.mxu0 0
        %4335 = vmatpush1.bf16.msra.mxu0 0
        %4336 = vmatprep.subr.bf16.mxu0 0
        %4337 = vmatpush1.bf16.msra.mxu0 0
        %4338 = vmatprep.subr.bf16.mxu0 0
        %4339 = vmatpush1.bf16.msra.mxu0 0
        %4340 = vmatprep.subr.bf16.mxu0 0
        %4341 = vmatpush1.bf16.msra.mxu0 0
        %4342 = vmatprep.subr.bf16.mxu0 0
        %4343 = vmatpush1.bf16.msra.mxu0 0
        %4344 = vmatprep.subr.bf16.mxu0 0
        %4345 = vmatpush1.bf16.msra.mxu0 0
        %4346 = vmatprep.subr.bf16.mxu0 0
        %4347 = vmatpush1.bf16.msra.mxu0 0
        %4348 = vmatprep.subr.bf16.mxu0 0
        %4349 = vmatpush1.bf16.msra.mxu0 0
        %4350 = vmatprep.subr.bf16.mxu0 0
        %4351 = vmatpush1.bf16.msra.mxu0 0
        %4352 = vmatprep.subr.bf16.mxu0 0
        %4353 = vmatpush1.bf16.msra.mxu0 0
        %4354 = vmatprep.subr.bf16.mxu0 0
        %4355 = vmatpush1.bf16.msra.mxu0 0
        %4356 = vmatprep.subr.bf16.mxu0 0
        %4357 = vmatpush1.bf16.msra.mxu0 0
        %4358 = vmatprep.subr.bf16.mxu0 0
        %4359 = vmatpush1.bf16.msra.mxu0 0
        %4360 = vmatprep.mubr.bf16.mxu0 0
        %4361 = vmatmul.mubr.bf16.gmra.mrb[0].mxu0 %v4322
        %v4362 = vpop.f32.mrb[0].mxu0
        %v4363 = vadd.f32 0.0, %v4362
        %v4364 = vpop.f32.mrb[0].mxu0
        %v4365 = vpop.f32.mrb[0].mxu0
        %v4366 = vpop.f32.mrb[0].mxu0
        %4367 = vdwg.mxu0
        %v4368 = vmul.f32 %v4363, 0.33333334
        %v4369 = vld [vmem:[%s19] sm:$0xf]
        %v4370 = vld [vmem:[%s19 + $0x4] sm:$0xf]
        %v4371 = vld [vmem:[%s19 + $0x8] sm:$0xf]
        %v4372 = vld [vmem:[%s19 + $0xc] sm:$0xf]
        %v4373 = vld [vmem:[%s19 + $0x10] sm:$0xf]
        %v4374 = vld [vmem:[%s19 + $0x14] sm:$0xf]
        %v4375 = vld [vmem:[%s19 + $0x18] sm:$0xf]
        %v4376 = vld [vmem:[%s19 + $0x1c] sm:$0xf]
        %v4377 = vpack.c.bf16 %v4368, %v4368
        %v4378 = vld [vmem:[%s21] sm:$0x1]
        %v4380 = vlaneseq
        %v4381 = vshrl.u32 %v4380, 7
        %v4382 = vsub.s32 0, %v4381
        %v4383 = vrot.slane %v4378, %v4382
        %v4393 = vunpack.c.l.b16 %v4369
        %v4394 = vunpack.c.l.b16 %v4370
        %v4395 = vunpack.c.l.b16 %v4371
        %v4396 = vunpack.c.l.b16 %v4372
        %v4397 = vunpack.c.l.b16 %v4373
        %v4398 = vunpack.c.l.b16 %v4374
        %v4399 = vunpack.c.l.b16 %v4375
        %v4400 = vunpack.c.l.b16 %v4376
        %v4401 = vpack.c.b16 %v4394, %v4393
        %v4402 = vpack.c.b16 %v4396, %v4395
        %v4403 = vpack.c.b16 %v4398, %v4397
        %v4404 = vpack.c.b16 %v4400, %v4399
        %v4410 = vsel %vm1784, %v4377, 0
        %4412 = vmatprep.subr.bf16.mxu0 0
        %4413 = vmatpush1.bf16.msra.mxu0 %v4401
        %4414 = vmatprep.subr.bf16.mxu0 0
        %4415 = vmatpush1.bf16.msra.mxu0 %v4402
        %4416 = vmatprep.subr.bf16.mxu0 0
        %4417 = vmatpush1.bf16.msra.mxu0 %v4403
        %4418 = vmatprep.subr.bf16.mxu0 0
        %4419 = vmatpush1.bf16.msra.mxu0 %v4404
        %4420 = vmatprep.subr.bf16.mxu0 0
        %4421 = vmatpush1.bf16.msra.mxu0 0
        %4422 = vmatprep.subr.bf16.mxu0 0
        %4423 = vmatpush1.bf16.msra.mxu0 0
        %4424 = vmatprep.subr.bf16.mxu0 0
        %4425 = vmatpush1.bf16.msra.mxu0 0
        %4426 = vmatprep.subr.bf16.mxu0 0
        %4427 = vmatpush1.bf16.msra.mxu0 0
        %4428 = vmatprep.subr.bf16.mxu0 0
        %4429 = vmatpush1.bf16.msra.mxu0 0
        %4430 = vmatprep.subr.bf16.mxu0 0
        %4431 = vmatpush1.bf16.msra.mxu0 0
        %4432 = vmatprep.subr.bf16.mxu0 0
        %4433 = vmatpush1.bf16.msra.mxu0 0
        %4434 = vmatprep.subr.bf16.mxu0 0
        %4435 = vmatpush1.bf16.msra.mxu0 0
        %4436 = vmatprep.subr.bf16.mxu0 0
        %4437 = vmatpush1.bf16.msra.mxu0 0
        %4438 = vmatprep.subr.bf16.mxu0 0
        %4439 = vmatpush1.bf16.msra.mxu0 0
        %4440 = vmatprep.subr.bf16.mxu0 0
        %4441 = vmatpush1.bf16.msra.mxu0 0
        %4442 = vmatprep.subr.bf16.mxu0 0
        %4443 = vmatpush1.bf16.msra.mxu0 0
        %4444 = vmatprep.mubr.bf16.mxu0 0
        %4445 = vmatmul.mubr.bf16.gmra.mrb[0].mxu0 %v4410
        %v4446 = vpop.f32.mrb[0].mxu0
        %v4447 = vadd.f32 %v4383, %v4446
        %v4448 = vpop.f32.mrb[0].mxu0
        %v4449 = vpop.f32.mrb[0].mxu0
        %v4450 = vpop.f32.mrb[0].mxu0
        %4451 = vdwg.mxu0
        %v4452 = vld [vmem:[%s23] sm:$0xf]
        %v4453 = vld [vmem:[%s23 + $0x4] sm:$0xf]
        %v4454 = vld [vmem:[%s23 + $0x8] sm:$0xf]
        %v4455 = vld [vmem:[%s23 + $0xc] sm:$0xf]
        %v4456 = vpack.c.bf16 %v4447, %v4447
        %v4457 = vld [vmem:[%s25] sm:$0x1]
        %v4459 = vlaneseq
        %v4460 = vshrl.u32 %v4459, 7
        %v4461 = vsub.s32 0, %v4460
        %v4462 = vrot.slane %v4457, %v4461
        %v4468 = vunpack.c.l.b16 %v4452
        %v4469 = vunpack.c.l.b16 %v4453
        %v4470 = vunpack.c.l.b16 %v4454
        %v4471 = vunpack.c.l.b16 %v4455
        %v4472 = vpack.c.b16 %v4469, %v4468
        %v4473 = vpack.c.b16 %v4471, %v4470
        %vm4476 = vcmask 261120
        %v4478 = vsel %vm4476, %v4456, 0
        %4480 = vmatprep.subr.bf16.mxu0 0
        %4481 = vmatpush1.bf16.msra.mxu0 %v4472
        %4482 = vmatprep.subr.bf16.mxu0 0
        %4483 = vmatpush1.bf16.msra.mxu0 %v4473
        %4484 = vmatprep.subr.bf16.mxu0 0
        %4485 = vmatpush1.bf16.msra.mxu0 0
        %4486 = vmatprep.subr.bf16.mxu0 0
        %4487 = vmatpush1.bf16.msra.mxu0 0
        %4488 = vmatprep.subr.bf16.mxu0 0
        %4489 = vmatpush1.bf16.msra.mxu0 0
        %4490 = vmatprep.subr.bf16.mxu0 0
        %4491 = vmatpush1.bf16.msra.mxu0 0
        %4492 = vmatprep.subr.bf16.mxu0 0
        %4493 = vmatpush1.bf16.msra.mxu0 0
        %4494 = vmatprep.subr.bf16.mxu0 0
        %4495 = vmatpush1.bf16.msra.mxu0 0
        %4496 = vmatprep.subr.bf16.mxu0 0
        %4497 = vmatpush1.bf16.msra.mxu0 0
        %4498 = vmatprep.subr.bf16.mxu0 0
        %4499 = vmatpush1.bf16.msra.mxu0 0
        %4500 = vmatprep.subr.bf16.mxu0 0
        %4501 = vmatpush1.bf16.msra.mxu0 0
        %4502 = vmatprep.subr.bf16.mxu0 0
        %4503 = vmatpush1.bf16.msra.mxu0 0
        %4504 = vmatprep.subr.bf16.mxu0 0
        %4505 = vmatpush1.bf16.msra.mxu0 0
        %4506 = vmatprep.subr.bf16.mxu0 0
        %4507 = vmatpush1.bf16.msra.mxu0 0
        %4508 = vmatprep.subr.bf16.mxu0 0
        %4509 = vmatpush1.bf16.msra.mxu0 0
        %4510 = vmatprep.subr.bf16.mxu0 0
        %4511 = vmatpush1.bf16.msra.mxu0 0
        %4512 = vmatprep.mubr.bf16.mxu0 0
        %4513 = vmatmul.mubr.bf16.gmra.mrb[0].mxu0 %v4478
        %v4514 = vpop.f32.mrb[0].mxu0
        %v4515 = vadd.f32 %v4462, %v4514
        %v4516 = vpop.f32.mrb[0].mxu0
        %v4517 = vpop.f32.mrb[0].mxu0
        %v4518 = vpop.f32.mrb[0].mxu0
        %4519 = vdwg.mxu0
        %v4520 = vmax.f32 %v4515, 0.0
        %v4521 = vld [vmem:[%s27] sm:$0xf]
        %v4522 = vld [vmem:[%s27 + $0x4] sm:$0xf]
        %v4523 = vld [vmem:[%s27 + $0x8] sm:$0xf]
        %v4524 = vld [vmem:[%s27 + $0xc] sm:$0xf]
        %v4525 = vpack.c.bf16 %v4520, %v4520
        %v4526 = vld [vmem:[%s29] sm:$0x1]
        %v4528 = vlaneseq
        %v4529 = vshrl.u32 %v4528, 7
        %v4530 = vsub.s32 0, %v4529
        %v4531 = vrot.slane %v4526, %v4530
        %v4537 = vunpack.c.l.b16 %v4521
        %v4538 = vunpack.c.l.b16 %v4522
        %v4539 = vunpack.c.l.b16 %v4523
        %v4540 = vunpack.c.l.b16 %v4524
        %v4541 = vpack.c.b16 %v4538, %v4537
        %v4542 = vpack.c.b16 %v4540, %v4539
        %v4546 = vsel %vm4476, %v4525, 0
        %4548 = vmatprep.subr.bf16.mxu0 0
        %4549 = vmatpush1.bf16.msra.mxu0 %v4541
        %4550 = vmatprep.subr.bf16.mxu0 0
        %4551 = vmatpush1.bf16.msra.mxu0 %v4542
        %4552 = vmatprep.subr.bf16.mxu0 0
        %4553 = vmatpush1.bf16.msra.mxu0 0
        %4554 = vmatprep.subr.bf16.mxu0 0
        %4555 = vmatpush1.bf16.msra.mxu0 0
        %4556 = vmatprep.subr.bf16.mxu0 0
        %4557 = vmatpush1.bf16.msra.mxu0 0
        %4558 = vmatprep.subr.bf16.mxu0 0
        %4559 = vmatpush1.bf16.msra.mxu0 0
        %4560 = vmatprep.subr.bf16.mxu0 0
        %4561 = vmatpush1.bf16.msra.mxu0 0
        %4562 = vmatprep.subr.bf16.mxu0 0
        %4563 = vmatpush1.bf16.msra.mxu0 0
        %4564 = vmatprep.subr.bf16.mxu0 0
        %4565 = vmatpush1.bf16.msra.mxu0 0
        %4566 = vmatprep.subr.bf16.mxu0 0
        %4567 = vmatpush1.bf16.msra.mxu0 0
        %4568 = vmatprep.subr.bf16.mxu0 0
        %4569 = vmatpush1.bf16.msra.mxu0 0
        %4570 = vmatprep.subr.bf16.mxu0 0
        %4571 = vmatpush1.bf16.msra.mxu0 0
        %4572 = vmatprep.subr.bf16.mxu0 0
        %4573 = vmatpush1.bf16.msra.mxu0 0
        %4574 = vmatprep.subr.bf16.mxu0 0
        %4575 = vmatpush1.bf16.msra.mxu0 0
        %4576 = vmatprep.subr.bf16.mxu0 0
        %4577 = vmatpush1.bf16.msra.mxu0 0
        %4578 = vmatprep.subr.bf16.mxu0 0
        %4579 = vmatpush1.bf16.msra.mxu0 0
        %4580 = vmatprep.mubr.bf16.mxu0 0
        %4581 = vmatmul.mubr.bf16.gmra.mrb[0].mxu0 %v4546
        %v4582 = vpop.f32.mrb[0].mxu0
        %v4583 = vadd.f32 %v4531, %v4582
        %v4584 = vpop.f32.mrb[0].mxu0
        %v4585 = vpop.f32.mrb[0].mxu0
        %v4586 = vpop.f32.mrb[0].mxu0
        %4587 = vdwg.mxu0
        %v4588 = vmax.f32 %v4583, 0.0
        %v4589 = vld [vmem:[%s31] sm:$0xf]
        %v4590 = vld [vmem:[%s31 + $0x4] sm:$0xf]
        %v4591 = vld [vmem:[%s31 + $0x8] sm:$0xf]
        %v4592 = vld [vmem:[%s31 + $0xc] sm:$0xf]
        %v4593 = vld [vmem:[%s31 + $0x10] sm:$0xf]
        %v4594 = vld [vmem:[%s31 + $0x14] sm:$0xf]
        %v4595 = vld [vmem:[%s31 + $0x18] sm:$0xf]
        %v4596 = vld [vmem:[%s31 + $0x1c] sm:$0xf]
        %v4597 = vpack.c.bf16 %v4588, %v4588
        %v4598 = vld [vmem:[%s33] sm:$0x1]
        %v4600 = vlaneseq
        %v4601 = vshrl.u32 %v4600, 7
        %v4602 = vsub.s32 0, %v4601
        %v4603 = vrot.slane %v4598, %v4602
        %v4613 = vunpack.c.l.b16 %v4589
        %v4614 = vunpack.c.l.b16 %v4590
        %v4615 = vunpack.c.l.b16 %v4591
        %v4616 = vunpack.c.l.b16 %v4592
        %v4617 = vunpack.c.l.b16 %v4593
        %v4618 = vunpack.c.l.b16 %v4594
        %v4619 = vunpack.c.l.b16 %v4595
        %v4620 = vunpack.c.l.b16 %v4596
        %v4621 = vpack.c.b16 %v4614, %v4613
        %v4622 = vpack.c.b16 %v4616, %v4615
        %v4623 = vpack.c.b16 %v4618, %v4617
        %v4624 = vpack.c.b16 %v4620, %v4619
        %v4630 = vsel %vm1784, %v4597, 0
        %4632 = vmatprep.subr.bf16.mxu0 0
        %4633 = vmatpush1.bf16.msra.mxu0 %v4621
        %4634 = vmatprep.subr.bf16.mxu0 0
        %4635 = vmatpush1.bf16.msra.mxu0 %v4622
        %4636 = vmatprep.subr.bf16.mxu0 0
        %4637 = vmatpush1.bf16.msra.mxu0 %v4623
        %4638 = vmatprep.subr.bf16.mxu0 0
        %4639 = vmatpush1.bf16.msra.mxu0 %v4624
        %4640 = vmatprep.subr.bf16.mxu0 0
        %4641 = vmatpush1.bf16.msra.mxu0 0
        %4642 = vmatprep.subr.bf16.mxu0 0
        %4643 = vmatpush1.bf16.msra.mxu0 0
        %4644 = vmatprep.subr.bf16.mxu0 0
        %4645 = vmatpush1.bf16.msra.mxu0 0
        %4646 = vmatprep.subr.bf16.mxu0 0
        %4647 = vmatpush1.bf16.msra.mxu0 0
        %4648 = vmatprep.subr.bf16.mxu0 0
        %4649 = vmatpush1.bf16.msra.mxu0 0
        %4650 = vmatprep.subr.bf16.mxu0 0
        %4651 = vmatpush1.bf16.msra.mxu0 0
        %4652 = vmatprep.subr.bf16.mxu0 0
        %4653 = vmatpush1.bf16.msra.mxu0 0
        %4654 = vmatprep.subr.bf16.mxu0 0
        %4655 = vmatpush1.bf16.msra.mxu0 0
        %4656 = vmatprep.subr.bf16.mxu0 0
        %4657 = vmatpush1.bf16.msra.mxu0 0
        %4658 = vmatprep.subr.bf16.mxu0 0
        %4659 = vmatpush1.bf16.msra.mxu0 0
        %4660 = vmatprep.subr.bf16.mxu0 0
        %4661 = vmatpush1.bf16.msra.mxu0 0
        %4662 = vmatprep.subr.bf16.mxu0 0
        %4663 = vmatpush1.bf16.msra.mxu0 0
        %4664 = vmatprep.mubr.bf16.mxu0 0
        %4665 = vmatmul.mubr.bf16.gmra.mrb[0].mxu0 %v4630
        %v4666 = vpop.f32.mrb[0].mxu0
        %v4667 = vadd.f32 %v4603, %v4666
        %v4668 = vpop.f32.mrb[0].mxu0
        %v4669 = vpop.f32.mrb[0].mxu0
        %v4670 = vpop.f32.mrb[0].mxu0
        %4671 = vdwg.mxu0
        %v4672 = vlaneseq
        %v4673 = vand.u32 %v4672, 127
        %vm4674 = vcmp.eq.s32.totalorder %v4673, 0
        %v4675 = vsub.f32 0.0, %v4667
        %v4676 = vmul.f32 %v4675, 1.442695
        %v4677 = vpow.pop %v4676
        %v4678 = vadd.f32 %v4677, 1.0
        %v4679 = vrcp.pop %v4678
        %v4680 = vmul.f32 1.0, %v4679
        %v4681 = vsel %vm4674, %v4680, %v4667
        %4682 = vst [vmem:[%s59] sm:$0x3] %v4681
      $region144: #{traffic_transformer_forward.1} parent=135 // pred_fallthru
        _
      // Predicated region
      $region145: #{traffic_transformer_forward.1} parent=135 // pred_check
        %p4683 = pneg %p752
      $region146: #{traffic_transformer_forward.1} parent=135 // pred_check_branch
        %4685 = sbr.rel (%p4683) target = $region148
      $region147: #{traffic_transformer_forward.1} parent=135 // pred_region
        _
      $region148: #{traffic_transformer_forward.1} parent=135 // pred_fallthru
        _
      // Predicated region
      $region149: #{traffic_transformer_forward.1} parent=135 // pred_check
        %p4686 = pneg %p752
      $region150: #{traffic_transformer_forward.1} parent=135 // pred_check_branch
        %4688 = sbr.rel (%p4686) target = $region152
      $region151: #{traffic_transformer_forward.1} parent=135 // pred_region
        _
      $region152: #{traffic_transformer_forward.1} parent=135 // pred_fallthru
        _
    $region136: #{traffic_transformer_forward.1} parent=5 // pred_fallthru
      _
    %p4689 = scmp.le.s32.totalorder 2, %s65
    // Predicated region
    $region153: #{traffic_transformer_forward.1} parent=5 // pred_check
      %p4690 = pneg %p4689
    $region154: #{traffic_transformer_forward.1} parent=5 // pred_check_branch
      %4692 = sbr.rel (%p4690) target = $region156
    $region155: #{traffic_transformer_forward.1} parent=5 // pred_region
      %s4693 = ssub.s32 %s65, 2
    $region156: #{traffic_transformer_forward.1} parent=5 // pred_fallthru
      _
  $region6: #{traffic_transformer_forward.1} parent=0 // loop_footer
    %s69 = sadd.s32 1, %s65
  $region7: #{traffic_transformer_forward.1} parent=0 // loop_footer_branch
    %64 = sbr.rel target = $region3
  $region8: #{traffic_transformer_forward.1} parent=0 // loop_exit
    _

</llo_original>
